<compile_context>
chip_gen: v7x
topology: tpu7x:2x2x1
jax: 0.10.0
libtpu: 0.0.40
codegen_flags: <defaults>
</compile_context>

<pallas_src>
import jax
import jax.numpy as jnp
from jax.experimental import pallas as pl
from jax.experimental.pallas import tpu as pltpu


def _round_up(n, m):
    return ((n + m - 1) // m) * m


def _vq_kernel(x_ref, neg2et_ref, e_ref, e_sq_ref, q_ref):
    """One (tm, D) tile: nearest-code search + one-hot gather matmul."""
    x = x_ref[...]                                      # (tm, D)
    neg2et = neg2et_ref[...]                            # (D, Kp) == -2 * E^T (padded)
    xm = x if x.dtype == neg2et.dtype else x.astype(neg2et.dtype)

    # argmin_k ||x - E_k||^2 == argmin_k (||E_k||^2 - 2 x.E_k); the -2 factor is
    # folded into neg2et in the wrapper, the row-constant ||x||^2 is dropped.
    dots = jnp.dot(xm, neg2et, preferred_element_type=jnp.float32)   # (tm, Kp) MXU
    dist = dots + e_sq_ref[...]                                      # (tm, Kp) VPU

    idx = jnp.argmin(dist, axis=1, keepdims=True)                    # (tm, 1), first-min ties
    iota = jax.lax.broadcasted_iota(jnp.int32, dist.shape, 1)
    onehot = (iota == idx).astype(e_ref.dtype)                       # (tm, Kp)

    # Quantize via one-hot matmul (identical to torch's encodings @ weight).
    # Padded code rows of E are zero and can never win the argmin (sentinel e_sq).
    # TODO(synk): for large codebooks (K >= ~1024) replace this second MXU pass
    # with a row gather of E by idx, and for K*D approaching VMEM capacity stream
    # the codebook over a K grid axis with a running (min, argmin).
    q = jnp.dot(onehot, e_ref[...], preferred_element_type=jnp.float32)

    # D < 128 puts this store in the masked (lane-sparse) regime; see module note.
    q_ref[...] = q.astype(q_ref.dtype)


def vector_quantization(x, embedding_weight, commitment_cost, *,
                        max_tile_m=512, distance_matmul_dtype=None):
    """x: (..., D) channels-last, embedding_weight: (K, D). Returns (quantized, loss)."""
    input_shape = x.shape
    k, d = embedding_weight.shape
    hidden = x.reshape(-1, d)
    m = hidden.shape[0]

    # ---- grid-invariant codebook prep (hoisted out of the per-tile loop) ----
    # Pad K up to a lane multiple (128): padded codes get a huge ||E||^2 so they
    # never win the argmin, and zero rows so the gather matmul is unaffected.
    k_pad = _round_up(k, 128)
    e_pad = jnp.zeros((k_pad, d), embedding_weight.dtype).at[:k, :].set(embedding_weight)
    e_sq = jnp.full((1, k_pad), 1e30, jnp.float32)
    e_sq = e_sq.at[0, :k].set(
        jnp.sum(jnp.square(embedding_weight.astype(jnp.float32)), axis=1))
    mm_dtype = distance_matmul_dtype or embedding_weight.dtype
    neg2_e_t = (-2.0 * e_pad).astype(mm_dtype).T                     # (D, Kp), -2 folded in

    # ---- VMEM-aware M tile selection ----
    try:
        vmem_cap = int(pltpu.get_tpu_info().vmem_capacity_bytes)
    except Exception:
        vmem_cap = 64 * 1024 * 1024                                  # v7x per-core floor
    vmem_limit = min(vmem_cap * 3 // 4, 128 * 1024 * 1024)
    vmem_budget = vmem_limit // 2                                    # headroom for compiler temps

    codebook_bytes = 4 * (2 * k_pad * d + k_pad)                     # single-buffered constants

    def est_vmem(tile_m):
        io = 2 * 2 * 4 * tile_m * d                                  # x in + q out, double buffered
        interm = 4 * 4 * tile_m * k_pad                              # dots/dist/iota/onehot (f32)
        return codebook_bytes + io + interm

    tm = max_tile_m
    while tm > 8 and est_vmem(tm) > vmem_budget:
        tm //= 2
    tm = min(tm, _round_up(m, 8))
    # Guarantee >= 2 grid steps (when there is enough work to split) so that
    # dimension_semantics=("parallel",) can use both v7x TensorCores.
    if m > 8 and _round_up(m, tm) // tm < 2:
        tm = min(tm, _round_up(-(-m // 2), 8))

    m_pad = _round_up(m, tm)
    if m_pad != m:
        hidden = jnp.pad(hidden, ((0, m_pad - m), (0, 0)))           # padded rows sliced off below

    flops = 2 * 2 * m_pad * k_pad * d + 4 * m_pad * k_pad            # two matmuls + elementwise
    bytes_accessed = 4 * (2 * m_pad * d + 2 * k_pad * d + k_pad)     # x in, q out, codebook

    def build_call(single_buffer_constants):
        def const_spec(shape):
            idx_map = lambda i: (0,) * len(shape)
            if single_buffer_constants:
                return pl.BlockSpec(shape, idx_map, pipeline_mode=pl.Buffered(1))
            return pl.BlockSpec(shape, idx_map)

        return pl.pallas_call(
            _vq_kernel,
            out_shape=jax.ShapeDtypeStruct((m_pad, d), x.dtype),
            grid=(m_pad // tm,),
            in_specs=[
                pl.BlockSpec((tm, d), lambda i: (i, 0)),             # hidden tile
                const_spec((d, k_pad)),                              # -2 * E^T (grid-invariant)
                const_spec((k_pad, d)),                              # E        (grid-invariant)
                const_spec((1, k_pad)),                              # ||E||^2 + sentinel
            ],
            out_specs=pl.BlockSpec((tm, d), lambda i: (i, 0)),
            compiler_params=pltpu.CompilerParams(
                dimension_semantics=("parallel",),
                vmem_limit_bytes=vmem_limit),
            cost_estimate=pl.CostEstimate(
                flops=flops, transcendentals=0, bytes_accessed=bytes_accessed),
        )

    try:
        # Grid-invariant codebook operands single-buffered (halves their VMEM).
        q_flat = build_call(True)(hidden, neg2_e_t, e_pad, e_sq)
    except Exception:
        # Fallback if this JAX build rejects pipeline_mode=Buffered(1).
        q_flat = build_call(False)(hidden, neg2_e_t, e_pad, e_sq)

    quantized = q_flat[:m].reshape(input_shape)

    # Loss computed in the wrapper (XLA fuses it into downstream consumers);
    # forward value of q_latent + c * e_latent (reduction='none') is (1+c)*(q-x)^2.
    diff = quantized - x
    loss = (1.0 + commitment_cost) * (diff * diff)

    # TODO(synk): straight-through / detach gradient semantics need a custom_vjp
    # wrapped around this forward kernel; only the forward pass is implemented
    # (forward value of `input + (quantized - input).detach()` is exactly q).
    return quantized, loss


def _reference(x, embedding_weight, commitment_cost):
    """Pure-JAX reference mirroring the PyTorch forward."""
    d = embedding_weight.shape[1]
    input_shape = x.shape
    hidden = x.reshape(-1, d)
    dist = (jnp.sum(hidden ** 2, axis=1, keepdims=True)
            + jnp.sum(embedding_weight ** 2, axis=1)
            - 2.0 * hidden @ embedding_weight.T)
    idx = jnp.argmin(dist, axis=1)
    q = embedding_weight[idx].reshape(input_shape)
    diff = q - x
    loss = diff * diff + commitment_cost * (diff * diff)
    return q, loss


if __name__ == "__main__":
    num_embeddings = 16
    embedding_dim = 8
    commitment_cost = 0.25

    key = jax.random.PRNGKey(0)
    k_w, k_x, k_x2 = jax.random.split(key, 3)

    # nn.Embedding weight ~ U(-1/K, 1/K), deterministic init
    embedding_weight = jax.random.uniform(
        k_w, (num_embeddings, embedding_dim), jnp.float32,
        minval=-1.0 / num_embeddings, maxval=1.0 / num_embeddings)

    # NHWC input with C == embedding_dim (flattened M = 1024 -> 2 grid steps)
    x = jax.random.normal(k_x, (4, 16, 16, embedding_dim), jnp.float32) * 0.1

    quantized, loss = vector_quantization(x, embedding_weight, commitment_cost)
    quantized, loss = jax.block_until_ready((quantized, loss))

    q_ref, l_ref = _reference(x, embedding_weight, commitment_cost)
    assert quantized.shape == x.shape and loss.shape == x.shape
    assert jnp.allclose(quantized, q_ref, atol=1e-6)
    assert jnp.allclose(loss, l_ref, atol=1e-6)

    # Ragged flattened length (M = 35) exercises the padding / tile-split path.
    x2 = jax.random.normal(k_x2, (1, 5, 7, embedding_dim), jnp.float32) * 0.1
    q2, l2 = vector_quantization(x2, embedding_weight, commitment_cost)
    q2, l2 = jax.block_until_ready((q2, l2))
    q2_ref, l2_ref = _reference(x2, embedding_weight, commitment_cost)
    assert jnp.allclose(q2, q2_ref, atol=1e-6)
    assert jnp.allclose(l2, l2_ref, atol=1e-6)

    print("KERNEL_OK")
</pallas_src>

<mosaic_0001>
module attributes {stable_mosaic.version = 11 : i64} {
  func.func @_vq_kernel(%arg0: i32, %arg1: memref<512x8xf32, #tpu.memory_space<vmem>>, %arg2: memref<8x128xf32, #tpu.memory_space<vmem>>, %arg3: memref<128x8xf32, #tpu.memory_space<vmem>>, %arg4: memref<1x128xf32, #tpu.memory_space<vmem>>, %arg5: memref<512x8xf32, #tpu.memory_space<vmem>>) attributes {dimension_semantics = [#tpu.dimension_semantics<parallel>], iteration_bounds = array<i64: 2>, scalar_prefetch = 0 : i64, scratch_operands = 0 : i64, tpu.core_type = #tpu.core_type<tc>, window_params = [{transform_indices = @transform_0, window_bounds = array<i64: 512, 8>}, {pipeline_mode = #tpu.pipeline_mode<synchronous>, transform_indices = @transform_1, window_bounds = array<i64: 8, 128>}, {pipeline_mode = #tpu.pipeline_mode<synchronous>, transform_indices = @transform_2, window_bounds = array<i64: 128, 8>}, {pipeline_mode = #tpu.pipeline_mode<synchronous>, transform_indices = @transform_3, window_bounds = array<i64: 1, 128>}, {transform_indices = @transform_4, window_bounds = array<i64: 512, 8>}]} {
    %c0 = arith.constant 0 : index
    %c0_0 = arith.constant 0 : index
    %0 = vector.load %arg1[%c0, %c0_0] : memref<512x8xf32, #tpu.memory_space<vmem>>, vector<512x8xf32>
    %c0_1 = arith.constant 0 : index
    %c0_2 = arith.constant 0 : index
    %1 = vector.load %arg2[%c0_1, %c0_2] : memref<8x128xf32, #tpu.memory_space<vmem>>, vector<8x128xf32>
    %cst = arith.constant dense<0.000000e+00> : vector<512x128xf32>
    %2 = tpu.matmul %0, %1, %cst {dimension_numbers = #tpu.dot_dimension_numbers<[1], [0], [0], [1], [0, 0, 1, 1], [], []>} : vector<512x8xf32>, vector<8x128xf32>, vector<512x128xf32> -> vector<512x128xf32>
    %c0_3 = arith.constant 0 : index
    %c0_4 = arith.constant 0 : index
    %3 = vector.load %arg4[%c0_3, %c0_4] : memref<1x128xf32, #tpu.memory_space<vmem>>, vector<1x128xf32>
    %4 = vector.broadcast %3 : vector<1x128xf32> to vector<512x128xf32>
    %5 = arith.addf %2, %4 : vector<512x128xf32>
    %6 = tpu.reduce_index %5 {axis = 1 : i32, kind = #tpu.reduction_kind<arg_min>} : vector<512x128xf32> -> vector<512xi32>
    %7 = vector.shape_cast %6 : vector<512xi32> to vector<512x1xi32>
    %8 = tpu.iota {dimensions = array<i32: 1>} : vector<512x128xi32>
    %9 = vector.broadcast %7 : vector<512x1xi32> to vector<512x128xi32>
    %10 = arith.cmpi eq, %8, %9 : vector<512x128xi32>
    %11 = arith.extui %10 : vector<512x128xi1> to vector<512x128xi32>
    %12 = arith.sitofp %11 : vector<512x128xi32> to vector<512x128xf32>
    %c0_5 = arith.constant 0 : index
    %c0_6 = arith.constant 0 : index
    %13 = vector.load %arg3[%c0_5, %c0_6] : memref<128x8xf32, #tpu.memory_space<vmem>>, vector<128x8xf32>
    %cst_7 = arith.constant dense<0.000000e+00> : vector<512x8xf32>
    %14 = tpu.matmul %12, %13, %cst_7 {dimension_numbers = #tpu.dot_dimension_numbers<[1], [0], [0], [1], [0, 0, 1, 1], [], []>} : vector<512x128xf32>, vector<128x8xf32>, vector<512x8xf32> -> vector<512x8xf32>
    %c0_8 = arith.constant 0 : index
    %c0_9 = arith.constant 0 : index
    %15 = vector.load %arg5[%c0_8, %c0_9] : memref<512x8xf32, #tpu.memory_space<vmem>>, vector<512x8xf32>
    tpu.vector_store %arg5[%c0_8, %c0_9], %14 {strides = array<i32>} : memref<512x8xf32, #tpu.memory_space<vmem>>, vector<512x8xf32>,
    return
  }
  func.func @transform_0(%arg0: i32) -> (i32, i32) {
    %c0_i32 = arith.constant 0 : i32
    %c0_i32_0 = arith.constant 0 : i32
    return %arg0, %c0_i32 : i32, i32
  }
  func.func @transform_1(%arg0: i32) -> (i32, i32) {
    %c0_i32 = arith.constant 0 : i32
    %c0_i32_0 = arith.constant 0 : i32
    %c0_i32_1 = arith.constant 0 : i32
    return %c0_i32, %c0_i32_0 : i32, i32
  }
  func.func @transform_2(%arg0: i32) -> (i32, i32) {
    %c0_i32 = arith.constant 0 : i32
    %c0_i32_0 = arith.constant 0 : i32
    %c0_i32_1 = arith.constant 0 : i32
    return %c0_i32, %c0_i32_0 : i32, i32
  }
  func.func @transform_3(%arg0: i32) -> (i32, i32) {
    %c0_i32 = arith.constant 0 : i32
    %c0_i32_0 = arith.constant 0 : i32
    %c0_i32_1 = arith.constant 0 : i32
    return %c0_i32, %c0_i32_0 : i32, i32
  }
  func.func @transform_4(%arg0: i32) -> (i32, i32) {
    %c0_i32 = arith.constant 0 : i32
    %c0_i32_0 = arith.constant 0 : i32
    return %arg0, %c0_i32 : i32, i32
  }
}

module attributes {stable_mosaic.version = 11 : i64} {
  func.func @_vq_kernel(%arg0: i32, %arg1: memref<512x8xf32, #tpu.memory_space<vmem>>, %arg2: memref<8x128xf32, #tpu.memory_space<vmem>>, %arg3: memref<128x8xf32, #tpu.memory_space<vmem>>, %arg4: memref<1x128xf32, #tpu.memory_space<vmem>>, %arg5: memref<512x8xf32, #tpu.memory_space<vmem>>) attributes {dimension_semantics = [#tpu.dimension_semantics<parallel>], iteration_bounds = array<i64: 2>, scalar_prefetch = 0 : i64, scratch_operands = 0 : i64, tpu.core_type = #tpu.core_type<tc>, window_params = [{transform_indices = @transform_0, window_bounds = array<i64: 512, 8>}, {pipeline_mode = #tpu.pipeline_mode<synchronous>, transform_indices = @transform_1, window_bounds = array<i64: 8, 128>}, {pipeline_mode = #tpu.pipeline_mode<synchronous>, transform_indices = @transform_2, window_bounds = array<i64: 128, 8>}, {pipeline_mode = #tpu.pipeline_mode<synchronous>, transform_indices = @transform_3, window_bounds = array<i64: 1, 128>}, {transform_indices = @transform_4, window_bounds = array<i64: 512, 8>}]} {
    %c0 = arith.constant 0 : index
    %c0_0 = arith.constant 0 : index
    %0 = vector.load %arg1[%c0, %c0_0] : memref<512x8xf32, #tpu.memory_space<vmem>>, vector<512x8xf32>
    %c0_1 = arith.constant 0 : index
    %c0_2 = arith.constant 0 : index
    %1 = vector.load %arg2[%c0_1, %c0_2] : memref<8x128xf32, #tpu.memory_space<vmem>>, vector<8x128xf32>
    %cst = arith.constant dense<0.000000e+00> : vector<512x128xf32>
    %2 = tpu.matmul %0, %1, %cst {dimension_numbers = #tpu.dot_dimension_numbers<[1], [0], [0], [1], [0, 0, 1, 1], [], []>} : vector<512x8xf32>, vector<8x128xf32>, vector<512x128xf32> -> vector<512x128xf32>
    %c0_3 = arith.constant 0 : index
    %c0_4 = arith.constant 0 : index
    %3 = vector.load %arg4[%c0_3, %c0_4] : memref<1x128xf32, #tpu.memory_space<vmem>>, vector<1x128xf32>
    %4 = vector.broadcast %3 : vector<1x128xf32> to vector<512x128xf32>
    %5 = arith.addf %2, %4 : vector<512x128xf32>
    %6 = tpu.reduce_index %5 {axis = 1 : i32, kind = #tpu.reduction_kind<arg_min>} : vector<512x128xf32> -> vector<512xi32>
    %7 = vector.shape_cast %6 : vector<512xi32> to vector<512x1xi32>
    %8 = tpu.iota {dimensions = array<i32: 1>} : vector<512x128xi32>
    %9 = vector.broadcast %7 : vector<512x1xi32> to vector<512x128xi32>
    %10 = arith.cmpi eq, %8, %9 : vector<512x128xi32>
    %11 = arith.extui %10 : vector<512x128xi1> to vector<512x128xi32>
    %12 = arith.sitofp %11 : vector<512x128xi32> to vector<512x128xf32>
    %c0_5 = arith.constant 0 : index
    %c0_6 = arith.constant 0 : index
    %13 = vector.load %arg3[%c0_5, %c0_6] : memref<128x8xf32, #tpu.memory_space<vmem>>, vector<128x8xf32>
    %cst_7 = arith.constant dense<0.000000e+00> : vector<512x8xf32>
    %14 = tpu.matmul %12, %13, %cst_7 {dimension_numbers = #tpu.dot_dimension_numbers<[1], [0], [0], [1], [0, 0, 1, 1], [], []>} : vector<512x128xf32>, vector<128x8xf32>, vector<512x8xf32> -> vector<512x8xf32>
    %c0_8 = arith.constant 0 : index
    %c0_9 = arith.constant 0 : index
    %15 = vector.load %arg5[%c0_8, %c0_9] : memref<512x8xf32, #tpu.memory_space<vmem>>, vector<512x8xf32>
    tpu.vector_store %arg5[%c0_8, %c0_9], %14 {strides = array<i32>} : memref<512x8xf32, #tpu.memory_space<vmem>>, vector<512x8xf32>,
    return
  }
  func.func @transform_0(%arg0: i32) -> (i32, i32) {
    %c0_i32 = arith.constant 0 : i32
    %c0_i32_0 = arith.constant 0 : i32
    return %arg0, %c0_i32 : i32, i32
  }
  func.func @transform_1(%arg0: i32) -> (i32, i32) {
    %c0_i32 = arith.constant 0 : i32
    %c0_i32_0 = arith.constant 0 : i32
    %c0_i32_1 = arith.constant 0 : i32
    return %c0_i32, %c0_i32_0 : i32, i32
  }
  func.func @transform_2(%arg0: i32) -> (i32, i32) {
    %c0_i32 = arith.constant 0 : i32
    %c0_i32_0 = arith.constant 0 : i32
    %c0_i32_1 = arith.constant 0 : i32
    return %c0_i32, %c0_i32_0 : i32, i32
  }
  func.func @transform_3(%arg0: i32) -> (i32, i32) {
    %c0_i32 = arith.constant 0 : i32
    %c0_i32_0 = arith.constant 0 : i32
    %c0_i32_1 = arith.constant 0 : i32
    return %c0_i32, %c0_i32_0 : i32, i32
  }
  func.func @transform_4(%arg0: i32) -> (i32, i32) {
    %c0_i32 = arith.constant 0 : i32
    %c0_i32_0 = arith.constant 0 : i32
    return %arg0, %c0_i32 : i32, i32
  }
}

</mosaic_0001>

<llo_original>
// kernel: tpu_custom_call.1
$region0: #{tpu_custom_call.1}
  #allocation0 [shape = 'u32[]', space=smem, size = 0x4, offset = 0x4, fixed_abs, tag = 'smem constant byte address 0x4 - core index']
  #allocation1 [shape = 'u32[144,128]{1,0:T(1,128)}', space=vmem, size = 0x12000, scoped, tag = 'internal scratch']
  %s0 = inlined_call_operand.vmem [shape: f32[1024,8], index: 0, kind: input, shape index: {}]
  %s1 = inlined_call_operand.vmem [shape: f32[8,128], index: 1, kind: input, shape index: {}]
  %s2 = inlined_call_operand.vmem [shape: f32[128,8], index: 2, kind: input, shape index: {}]
  %s3 = inlined_call_operand.vmem [shape: f32[1,128], index: 3, kind: input, shape index: {}]
  %s4 = inlined_call_operand.vmem [shape: f32[1024,8], index: 4, kind: output, shape index: {}]
  %s5 = sld [smem:[#allocation0]]
  $region49: #{tpu_custom_call.1} parent=0
    _
  %s7 = ssub.s32 1, %s5
  %s8 = scalar_select 0, %s7, %s5
  loop: start=0, step=1, limit=4
  $region2: #{tpu_custom_call.1} parent=0 // loop_pre_header
    _
  $region3: #{tpu_custom_call.1} parent=0 // loop_header
    %s10 = sphi 0, %s14
    %p11 = scmp.ge.s32.totalorder %s10, 4
    %s20 = sphi 0, %s22
    %s23 = sphi 0, %s20
    %s24 = sphi 0, %s23
    %s40 = sphi 0, %s24
    %s44 = sphi 0, %s44
    %s46 = sphi 0, %s44
    %s47 = sphi 0, %s46
    %s61 = sphi 0, %s47
    %s65 = sphi 0, %s65
    %s67 = sphi 0, %s65
    %s68 = sphi 0, %s67
    %s82 = sphi 0, %s68
    %s86 = sphi 0, %s86
    %s88 = sphi 0, %s86
    %s89 = sphi 0, %s88
    %s103 = sphi 0, %s89
    %s109 = sphi 0, %s111
    %s112 = sphi 0, %s109
    %s113 = sphi 0, %s112
    %s129 = sphi 0, %s113
  $region4: #{tpu_custom_call.1} parent=0 // loop_header_branch
    %13 = sbr.rel (%p11) target = $region8
  $region5: #{tpu_custom_call.1} parent=0 // loop_body
    %s15 = ssub.s32 %s10, 1
    %s16 = ssub.s32 %s10, 2
    %s17 = sadd.s32 %s10, 1
    %s18 = ssub.s32 %s10, %s17
    %p19 = scmp.eq.s32.totalorder %s18, 0
    %s21 = sadd.s32 %s20, 1
    %s22 = scalar_select %p19, %s20, %s21
    %p25 = pneg %p19
    %p26 = scmp.eq.s32.totalorder %s10, 1
    %p27 = por %p25, %p26
    %p28 = scmp.ne.s32.totalorder %s20, %s23
    %p29 = scmp.eq.s32.totalorder %s10, 0
    %p30 = por %p28, %p29
    %p31 = scmp.ne.s32.totalorder %s20, %s23
    %p32 = scmp.eq.s32.totalorder %s15, 1
    %p33 = por %p31, %p32
    %p34 = scmp.ne.s32.totalorder %s23, %s24
    %p35 = scmp.eq.s32.totalorder %s15, 0
    %p36 = por %p34, %p35
    %p37 = scmp.ne.s32.totalorder %s23, %s24
    %p38 = scmp.eq.s32.totalorder %s16, 1
    %p39 = por %p37, %p38
    %p41 = scmp.ne.s32.totalorder %s24, %s40
    %p42 = scmp.eq.s32.totalorder %s16, 0
    %p43 = por %p41, %p42
    %s45 = sadd.s32 %s44, 1
    %p48 = scmp.eq.s32.totalorder %s10, 1
    %p49 = scmp.ne.s32.totalorder %s44, %s46
    %p50 = scmp.eq.s32.totalorder %s10, 0
    %p51 = por %p49, %p50
    %p52 = scmp.ne.s32.totalorder %s44, %s46
    %p53 = scmp.eq.s32.totalorder %s15, 1
    %p54 = por %p52, %p53
    %p55 = scmp.ne.s32.totalorder %s46, %s47
    %p56 = scmp.eq.s32.totalorder %s15, 0
    %p57 = por %p55, %p56
    %p58 = scmp.ne.s32.totalorder %s46, %s47
    %p59 = scmp.eq.s32.totalorder %s16, 1
    %p60 = por %p58, %p59
    %p62 = scmp.ne.s32.totalorder %s47, %s61
    %p63 = scmp.eq.s32.totalorder %s16, 0
    %p64 = por %p62, %p63
    %s66 = sadd.s32 %s65, 1
    %p69 = scmp.eq.s32.totalorder %s10, 1
    %p70 = scmp.ne.s32.totalorder %s65, %s67
    %p71 = scmp.eq.s32.totalorder %s10, 0
    %p72 = por %p70, %p71
    %p73 = scmp.ne.s32.totalorder %s65, %s67
    %p74 = scmp.eq.s32.totalorder %s15, 1
    %p75 = por %p73, %p74
    %p76 = scmp.ne.s32.totalorder %s67, %s68
    %p77 = scmp.eq.s32.totalorder %s15, 0
    %p78 = por %p76, %p77
    %p79 = scmp.ne.s32.totalorder %s67, %s68
    %p80 = scmp.eq.s32.totalorder %s16, 1
    %p81 = por %p79, %p80
    %p83 = scmp.ne.s32.totalorder %s68, %s82
    %p84 = scmp.eq.s32.totalorder %s16, 0
    %p85 = por %p83, %p84
    %s87 = sadd.s32 %s86, 1
    %p90 = scmp.eq.s32.totalorder %s10, 1
    %p91 = scmp.ne.s32.totalorder %s86, %s88
    %p92 = scmp.eq.s32.totalorder %s10, 0
    %p93 = por %p91, %p92
    %p94 = scmp.ne.s32.totalorder %s86, %s88
    %p95 = scmp.eq.s32.totalorder %s15, 1
    %p96 = por %p94, %p95
    %p97 = scmp.ne.s32.totalorder %s88, %s89
    %p98 = scmp.eq.s32.totalorder %s15, 0
    %p99 = por %p97, %p98
    %p100 = scmp.ne.s32.totalorder %s88, %s89
    %p101 = scmp.eq.s32.totalorder %s16, 1
    %p102 = por %p100, %p101
    %p104 = scmp.ne.s32.totalorder %s89, %s103
    %p105 = scmp.eq.s32.totalorder %s16, 0
    %p106 = por %p104, %p105
    %s107 = ssub.s32 %s10, %s17
    %p108 = scmp.eq.s32.totalorder %s107, 0
    %s110 = sadd.s32 %s109, 1
    %s111 = scalar_select %p108, %s109, %s110
    %p114 = pneg %p108
    %p115 = scmp.eq.s32.totalorder %s10, 1
    %p116 = por %p114, %p115
    %p117 = scmp.ne.s32.totalorder %s109, %s112
    %p118 = scmp.eq.s32.totalorder %s10, 0
    %p119 = por %p117, %p118
    %p120 = scmp.ne.s32.totalorder %s109, %s112
    %p121 = scmp.eq.s32.totalorder %s15, 1
    %p122 = por %p120, %p121
    %p123 = scmp.ne.s32.totalorder %s112, %s113
    %p124 = scmp.eq.s32.totalorder %s15, 0
    %p125 = por %p123, %p124
    %p126 = scmp.ne.s32.totalorder %s112, %s113
    %p127 = scmp.eq.s32.totalorder %s16, 1
    %p128 = por %p126, %p127
    %p130 = scmp.ne.s32.totalorder %s113, %s129
    %p131 = scmp.eq.s32.totalorder %s16, 0
    %p132 = por %p130, %p131
    %p133 = scmp.le.s32.totalorder 1, %s10
    %p134 = scmp.lt.s32.totalorder %s10, 3
    %p135 = pnand %p133, %p134
    %p136 = pneg %p135
    // Predicated region
    $region9: #{tpu_custom_call.1} parent=5 // pred_check
      _
    $region10: #{tpu_custom_call.1} parent=5 // pred_check_branch
      %138 = sbr.rel (%p135) target = $region12
    $region11: #{tpu_custom_call.1} parent=5 // pred_region
      %s139 = ssub.s32 %s10, 1
      // Predicated region
      $region13: #{tpu_custom_call.1} parent=11 // pred_check
        %p140 = pneg %p57
      $region14: #{tpu_custom_call.1} parent=11 // pred_check_branch
        %142 = sbr.rel (%p140) target = $region16
      $region15: #{tpu_custom_call.1} parent=11 // pred_region
        _
      $region16: #{tpu_custom_call.1} parent=11 // pred_fallthru
        _
      // Predicated region
      $region17: #{tpu_custom_call.1} parent=11 // pred_check
        %p143 = pneg %p78
      $region18: #{tpu_custom_call.1} parent=11 // pred_check_branch
        %145 = sbr.rel (%p143) target = $region20
      $region19: #{tpu_custom_call.1} parent=11 // pred_region
        _
      $region20: #{tpu_custom_call.1} parent=11 // pred_fallthru
        _
      // Predicated region
      $region21: #{tpu_custom_call.1} parent=11 // pred_check
        %p146 = pneg %p99
      $region22: #{tpu_custom_call.1} parent=11 // pred_check_branch
        %148 = sbr.rel (%p146) target = $region24
      $region23: #{tpu_custom_call.1} parent=11 // pred_region
        _
      $region24: #{tpu_custom_call.1} parent=11 // pred_fallthru
        _
    $region12: #{tpu_custom_call.1} parent=5 // pred_fallthru
      _
    %p149 = scmp.lt.s32.totalorder %s10, 2
    // Predicated region
    $region25: #{tpu_custom_call.1} parent=5 // pred_check
      %p150 = pneg %p149
    $region26: #{tpu_custom_call.1} parent=5 // pred_check_branch
      %152 = sbr.rel (%p150) target = $region28
    $region27: #{tpu_custom_call.1} parent=5 // pred_region
      // Predicated region
      $region29: #{tpu_custom_call.1} parent=27 // pred_check
        %p153 = pneg %p30
      $region30: #{tpu_custom_call.1} parent=27 // pred_check_branch
        %155 = sbr.rel (%p153) target = $region32
      $region31: #{tpu_custom_call.1} parent=27 // pred_region
        %s156 = smul.u32 64, %s10
        %p157 = scmp.lt.s32.totalorder %s156, 127
        %s158 = scalar_select %p157, %s156, 127
        %s159 = smul.addr %s158, 8
        %s160 = scalar_lea.vmem %s0, %s159
        %s161 = smul.u32 64, %s10
      $region32: #{tpu_custom_call.1} parent=27 // pred_fallthru
        _
    $region28: #{tpu_custom_call.1} parent=5 // pred_fallthru
      _
    %p162 = scmp.le.s32.totalorder 1, %s10
    %p163 = scmp.lt.s32.totalorder %s10, 3
    %p164 = pnand %p162, %p163
    %p165 = pneg %p164
    // Predicated region
    $region33: #{tpu_custom_call.1} parent=5 // pred_check
      _
    $region34: #{tpu_custom_call.1} parent=5 // pred_check_branch
      %167 = sbr.rel (%p164) target = $region36
    $region35: #{tpu_custom_call.1} parent=5 // pred_region
      %s168 = ssub.s32 %s10, 1
      %s169 = smul.u32 64, %s15
      %p170 = scmp.lt.s32.totalorder %s169, 127
      %s171 = scalar_select %p170, %s169, 127
      %s172 = smul.addr %s171, 8
      %s173 = scalar_lea.vmem %s0, %s172
      %p174 = pneg %p36
      %p175 = pneg %p33
      %p176 = pneg %p57
      %p177 = pneg %p54
      %p178 = pneg %p78
      %p179 = pneg %p75
      %p180 = pneg %p99
      %p181 = pneg %p96
      %p182 = pneg %p125
      %p183 = pneg %p122
      %s184 = smul.u32 64, %s15
      %p185 = scmp.lt.s32.totalorder %s184, 127
      %s186 = scalar_select %p185, %s184, 127
      %s187 = smul.addr %s186, 8
      %s188 = scalar_lea.vmem %s4, %s187
      %s189 = smul.u32 64, %s15
      %p190 = scmp.lt.s32.totalorder %s189, 127
      %s191 = scalar_select %p190, %s189, 127
      %s192 = smul.addr %s191, 8
      %s193 = scalar_lea.vmem %s0, %s192
      %s194 = smul.u32 64, %s15
      %s195 = smul.u32 64, %s15
      %p196 = scmp.lt.s32.totalorder %s195, 127
      %s197 = scalar_select %p196, %s195, 127
      %s198 = smul.addr %s197, 8
      %s199 = scalar_lea.vmem %s4, %s198
      %s200 = smul.u32 64, %s15
      %v201 = vld [vmem:[%s193] sm:$0xff]
      %v202 = vld [vmem:[%s193 + $0x8] sm:$0xff]
      %v203 = vld [vmem:[%s193 + $0x10] sm:$0xff]
      %v204 = vld [vmem:[%s193 + $0x18] sm:$0xff]
      %v205 = vld [vmem:[%s193 + $0x20] sm:$0xff]
      %v206 = vld [vmem:[%s193 + $0x28] sm:$0xff]
      %v207 = vld [vmem:[%s193 + $0x30] sm:$0xff]
      %v208 = vld [vmem:[%s193 + $0x38] sm:$0xff]
      %v209 = vld [vmem:[%s193 + $0x40] sm:$0xff]
      %v210 = vld [vmem:[%s193 + $0x48] sm:$0xff]
      %v211 = vld [vmem:[%s193 + $0x50] sm:$0xff]
      %v212 = vld [vmem:[%s193 + $0x58] sm:$0xff]
      %v213 = vld [vmem:[%s193 + $0x60] sm:$0xff]
      %v214 = vld [vmem:[%s193 + $0x68] sm:$0xff]
      %v215 = vld [vmem:[%s193 + $0x70] sm:$0xff]
      %v216 = vld [vmem:[%s193 + $0x78] sm:$0xff]
      %v217 = vld [vmem:[%s193 + $0x80] sm:$0xff]
      %v218 = vld [vmem:[%s193 + $0x88] sm:$0xff]
      %v219 = vld [vmem:[%s193 + $0x90] sm:$0xff]
      %v220 = vld [vmem:[%s193 + $0x98] sm:$0xff]
      %v221 = vld [vmem:[%s193 + $0xa0] sm:$0xff]
      %v222 = vld [vmem:[%s193 + $0xa8] sm:$0xff]
      %v223 = vld [vmem:[%s193 + $0xb0] sm:$0xff]
      %v224 = vld [vmem:[%s193 + $0xb8] sm:$0xff]
      %v225 = vld [vmem:[%s193 + $0xc0] sm:$0xff]
      %v226 = vld [vmem:[%s193 + $0xc8] sm:$0xff]
      %v227 = vld [vmem:[%s193 + $0xd0] sm:$0xff]
      %v228 = vld [vmem:[%s193 + $0xd8] sm:$0xff]
      %v229 = vld [vmem:[%s193 + $0xe0] sm:$0xff]
      %v230 = vld [vmem:[%s193 + $0xe8] sm:$0xff]
      %v231 = vld [vmem:[%s193 + $0xf0] sm:$0xff]
      %v232 = vld [vmem:[%s193 + $0xf8] sm:$0xff]
      %v233 = vld [vmem:[%s193 + $0x100] sm:$0xff]
      %v234 = vld [vmem:[%s193 + $0x108] sm:$0xff]
      %v235 = vld [vmem:[%s193 + $0x110] sm:$0xff]
      %v236 = vld [vmem:[%s193 + $0x118] sm:$0xff]
      %v237 = vld [vmem:[%s193 + $0x120] sm:$0xff]
      %v238 = vld [vmem:[%s193 + $0x128] sm:$0xff]
      %v239 = vld [vmem:[%s193 + $0x130] sm:$0xff]
      %v240 = vld [vmem:[%s193 + $0x138] sm:$0xff]
      %v241 = vld [vmem:[%s193 + $0x140] sm:$0xff]
      %v242 = vld [vmem:[%s193 + $0x148] sm:$0xff]
      %v243 = vld [vmem:[%s193 + $0x150] sm:$0xff]
      %v244 = vld [vmem:[%s193 + $0x158] sm:$0xff]
      %v245 = vld [vmem:[%s193 + $0x160] sm:$0xff]
      %v246 = vld [vmem:[%s193 + $0x168] sm:$0xff]
      %v247 = vld [vmem:[%s193 + $0x170] sm:$0xff]
      %v248 = vld [vmem:[%s193 + $0x178] sm:$0xff]
      %v249 = vld [vmem:[%s193 + $0x180] sm:$0xff]
      %v250 = vld [vmem:[%s193 + $0x188] sm:$0xff]
      %v251 = vld [vmem:[%s193 + $0x190] sm:$0xff]
      %v252 = vld [vmem:[%s193 + $0x198] sm:$0xff]
      %v253 = vld [vmem:[%s193 + $0x1a0] sm:$0xff]
      %v254 = vld [vmem:[%s193 + $0x1a8] sm:$0xff]
      %v255 = vld [vmem:[%s193 + $0x1b0] sm:$0xff]
      %v256 = vld [vmem:[%s193 + $0x1b8] sm:$0xff]
      %v257 = vld [vmem:[%s193 + $0x1c0] sm:$0xff]
      %v258 = vld [vmem:[%s193 + $0x1c8] sm:$0xff]
      %v259 = vld [vmem:[%s193 + $0x1d0] sm:$0xff]
      %v260 = vld [vmem:[%s193 + $0x1d8] sm:$0xff]
      %v261 = vld [vmem:[%s193 + $0x1e0] sm:$0xff]
      %v262 = vld [vmem:[%s193 + $0x1e8] sm:$0xff]
      %v263 = vld [vmem:[%s193 + $0x1f0] sm:$0xff]
      %v264 = vld [vmem:[%s193 + $0x1f8] sm:$0xff]
      %v265 = vld [vmem:[%s1] sm:$0xff]
      %v266 = vld [vmem:[%s3] sm:$0x1]
      %v268 = vlaneseq
      %v269 = vshrl.u32 %v268, 7
      %v270 = vsub.s32 0, %v269
      %v271 = vrot.slane %v266, %v270
      %vm273 = vcmask 64512
      %v275 = vsel %vm273, %v201, 0
      %v278 = vsel %vm273, %v202, 0
      %v281 = vsel %vm273, %v203, 0
      %v284 = vsel %vm273, %v204, 0
      %v287 = vsel %vm273, %v205, 0
      %v290 = vsel %vm273, %v206, 0
      %v293 = vsel %vm273, %v207, 0
      %v296 = vsel %vm273, %v208, 0
      %v299 = vsel %vm273, %v209, 0
      %v302 = vsel %vm273, %v210, 0
      %v305 = vsel %vm273, %v211, 0
      %v308 = vsel %vm273, %v212, 0
      %v311 = vsel %vm273, %v213, 0
      %v314 = vsel %vm273, %v214, 0
      %v317 = vsel %vm273, %v215, 0
      %v320 = vsel %vm273, %v216, 0
      %v323 = vsel %vm273, %v217, 0
      %v326 = vsel %vm273, %v218, 0
      %v329 = vsel %vm273, %v219, 0
      %v332 = vsel %vm273, %v220, 0
      %v335 = vsel %vm273, %v221, 0
      %v338 = vsel %vm273, %v222, 0
      %v341 = vsel %vm273, %v223, 0
      %v344 = vsel %vm273, %v224, 0
      %v347 = vsel %vm273, %v225, 0
      %v350 = vsel %vm273, %v226, 0
      %v353 = vsel %vm273, %v227, 0
      %v356 = vsel %vm273, %v228, 0
      %v359 = vsel %vm273, %v229, 0
      %v362 = vsel %vm273, %v230, 0
      %v365 = vsel %vm273, %v231, 0
      %v368 = vsel %vm273, %v232, 0
      %v371 = vsel %vm273, %v233, 0
      %v374 = vsel %vm273, %v234, 0
      %v377 = vsel %vm273, %v235, 0
      %v380 = vsel %vm273, %v236, 0
      %v383 = vsel %vm273, %v237, 0
      %v386 = vsel %vm273, %v238, 0
      %v389 = vsel %vm273, %v239, 0
      %v392 = vsel %vm273, %v240, 0
      %v395 = vsel %vm273, %v241, 0
      %v398 = vsel %vm273, %v242, 0
      %v401 = vsel %vm273, %v243, 0
      %v404 = vsel %vm273, %v244, 0
      %v407 = vsel %vm273, %v245, 0
      %v410 = vsel %vm273, %v246, 0
      %v413 = vsel %vm273, %v247, 0
      %v416 = vsel %vm273, %v248, 0
      %v419 = vsel %vm273, %v249, 0
      %v422 = vsel %vm273, %v250, 0
      %v425 = vsel %vm273, %v251, 0
      %v428 = vsel %vm273, %v252, 0
      %v431 = vsel %vm273, %v253, 0
      %v434 = vsel %vm273, %v254, 0
      %v437 = vsel %vm273, %v255, 0
      %v440 = vsel %vm273, %v256, 0
      %v443 = vsel %vm273, %v257, 0
      %v446 = vsel %vm273, %v258, 0
      %v449 = vsel %vm273, %v259, 0
      %v452 = vsel %vm273, %v260, 0
      %v455 = vsel %vm273, %v261, 0
      %v458 = vsel %vm273, %v262, 0
      %v461 = vsel %vm273, %v263, 0
      %v464 = vsel %vm273, %v264, 0
      %466 = vmatprep.subr.mxu0 0.0
      %467 = vmatpush1.msra.mxu0 %v265
      %468 = vmatprep.subr.mxu0 0.0
      %469 = vmatpush1.msra.mxu0 0.0
      %470 = vmatprep.subr.mxu0 0.0
      %471 = vmatpush1.msra.mxu0 0.0
      %472 = vmatprep.subr.mxu0 0.0
      %473 = vmatpush1.msra.mxu0 0.0
      %474 = vmatprep.subr.mxu0 0.0
      %475 = vmatpush1.msra.mxu0 0.0
      %476 = vmatprep.subr.mxu0 0.0
      %477 = vmatpush1.msra.mxu0 0.0
      %478 = vmatprep.subr.mxu0 0.0
      %479 = vmatpush1.msra.mxu0 0.0
      %480 = vmatprep.subr.mxu0 0.0
      %481 = vmatpush1.msra.mxu0 0.0
      %482 = vmatprep.subr.mxu0 0.0
      %483 = vmatpush1.msra.mxu0 0.0
      %484 = vmatprep.subr.mxu0 0.0
      %485 = vmatpush1.msra.mxu0 0.0
      %486 = vmatprep.subr.mxu0 0.0
      %487 = vmatpush1.msra.mxu0 0.0
      %488 = vmatprep.subr.mxu0 0.0
      %489 = vmatpush1.msra.mxu0 0.0
      %490 = vmatprep.subr.mxu0 0.0
      %491 = vmatpush1.msra.mxu0 0.0
      %492 = vmatprep.subr.mxu0 0.0
      %493 = vmatpush1.msra.mxu0 0.0
      %494 = vmatprep.subr.mxu0 0.0
      %495 = vmatpush1.msra.mxu0 0.0
      %496 = vmatprep.subr.mxu0 0.0
      %497 = vmatpush1.msra.mxu0 0.0
      %498 = vmatprep.subr.mxu0 0.0
      %499 = vmatpush1.msra.mxu0 0.0
      %500 = vmatprep.subr.mxu0 0.0
      %501 = vmatpush1.msra.mxu0 0.0
      %502 = vmatprep.subr.mxu0 0.0
      %503 = vmatpush1.msra.mxu0 0.0
      %504 = vmatprep.subr.mxu0 0.0
      %505 = vmatpush1.msra.mxu0 0.0
      %506 = vmatprep.subr.mxu0 0.0
      %507 = vmatpush1.msra.mxu0 0.0
      %508 = vmatprep.subr.mxu0 0.0
      %509 = vmatpush1.msra.mxu0 0.0
      %510 = vmatprep.subr.mxu0 0.0
      %511 = vmatpush1.msra.mxu0 0.0
      %512 = vmatprep.subr.mxu0 0.0
      %513 = vmatpush1.msra.mxu0 0.0
      %514 = vmatprep.subr.mxu0 0.0
      %515 = vmatpush1.msra.mxu0 0.0
      %516 = vmatprep.subr.mxu0 0.0
      %517 = vmatpush1.msra.mxu0 0.0
      %518 = vmatprep.subr.mxu0 0.0
      %519 = vmatpush1.msra.mxu0 0.0
      %520 = vmatprep.subr.mxu0 0.0
      %521 = vmatpush1.msra.mxu0 0.0
      %522 = vmatprep.subr.mxu0 0.0
      %523 = vmatpush1.msra.mxu0 0.0
      %524 = vmatprep.subr.mxu0 0.0
      %525 = vmatpush1.msra.mxu0 0.0
      %526 = vmatprep.subr.mxu0 0.0
      %527 = vmatpush1.msra.mxu0 0.0
      %528 = vmatprep.subr.mxu0 0.0
      %529 = vmatpush1.msra.mxu0 0.0
      %530 = vmatprep.mubr.f32.mxu0 0.0
      %531 = vmatmul.mubr.f32.gmra.mrb[0].mxu0 %v275
      %v532 = vpop.f32.mrb[0].mxu0
      %v533 = vadd.f32 %v271, %v532
      %v534 = vpop.f32.mrb[0].mxu0
      %535 = vmatprep.mubr.f32.mxu0 0.0
      %536 = vmatmul.mubr.f32.gmra.mrb[0].mxu0 %v278
      %v537 = vpop.f32.mrb[0].mxu0
      %v538 = vadd.f32 %v271, %v537
      %v539 = vpop.f32.mrb[0].mxu0
      %540 = vmatprep.mubr.f32.mxu0 0.0
      %541 = vmatmul.mubr.f32.gmra.mrb[0].mxu0 %v281
      %v542 = vpop.f32.mrb[0].mxu0
      %v543 = vadd.f32 %v271, %v542
      %v544 = vpop.f32.mrb[0].mxu0
      %545 = vmatprep.mubr.f32.mxu0 0.0
      %546 = vmatmul.mubr.f32.gmra.mrb[0].mxu0 %v284
      %v547 = vpop.f32.mrb[0].mxu0
      %v548 = vadd.f32 %v271, %v547
      %v549 = vpop.f32.mrb[0].mxu0
      %550 = vmatprep.mubr.f32.mxu0 0.0
      %551 = vmatmul.mubr.f32.gmra.mrb[0].mxu0 %v287
      %v552 = vpop.f32.mrb[0].mxu0
      %v553 = vadd.f32 %v271, %v552
      %v554 = vpop.f32.mrb[0].mxu0
      %555 = vmatprep.mubr.f32.mxu0 0.0
      %556 = vmatmul.mubr.f32.gmra.mrb[0].mxu0 %v290
      %v557 = vpop.f32.mrb[0].mxu0
      %v558 = vadd.f32 %v271, %v557
      %v559 = vpop.f32.mrb[0].mxu0
      %560 = vmatprep.mubr.f32.mxu0 0.0
      %561 = vmatmul.mubr.f32.gmra.mrb[0].mxu0 %v293
      %v562 = vpop.f32.mrb[0].mxu0
      %v563 = vadd.f32 %v271, %v562
      %v564 = vpop.f32.mrb[0].mxu0
      %565 = vmatprep.mubr.f32.mxu0 0.0
      %566 = vmatmul.mubr.f32.gmra.mrb[0].mxu0 %v296
      %v567 = vpop.f32.mrb[0].mxu0
      %v568 = vadd.f32 %v271, %v567
      %v569 = vpop.f32.mrb[0].mxu0
      %570 = vmatprep.mubr.f32.mxu0 0.0
      %571 = vmatmul.mubr.f32.gmra.mrb[0].mxu0 %v299
      %v572 = vpop.f32.mrb[0].mxu0
      %v573 = vadd.f32 %v271, %v572
      %v574 = vpop.f32.mrb[0].mxu0
      %575 = vmatprep.mubr.f32.mxu0 0.0
      %576 = vmatmul.mubr.f32.gmra.mrb[0].mxu0 %v302
      %v577 = vpop.f32.mrb[0].mxu0
      %v578 = vadd.f32 %v271, %v577
      %v579 = vpop.f32.mrb[0].mxu0
      %580 = vmatprep.mubr.f32.mxu0 0.0
      %581 = vmatmul.mubr.f32.gmra.mrb[0].mxu0 %v305
      %v582 = vpop.f32.mrb[0].mxu0
      %v583 = vadd.f32 %v271, %v582
      %v584 = vpop.f32.mrb[0].mxu0
      %585 = vmatprep.mubr.f32.mxu0 0.0
      %586 = vmatmul.mubr.f32.gmra.mrb[0].mxu0 %v308
      %v587 = vpop.f32.mrb[0].mxu0
      %v588 = vadd.f32 %v271, %v587
      %v589 = vpop.f32.mrb[0].mxu0
      %590 = vmatprep.mubr.f32.mxu0 0.0
      %591 = vmatmul.mubr.f32.gmra.mrb[0].mxu0 %v311
      %v592 = vpop.f32.mrb[0].mxu0
      %v593 = vadd.f32 %v271, %v592
      %v594 = vpop.f32.mrb[0].mxu0
      %595 = vmatprep.mubr.f32.mxu0 0.0
      %596 = vmatmul.mubr.f32.gmra.mrb[0].mxu0 %v314
      %v597 = vpop.f32.mrb[0].mxu0
      %v598 = vadd.f32 %v271, %v597
      %v599 = vpop.f32.mrb[0].mxu0
      %600 = vmatprep.mubr.f32.mxu0 0.0
      %601 = vmatmul.mubr.f32.gmra.mrb[0].mxu0 %v317
      %v602 = vpop.f32.mrb[0].mxu0
      %v603 = vadd.f32 %v271, %v602
      %v604 = vpop.f32.mrb[0].mxu0
      %605 = vmatprep.mubr.f32.mxu0 0.0
      %606 = vmatmul.mubr.f32.gmra.mrb[0].mxu0 %v320
      %v607 = vpop.f32.mrb[0].mxu0
      %v608 = vadd.f32 %v271, %v607
      %v609 = vpop.f32.mrb[0].mxu0
      %610 = vmatprep.mubr.f32.mxu0 0.0
      %611 = vmatmul.mubr.f32.gmra.mrb[0].mxu0 %v323
      %v612 = vpop.f32.mrb[0].mxu0
      %v613 = vadd.f32 %v271, %v612
      %v614 = vpop.f32.mrb[0].mxu0
      %615 = vmatprep.mubr.f32.mxu0 0.0
      %616 = vmatmul.mubr.f32.gmra.mrb[0].mxu0 %v326
      %v617 = vpop.f32.mrb[0].mxu0
      %v618 = vadd.f32 %v271, %v617
      %v619 = vpop.f32.mrb[0].mxu0
      %620 = vmatprep.mubr.f32.mxu0 0.0
      %621 = vmatmul.mubr.f32.gmra.mrb[0].mxu0 %v329
      %v622 = vpop.f32.mrb[0].mxu0
      %v623 = vadd.f32 %v271, %v622
      %v624 = vpop.f32.mrb[0].mxu0
      %625 = vmatprep.mubr.f32.mxu0 0.0
      %626 = vmatmul.mubr.f32.gmra.mrb[0].mxu0 %v332
      %v627 = vpop.f32.mrb[0].mxu0
      %v628 = vadd.f32 %v271, %v627
      %v629 = vpop.f32.mrb[0].mxu0
      %630 = vmatprep.mubr.f32.mxu0 0.0
      %631 = vmatmul.mubr.f32.gmra.mrb[0].mxu0 %v335
      %v632 = vpop.f32.mrb[0].mxu0
      %v633 = vadd.f32 %v271, %v632
      %v634 = vpop.f32.mrb[0].mxu0
      %635 = vmatprep.mubr.f32.mxu0 0.0
      %636 = vmatmul.mubr.f32.gmra.mrb[0].mxu0 %v338
      %v637 = vpop.f32.mrb[0].mxu0
      %v638 = vadd.f32 %v271, %v637
      %v639 = vpop.f32.mrb[0].mxu0
      %640 = vmatprep.mubr.f32.mxu0 0.0
      %641 = vmatmul.mubr.f32.gmra.mrb[0].mxu0 %v341
      %v642 = vpop.f32.mrb[0].mxu0
      %v643 = vadd.f32 %v271, %v642
      %v644 = vpop.f32.mrb[0].mxu0
      %645 = vmatprep.mubr.f32.mxu0 0.0
      %646 = vmatmul.mubr.f32.gmra.mrb[0].mxu0 %v344
      %v647 = vpop.f32.mrb[0].mxu0
      %v648 = vadd.f32 %v271, %v647
      %v649 = vpop.f32.mrb[0].mxu0
      %650 = vmatprep.mubr.f32.mxu0 0.0
      %651 = vmatmul.mubr.f32.gmra.mrb[0].mxu0 %v347
      %v652 = vpop.f32.mrb[0].mxu0
      %v653 = vadd.f32 %v271, %v652
      %v654 = vpop.f32.mrb[0].mxu0
      %655 = vmatprep.mubr.f32.mxu0 0.0
      %656 = vmatmul.mubr.f32.gmra.mrb[0].mxu0 %v350
      %v657 = vpop.f32.mrb[0].mxu0
      %v658 = vadd.f32 %v271, %v657
      %v659 = vpop.f32.mrb[0].mxu0
      %660 = vmatprep.mubr.f32.mxu0 0.0
      %661 = vmatmul.mubr.f32.gmra.mrb[0].mxu0 %v353
      %v662 = vpop.f32.mrb[0].mxu0
      %v663 = vadd.f32 %v271, %v662
      %v664 = vpop.f32.mrb[0].mxu0
      %665 = vmatprep.mubr.f32.mxu0 0.0
      %666 = vmatmul.mubr.f32.gmra.mrb[0].mxu0 %v356
      %v667 = vpop.f32.mrb[0].mxu0
      %v668 = vadd.f32 %v271, %v667
      %v669 = vpop.f32.mrb[0].mxu0
      %670 = vmatprep.mubr.f32.mxu0 0.0
      %671 = vmatmul.mubr.f32.gmra.mrb[0].mxu0 %v359
      %v672 = vpop.f32.mrb[0].mxu0
      %v673 = vadd.f32 %v271, %v672
      %v674 = vpop.f32.mrb[0].mxu0
      %675 = vmatprep.mubr.f32.mxu0 0.0
      %676 = vmatmul.mubr.f32.gmra.mrb[0].mxu0 %v362
      %v677 = vpop.f32.mrb[0].mxu0
      %v678 = vadd.f32 %v271, %v677
      %v679 = vpop.f32.mrb[0].mxu0
      %680 = vmatprep.mubr.f32.mxu0 0.0
      %681 = vmatmul.mubr.f32.gmra.mrb[0].mxu0 %v365
      %v682 = vpop.f32.mrb[0].mxu0
      %v683 = vadd.f32 %v271, %v682
      %v684 = vpop.f32.mrb[0].mxu0
      %685 = vmatprep.mubr.f32.mxu0 0.0
      %686 = vmatmul.mubr.f32.gmra.mrb[0].mxu0 %v368
      %v687 = vpop.f32.mrb[0].mxu0
      %v688 = vadd.f32 %v271, %v687
      %v689 = vpop.f32.mrb[0].mxu0
      %690 = vmatprep.mubr.f32.mxu0 0.0
      %691 = vmatmul.mubr.f32.gmra.mrb[0].mxu0 %v371
      %v692 = vpop.f32.mrb[0].mxu0
      %v693 = vadd.f32 %v271, %v692
      %v694 = vpop.f32.mrb[0].mxu0
      %695 = vmatprep.mubr.f32.mxu0 0.0
      %696 = vmatmul.mubr.f32.gmra.mrb[0].mxu0 %v374
      %v697 = vpop.f32.mrb[0].mxu0
      %v698 = vadd.f32 %v271, %v697
      %v699 = vpop.f32.mrb[0].mxu0
      %700 = vmatprep.mubr.f32.mxu0 0.0
      %701 = vmatmul.mubr.f32.gmra.mrb[0].mxu0 %v377
      %v702 = vpop.f32.mrb[0].mxu0
      %v703 = vadd.f32 %v271, %v702
      %v704 = vpop.f32.mrb[0].mxu0
      %705 = vmatprep.mubr.f32.mxu0 0.0
      %706 = vmatmul.mubr.f32.gmra.mrb[0].mxu0 %v380
      %v707 = vpop.f32.mrb[0].mxu0
      %v708 = vadd.f32 %v271, %v707
      %v709 = vpop.f32.mrb[0].mxu0
      %710 = vmatprep.mubr.f32.mxu0 0.0
      %711 = vmatmul.mubr.f32.gmra.mrb[0].mxu0 %v383
      %v712 = vpop.f32.mrb[0].mxu0
      %v713 = vadd.f32 %v271, %v712
      %v714 = vpop.f32.mrb[0].mxu0
      %715 = vmatprep.mubr.f32.mxu0 0.0
      %716 = vmatmul.mubr.f32.gmra.mrb[0].mxu0 %v386
      %v717 = vpop.f32.mrb[0].mxu0
      %v718 = vadd.f32 %v271, %v717
      %v719 = vpop.f32.mrb[0].mxu0
      %720 = vmatprep.mubr.f32.mxu0 0.0
      %721 = vmatmul.mubr.f32.gmra.mrb[0].mxu0 %v389
      %v722 = vpop.f32.mrb[0].mxu0
      %v723 = vadd.f32 %v271, %v722
      %v724 = vpop.f32.mrb[0].mxu0
      %725 = vmatprep.mubr.f32.mxu0 0.0
      %726 = vmatmul.mubr.f32.gmra.mrb[0].mxu0 %v392
      %v727 = vpop.f32.mrb[0].mxu0
      %v728 = vadd.f32 %v271, %v727
      %v729 = vpop.f32.mrb[0].mxu0
      %730 = vmatprep.mubr.f32.mxu0 0.0
      %731 = vmatmul.mubr.f32.gmra.mrb[0].mxu0 %v395
      %v732 = vpop.f32.mrb[0].mxu0
      %v733 = vadd.f32 %v271, %v732
      %v734 = vpop.f32.mrb[0].mxu0
      %735 = vmatprep.mubr.f32.mxu0 0.0
      %736 = vmatmul.mubr.f32.gmra.mrb[0].mxu0 %v398
      %v737 = vpop.f32.mrb[0].mxu0
      %v738 = vadd.f32 %v271, %v737
      %v739 = vpop.f32.mrb[0].mxu0
      %740 = vmatprep.mubr.f32.mxu0 0.0
      %741 = vmatmul.mubr.f32.gmra.mrb[0].mxu0 %v401
      %v742 = vpop.f32.mrb[0].mxu0
      %v743 = vadd.f32 %v271, %v742
      %v744 = vpop.f32.mrb[0].mxu0
      %745 = vmatprep.mubr.f32.mxu0 0.0
      %746 = vmatmul.mubr.f32.gmra.mrb[0].mxu0 %v404
      %v747 = vpop.f32.mrb[0].mxu0
      %v748 = vadd.f32 %v271, %v747
      %v749 = vpop.f32.mrb[0].mxu0
      %750 = vmatprep.mubr.f32.mxu0 0.0
      %751 = vmatmul.mubr.f32.gmra.mrb[0].mxu0 %v407
      %v752 = vpop.f32.mrb[0].mxu0
      %v753 = vadd.f32 %v271, %v752
      %v754 = vpop.f32.mrb[0].mxu0
      %755 = vmatprep.mubr.f32.mxu0 0.0
      %756 = vmatmul.mubr.f32.gmra.mrb[0].mxu0 %v410
      %v757 = vpop.f32.mrb[0].mxu0
      %v758 = vadd.f32 %v271, %v757
      %v759 = vpop.f32.mrb[0].mxu0
      %760 = vmatprep.mubr.f32.mxu0 0.0
      %761 = vmatmul.mubr.f32.gmra.mrb[0].mxu0 %v413
      %v762 = vpop.f32.mrb[0].mxu0
      %v763 = vadd.f32 %v271, %v762
      %v764 = vpop.f32.mrb[0].mxu0
      %765 = vmatprep.mubr.f32.mxu0 0.0
      %766 = vmatmul.mubr.f32.gmra.mrb[0].mxu0 %v416
      %v767 = vpop.f32.mrb[0].mxu0
      %v768 = vadd.f32 %v271, %v767
      %v769 = vpop.f32.mrb[0].mxu0
      %770 = vmatprep.mubr.f32.mxu0 0.0
      %771 = vmatmul.mubr.f32.gmra.mrb[0].mxu0 %v419
      %v772 = vpop.f32.mrb[0].mxu0
      %v773 = vadd.f32 %v271, %v772
      %v774 = vpop.f32.mrb[0].mxu0
      %775 = vmatprep.mubr.f32.mxu0 0.0
      %776 = vmatmul.mubr.f32.gmra.mrb[0].mxu0 %v422
      %v777 = vpop.f32.mrb[0].mxu0
      %v778 = vadd.f32 %v271, %v777
      %v779 = vpop.f32.mrb[0].mxu0
      %780 = vmatprep.mubr.f32.mxu0 0.0
      %781 = vmatmul.mubr.f32.gmra.mrb[0].mxu0 %v425
      %v782 = vpop.f32.mrb[0].mxu0
      %v783 = vadd.f32 %v271, %v782
      %v784 = vpop.f32.mrb[0].mxu0
      %785 = vmatprep.mubr.f32.mxu0 0.0
      %786 = vmatmul.mubr.f32.gmra.mrb[0].mxu0 %v428
      %v787 = vpop.f32.mrb[0].mxu0
      %v788 = vadd.f32 %v271, %v787
      %v789 = vpop.f32.mrb[0].mxu0
      %790 = vmatprep.mubr.f32.mxu0 0.0
      %791 = vmatmul.mubr.f32.gmra.mrb[0].mxu0 %v431
      %v792 = vpop.f32.mrb[0].mxu0
      %v793 = vadd.f32 %v271, %v792
      %v794 = vpop.f32.mrb[0].mxu0
      %795 = vmatprep.mubr.f32.mxu0 0.0
      %796 = vmatmul.mubr.f32.gmra.mrb[0].mxu0 %v434
      %v797 = vpop.f32.mrb[0].mxu0
      %v798 = vadd.f32 %v271, %v797
      %v799 = vpop.f32.mrb[0].mxu0
      %800 = vmatprep.mubr.f32.mxu0 0.0
      %801 = vmatmul.mubr.f32.gmra.mrb[0].mxu0 %v437
      %v802 = vpop.f32.mrb[0].mxu0
      %v803 = vadd.f32 %v271, %v802
      %v804 = vpop.f32.mrb[0].mxu0
      %805 = vmatprep.mubr.f32.mxu0 0.0
      %806 = vmatmul.mubr.f32.gmra.mrb[0].mxu0 %v440
      %v807 = vpop.f32.mrb[0].mxu0
      %v808 = vadd.f32 %v271, %v807
      %v809 = vpop.f32.mrb[0].mxu0
      %810 = vmatprep.mubr.f32.mxu0 0.0
      %811 = vmatmul.mubr.f32.gmra.mrb[0].mxu0 %v443
      %v812 = vpop.f32.mrb[0].mxu0
      %v813 = vadd.f32 %v271, %v812
      %v814 = vpop.f32.mrb[0].mxu0
      %815 = vmatprep.mubr.f32.mxu0 0.0
      %816 = vmatmul.mubr.f32.gmra.mrb[0].mxu0 %v446
      %v817 = vpop.f32.mrb[0].mxu0
      %v818 = vadd.f32 %v271, %v817
      %v819 = vpop.f32.mrb[0].mxu0
      %820 = vmatprep.mubr.f32.mxu0 0.0
      %821 = vmatmul.mubr.f32.gmra.mrb[0].mxu0 %v449
      %v822 = vpop.f32.mrb[0].mxu0
      %v823 = vadd.f32 %v271, %v822
      %v824 = vpop.f32.mrb[0].mxu0
      %825 = vmatprep.mubr.f32.mxu0 0.0
      %826 = vmatmul.mubr.f32.gmra.mrb[0].mxu0 %v452
      %v827 = vpop.f32.mrb[0].mxu0
      %v828 = vadd.f32 %v271, %v827
      %v829 = vpop.f32.mrb[0].mxu0
      %830 = vmatprep.mubr.f32.mxu0 0.0
      %831 = vmatmul.mubr.f32.gmra.mrb[0].mxu0 %v455
      %v832 = vpop.f32.mrb[0].mxu0
      %v833 = vadd.f32 %v271, %v832
      %v834 = vpop.f32.mrb[0].mxu0
      %835 = vmatprep.mubr.f32.mxu0 0.0
      %836 = vmatmul.mubr.f32.gmra.mrb[0].mxu0 %v458
      %v837 = vpop.f32.mrb[0].mxu0
      %v838 = vadd.f32 %v271, %v837
      %v839 = vpop.f32.mrb[0].mxu0
      %840 = vmatprep.mubr.f32.mxu0 0.0
      %841 = vmatmul.mubr.f32.gmra.mrb[0].mxu0 %v461
      %v842 = vpop.f32.mrb[0].mxu0
      %v843 = vadd.f32 %v271, %v842
      %v844 = vpop.f32.mrb[0].mxu0
      %845 = vmatprep.mubr.f32.mxu0 0.0
      %846 = vmatmul.mubr.f32.gmra.mrb[0].mxu0 %v464
      %v847 = vpop.f32.mrb[0].mxu0
      %v848 = vadd.f32 %v271, %v847
      %v849 = vpop.f32.mrb[0].mxu0
      %850 = vdwg.mxu0
      %851 = vmin.index.xlane.f32.xlu0 %v533
      %v852 = vpop.xlane.xlu0 %851
      %853 = vmin.index.xlane.f32.xlu0 %v538
      %v854 = vpop.xlane.xlu0 %853
      %855 = vmin.index.xlane.f32.xlu0 %v543
      %v856 = vpop.xlane.xlu0 %855
      %857 = vmin.index.xlane.f32.xlu0 %v548
      %v858 = vpop.xlane.xlu0 %857
      %859 = vmin.index.xlane.f32.xlu0 %v553
      %v860 = vpop.xlane.xlu0 %859
      %861 = vmin.index.xlane.f32.xlu0 %v558
      %v862 = vpop.xlane.xlu0 %861
      %863 = vmin.index.xlane.f32.xlu0 %v563
      %v864 = vpop.xlane.xlu0 %863
      %865 = vmin.index.xlane.f32.xlu0 %v568
      %v866 = vpop.xlane.xlu0 %865
      %867 = vmin.index.xlane.f32.xlu0 %v573
      %v868 = vpop.xlane.xlu0 %867
      %869 = vmin.index.xlane.f32.xlu0 %v578
      %v870 = vpop.xlane.xlu0 %869
      %871 = vmin.index.xlane.f32.xlu0 %v583
      %v872 = vpop.xlane.xlu0 %871
      %873 = vmin.index.xlane.f32.xlu0 %v588
      %v874 = vpop.xlane.xlu0 %873
      %875 = vmin.index.xlane.f32.xlu0 %v593
      %v876 = vpop.xlane.xlu0 %875
      %877 = vmin.index.xlane.f32.xlu0 %v598
      %v878 = vpop.xlane.xlu0 %877
      %879 = vmin.index.xlane.f32.xlu0 %v603
      %v880 = vpop.xlane.xlu0 %879
      %881 = vmin.index.xlane.f32.xlu0 %v608
      %v882 = vpop.xlane.xlu0 %881
      %883 = vmin.index.xlane.f32.xlu0 %v613
      %v884 = vpop.xlane.xlu0 %883
      %885 = vmin.index.xlane.f32.xlu0 %v618
      %v886 = vpop.xlane.xlu0 %885
      %887 = vmin.index.xlane.f32.xlu0 %v623
      %v888 = vpop.xlane.xlu0 %887
      %889 = vmin.index.xlane.f32.xlu0 %v628
      %v890 = vpop.xlane.xlu0 %889
      %891 = vmin.index.xlane.f32.xlu0 %v633
      %v892 = vpop.xlane.xlu0 %891
      %893 = vmin.index.xlane.f32.xlu0 %v638
      %v894 = vpop.xlane.xlu0 %893
      %895 = vmin.index.xlane.f32.xlu0 %v643
      %v896 = vpop.xlane.xlu0 %895
      %897 = vmin.index.xlane.f32.xlu0 %v648
      %v898 = vpop.xlane.xlu0 %897
      %899 = vmin.index.xlane.f32.xlu0 %v653
      %v900 = vpop.xlane.xlu0 %899
      %901 = vmin.index.xlane.f32.xlu0 %v658
      %v902 = vpop.xlane.xlu0 %901
      %903 = vmin.index.xlane.f32.xlu0 %v663
      %v904 = vpop.xlane.xlu0 %903
      %905 = vmin.index.xlane.f32.xlu0 %v668
      %v906 = vpop.xlane.xlu0 %905
      %907 = vmin.index.xlane.f32.xlu0 %v673
      %v908 = vpop.xlane.xlu0 %907
      %909 = vmin.index.xlane.f32.xlu0 %v678
      %v910 = vpop.xlane.xlu0 %909
      %911 = vmin.index.xlane.f32.xlu0 %v683
      %v912 = vpop.xlane.xlu0 %911
      %913 = vmin.index.xlane.f32.xlu0 %v688
      %v914 = vpop.xlane.xlu0 %913
      %915 = vmin.index.xlane.f32.xlu0 %v693
      %v916 = vpop.xlane.xlu0 %915
      %917 = vmin.index.xlane.f32.xlu0 %v698
      %v918 = vpop.xlane.xlu0 %917
      %919 = vmin.index.xlane.f32.xlu0 %v703
      %v920 = vpop.xlane.xlu0 %919
      %921 = vmin.index.xlane.f32.xlu0 %v708
      %v922 = vpop.xlane.xlu0 %921
      %923 = vmin.index.xlane.f32.xlu0 %v713
      %v924 = vpop.xlane.xlu0 %923
      %925 = vmin.index.xlane.f32.xlu0 %v718
      %v926 = vpop.xlane.xlu0 %925
      %927 = vmin.index.xlane.f32.xlu0 %v723
      %v928 = vpop.xlane.xlu0 %927
      %929 = vmin.index.xlane.f32.xlu0 %v728
      %v930 = vpop.xlane.xlu0 %929
      %931 = vmin.index.xlane.f32.xlu0 %v733
      %v932 = vpop.xlane.xlu0 %931
      %933 = vmin.index.xlane.f32.xlu0 %v738
      %v934 = vpop.xlane.xlu0 %933
      %935 = vmin.index.xlane.f32.xlu0 %v743
      %v936 = vpop.xlane.xlu0 %935
      %937 = vmin.index.xlane.f32.xlu0 %v748
      %v938 = vpop.xlane.xlu0 %937
      %939 = vmin.index.xlane.f32.xlu0 %v753
      %v940 = vpop.xlane.xlu0 %939
      %941 = vmin.index.xlane.f32.xlu0 %v758
      %v942 = vpop.xlane.xlu0 %941
      %943 = vmin.index.xlane.f32.xlu0 %v763
      %v944 = vpop.xlane.xlu0 %943
      %945 = vmin.index.xlane.f32.xlu0 %v768
      %v946 = vpop.xlane.xlu0 %945
      %947 = vmin.index.xlane.f32.xlu0 %v773
      %v948 = vpop.xlane.xlu0 %947
      %949 = vmin.index.xlane.f32.xlu0 %v778
      %v950 = vpop.xlane.xlu0 %949
      %951 = vmin.index.xlane.f32.xlu0 %v783
      %v952 = vpop.xlane.xlu0 %951
      %953 = vmin.index.xlane.f32.xlu0 %v788
      %v954 = vpop.xlane.xlu0 %953
      %955 = vmin.index.xlane.f32.xlu0 %v793
      %v956 = vpop.xlane.xlu0 %955
      %957 = vmin.index.xlane.f32.xlu0 %v798
      %v958 = vpop.xlane.xlu0 %957
      %959 = vmin.index.xlane.f32.xlu0 %v803
      %v960 = vpop.xlane.xlu0 %959
      %961 = vmin.index.xlane.f32.xlu0 %v808
      %v962 = vpop.xlane.xlu0 %961
      %963 = vmin.index.xlane.f32.xlu0 %v813
      %v964 = vpop.xlane.xlu0 %963
      %965 = vmin.index.xlane.f32.xlu0 %v818
      %v966 = vpop.xlane.xlu0 %965
      %967 = vmin.index.xlane.f32.xlu0 %v823
      %v968 = vpop.xlane.xlu0 %967
      %969 = vmin.index.xlane.f32.xlu0 %v828
      %v970 = vpop.xlane.xlu0 %969
      %971 = vmin.index.xlane.f32.xlu0 %v833
      %v972 = vpop.xlane.xlu0 %971
      %973 = vmin.index.xlane.f32.xlu0 %v838
      %v974 = vpop.xlane.xlu0 %973
      %975 = vmin.index.xlane.f32.xlu0 %v843
      %v976 = vpop.xlane.xlu0 %975
      %977 = vmin.index.xlane.f32.xlu0 %v848
      %v978 = vpop.xlane.xlu0 %977
      %v979 = vlaneseq
      %v980 = vand.u32 %v979, 127
      %vm981 = vcmp.eq.s32.totalorder %v980, %v852
      %vm982 = vcmp.eq.s32.totalorder %v980, %v854
      %vm983 = vcmp.eq.s32.totalorder %v980, %v856
      %vm984 = vcmp.eq.s32.totalorder %v980, %v858
      %vm985 = vcmp.eq.s32.totalorder %v980, %v860
      %vm986 = vcmp.eq.s32.totalorder %v980, %v862
      %vm987 = vcmp.eq.s32.totalorder %v980, %v864
      %vm988 = vcmp.eq.s32.totalorder %v980, %v866
      %vm989 = vcmp.eq.s32.totalorder %v980, %v868
      %vm990 = vcmp.eq.s32.totalorder %v980, %v870
      %vm991 = vcmp.eq.s32.totalorder %v980, %v872
      %vm992 = vcmp.eq.s32.totalorder %v980, %v874
      %vm993 = vcmp.eq.s32.totalorder %v980, %v876
      %vm994 = vcmp.eq.s32.totalorder %v980, %v878
      %vm995 = vcmp.eq.s32.totalorder %v980, %v880
      %vm996 = vcmp.eq.s32.totalorder %v980, %v882
      %vm997 = vcmp.eq.s32.totalorder %v980, %v884
      %vm998 = vcmp.eq.s32.totalorder %v980, %v886
      %vm999 = vcmp.eq.s32.totalorder %v980, %v888
      %vm1000 = vcmp.eq.s32.totalorder %v980, %v890
      %vm1001 = vcmp.eq.s32.totalorder %v980, %v892
      %vm1002 = vcmp.eq.s32.totalorder %v980, %v894
      %vm1003 = vcmp.eq.s32.totalorder %v980, %v896
      %vm1004 = vcmp.eq.s32.totalorder %v980, %v898
      %vm1005 = vcmp.eq.s32.totalorder %v980, %v900
      %vm1006 = vcmp.eq.s32.totalorder %v980, %v902
      %vm1007 = vcmp.eq.s32.totalorder %v980, %v904
      %vm1008 = vcmp.eq.s32.totalorder %v980, %v906
      %vm1009 = vcmp.eq.s32.totalorder %v980, %v908
      %vm1010 = vcmp.eq.s32.totalorder %v980, %v910
      %vm1011 = vcmp.eq.s32.totalorder %v980, %v912
      %vm1012 = vcmp.eq.s32.totalorder %v980, %v914
      %vm1013 = vcmp.eq.s32.totalorder %v980, %v916
      %vm1014 = vcmp.eq.s32.totalorder %v980, %v918
      %vm1015 = vcmp.eq.s32.totalorder %v980, %v920
      %vm1016 = vcmp.eq.s32.totalorder %v980, %v922
      %vm1017 = vcmp.eq.s32.totalorder %v980, %v924
      %vm1018 = vcmp.eq.s32.totalorder %v980, %v926
      %vm1019 = vcmp.eq.s32.totalorder %v980, %v928
      %vm1020 = vcmp.eq.s32.totalorder %v980, %v930
      %vm1021 = vcmp.eq.s32.totalorder %v980, %v932
      %vm1022 = vcmp.eq.s32.totalorder %v980, %v934
      %vm1023 = vcmp.eq.s32.totalorder %v980, %v936
      %vm1024 = vcmp.eq.s32.totalorder %v980, %v938
      %vm1025 = vcmp.eq.s32.totalorder %v980, %v940
      %vm1026 = vcmp.eq.s32.totalorder %v980, %v942
      %vm1027 = vcmp.eq.s32.totalorder %v980, %v944
      %vm1028 = vcmp.eq.s32.totalorder %v980, %v946
      %vm1029 = vcmp.eq.s32.totalorder %v980, %v948
      %vm1030 = vcmp.eq.s32.totalorder %v980, %v950
      %vm1031 = vcmp.eq.s32.totalorder %v980, %v952
      %vm1032 = vcmp.eq.s32.totalorder %v980, %v954
      %vm1033 = vcmp.eq.s32.totalorder %v980, %v956
      %vm1034 = vcmp.eq.s32.totalorder %v980, %v958
      %vm1035 = vcmp.eq.s32.totalorder %v980, %v960
      %vm1036 = vcmp.eq.s32.totalorder %v980, %v962
      %vm1037 = vcmp.eq.s32.totalorder %v980, %v964
      %vm1038 = vcmp.eq.s32.totalorder %v980, %v966
      %vm1039 = vcmp.eq.s32.totalorder %v980, %v968
      %vm1040 = vcmp.eq.s32.totalorder %v980, %v970
      %vm1041 = vcmp.eq.s32.totalorder %v980, %v972
      %vm1042 = vcmp.eq.s32.totalorder %v980, %v974
      %vm1043 = vcmp.eq.s32.totalorder %v980, %v976
      %vm1044 = vcmp.eq.s32.totalorder %v980, %v978
      %v1045 = vsel %vm981, 1, 0
      %v1046 = vsel %vm982, 1, 0
      %v1047 = vsel %vm983, 1, 0
      %v1048 = vsel %vm984, 1, 0
      %v1049 = vsel %vm985, 1, 0
      %v1050 = vsel %vm986, 1, 0
      %v1051 = vsel %vm987, 1, 0
      %v1052 = vsel %vm988, 1, 0
      %v1053 = vsel %vm989, 1, 0
      %v1054 = vsel %vm990, 1, 0
      %v1055 = vsel %vm991, 1, 0
      %v1056 = vsel %vm992, 1, 0
      %v1057 = vsel %vm993, 1, 0
      %v1058 = vsel %vm994, 1, 0
      %v1059 = vsel %vm995, 1, 0
      %v1060 = vsel %vm996, 1, 0
      %v1061 = vsel %vm997, 1, 0
      %v1062 = vsel %vm998, 1, 0
      %v1063 = vsel %vm999, 1, 0
      %v1064 = vsel %vm1000, 1, 0
      %v1065 = vsel %vm1001, 1, 0
      %v1066 = vsel %vm1002, 1, 0
      %v1067 = vsel %vm1003, 1, 0
      %v1068 = vsel %vm1004, 1, 0
      %v1069 = vsel %vm1005, 1, 0
      %v1070 = vsel %vm1006, 1, 0
      %v1071 = vsel %vm1007, 1, 0
      %v1072 = vsel %vm1008, 1, 0
      %v1073 = vsel %vm1009, 1, 0
      %v1074 = vsel %vm1010, 1, 0
      %v1075 = vsel %vm1011, 1, 0
      %v1076 = vsel %vm1012, 1, 0
      %v1077 = vsel %vm1013, 1, 0
      %v1078 = vsel %vm1014, 1, 0
      %v1079 = vsel %vm1015, 1, 0
      %v1080 = vsel %vm1016, 1, 0
      %v1081 = vsel %vm1017, 1, 0
      %v1082 = vsel %vm1018, 1, 0
      %v1083 = vsel %vm1019, 1, 0
      %v1084 = vsel %vm1020, 1, 0
      %v1085 = vsel %vm1021, 1, 0
      %v1086 = vsel %vm1022, 1, 0
      %v1087 = vsel %vm1023, 1, 0
      %v1088 = vsel %vm1024, 1, 0
      %v1089 = vsel %vm1025, 1, 0
      %v1090 = vsel %vm1026, 1, 0
      %v1091 = vsel %vm1027, 1, 0
      %v1092 = vsel %vm1028, 1, 0
      %v1093 = vsel %vm1029, 1, 0
      %v1094 = vsel %vm1030, 1, 0
      %v1095 = vsel %vm1031, 1, 0
      %v1096 = vsel %vm1032, 1, 0
      %v1097 = vsel %vm1033, 1, 0
      %v1098 = vsel %vm1034, 1, 0
      %v1099 = vsel %vm1035, 1, 0
      %v1100 = vsel %vm1036, 1, 0
      %v1101 = vsel %vm1037, 1, 0
      %v1102 = vsel %vm1038, 1, 0
      %v1103 = vsel %vm1039, 1, 0
      %v1104 = vsel %vm1040, 1, 0
      %v1105 = vsel %vm1041, 1, 0
      %v1106 = vsel %vm1042, 1, 0
      %v1107 = vsel %vm1043, 1, 0
      %v1108 = vsel %vm1044, 1, 0
      %v1109 = vcvt.s32.f32 %v1045
      %v1110 = vcvt.s32.f32 %v1046
      %v1111 = vcvt.s32.f32 %v1047
      %v1112 = vcvt.s32.f32 %v1048
      %v1113 = vcvt.s32.f32 %v1049
      %v1114 = vcvt.s32.f32 %v1050
      %v1115 = vcvt.s32.f32 %v1051
      %v1116 = vcvt.s32.f32 %v1052
      %v1117 = vcvt.s32.f32 %v1053
      %v1118 = vcvt.s32.f32 %v1054
      %v1119 = vcvt.s32.f32 %v1055
      %v1120 = vcvt.s32.f32 %v1056
      %v1121 = vcvt.s32.f32 %v1057
      %v1122 = vcvt.s32.f32 %v1058
      %v1123 = vcvt.s32.f32 %v1059
      %v1124 = vcvt.s32.f32 %v1060
      %v1125 = vcvt.s32.f32 %v1061
      %v1126 = vcvt.s32.f32 %v1062
      %v1127 = vcvt.s32.f32 %v1063
      %v1128 = vcvt.s32.f32 %v1064
      %v1129 = vcvt.s32.f32 %v1065
      %v1130 = vcvt.s32.f32 %v1066
      %v1131 = vcvt.s32.f32 %v1067
      %v1132 = vcvt.s32.f32 %v1068
      %v1133 = vcvt.s32.f32 %v1069
      %v1134 = vcvt.s32.f32 %v1070
      %v1135 = vcvt.s32.f32 %v1071
      %v1136 = vcvt.s32.f32 %v1072
      %v1137 = vcvt.s32.f32 %v1073
      %v1138 = vcvt.s32.f32 %v1074
      %v1139 = vcvt.s32.f32 %v1075
      %v1140 = vcvt.s32.f32 %v1076
      %v1141 = vcvt.s32.f32 %v1077
      %v1142 = vcvt.s32.f32 %v1078
      %v1143 = vcvt.s32.f32 %v1079
      %v1144 = vcvt.s32.f32 %v1080
      %v1145 = vcvt.s32.f32 %v1081
      %v1146 = vcvt.s32.f32 %v1082
      %v1147 = vcvt.s32.f32 %v1083
      %v1148 = vcvt.s32.f32 %v1084
      %v1149 = vcvt.s32.f32 %v1085
      %v1150 = vcvt.s32.f32 %v1086
      %v1151 = vcvt.s32.f32 %v1087
      %v1152 = vcvt.s32.f32 %v1088
      %v1153 = vcvt.s32.f32 %v1089
      %v1154 = vcvt.s32.f32 %v1090
      %v1155 = vcvt.s32.f32 %v1091
      %v1156 = vcvt.s32.f32 %v1092
      %v1157 = vcvt.s32.f32 %v1093
      %v1158 = vcvt.s32.f32 %v1094
      %v1159 = vcvt.s32.f32 %v1095
      %v1160 = vcvt.s32.f32 %v1096
      %v1161 = vcvt.s32.f32 %v1097
      %v1162 = vcvt.s32.f32 %v1098
      %v1163 = vcvt.s32.f32 %v1099
      %v1164 = vcvt.s32.f32 %v1100
      %v1165 = vcvt.s32.f32 %v1101
      %v1166 = vcvt.s32.f32 %v1102
      %v1167 = vcvt.s32.f32 %v1103
      %v1168 = vcvt.s32.f32 %v1104
      %v1169 = vcvt.s32.f32 %v1105
      %v1170 = vcvt.s32.f32 %v1106
      %v1171 = vcvt.s32.f32 %v1107
      %v1172 = vcvt.s32.f32 %v1108
      %v1173 = vld [vmem:[%s2] sm:$0xff]
      %v1174 = vld [vmem:[%s2 + $0x8] sm:$0xff]
      %v1175 = vld [vmem:[%s2 + $0x10] sm:$0xff]
      %v1176 = vld [vmem:[%s2 + $0x18] sm:$0xff]
      %v1177 = vld [vmem:[%s2 + $0x20] sm:$0xff]
      %v1178 = vld [vmem:[%s2 + $0x28] sm:$0xff]
      %v1179 = vld [vmem:[%s2 + $0x30] sm:$0xff]
      %v1180 = vld [vmem:[%s2 + $0x38] sm:$0xff]
      %v1181 = vld [vmem:[%s2 + $0x40] sm:$0xff]
      %v1182 = vld [vmem:[%s2 + $0x48] sm:$0xff]
      %v1183 = vld [vmem:[%s2 + $0x50] sm:$0xff]
      %v1184 = vld [vmem:[%s2 + $0x58] sm:$0xff]
      %v1185 = vld [vmem:[%s2 + $0x60] sm:$0xff]
      %v1186 = vld [vmem:[%s2 + $0x68] sm:$0xff]
      %v1187 = vld [vmem:[%s2 + $0x70] sm:$0xff]
      %v1188 = vld [vmem:[%s2 + $0x78] sm:$0xff]
      %1189 = vmatprep.subr.mxu0 0.0
      %1190 = vmatpush1.msra.mxu0 %v1173
      %1191 = vmatprep.subr.mxu0 0.0
      %1192 = vmatpush1.msra.mxu0 %v1174
      %1193 = vmatprep.subr.mxu0 0.0
      %1194 = vmatpush1.msra.mxu0 %v1175
      %1195 = vmatprep.subr.mxu0 0.0
      %1196 = vmatpush1.msra.mxu0 %v1176
      %1197 = vmatprep.subr.mxu0 0.0
      %1198 = vmatpush1.msra.mxu0 %v1177
      %1199 = vmatprep.subr.mxu0 0.0
      %1200 = vmatpush1.msra.mxu0 %v1178
      %1201 = vmatprep.subr.mxu0 0.0
      %1202 = vmatpush1.msra.mxu0 %v1179
      %1203 = vmatprep.subr.mxu0 0.0
      %1204 = vmatpush1.msra.mxu0 %v1180
      %1205 = vmatprep.subr.mxu0 0.0
      %1206 = vmatpush1.msra.mxu0 %v1181
      %1207 = vmatprep.subr.mxu0 0.0
      %1208 = vmatpush1.msra.mxu0 %v1182
      %1209 = vmatprep.subr.mxu0 0.0
      %1210 = vmatpush1.msra.mxu0 %v1183
      %1211 = vmatprep.subr.mxu0 0.0
      %1212 = vmatpush1.msra.mxu0 %v1184
      %1213 = vmatprep.subr.mxu0 0.0
      %1214 = vmatpush1.msra.mxu0 %v1185
      %1215 = vmatprep.subr.mxu0 0.0
      %1216 = vmatpush1.msra.mxu0 %v1186
      %1217 = vmatprep.subr.mxu0 0.0
      %1218 = vmatpush1.msra.mxu0 %v1187
      %1219 = vmatprep.subr.mxu0 0.0
      %1220 = vmatpush1.msra.mxu0 %v1188
      %1221 = vmatprep.subr.mxu0 0.0
      %1222 = vmatpush1.msra.mxu0 0.0
      %1223 = vmatprep.subr.mxu0 0.0
      %1224 = vmatpush1.msra.mxu0 0.0
      %1225 = vmatprep.subr.mxu0 0.0
      %1226 = vmatpush1.msra.mxu0 0.0
      %1227 = vmatprep.subr.mxu0 0.0
      %1228 = vmatpush1.msra.mxu0 0.0
      %1229 = vmatprep.subr.mxu0 0.0
      %1230 = vmatpush1.msra.mxu0 0.0
      %1231 = vmatprep.subr.mxu0 0.0
      %1232 = vmatpush1.msra.mxu0 0.0
      %1233 = vmatprep.subr.mxu0 0.0
      %1234 = vmatpush1.msra.mxu0 0.0
      %1235 = vmatprep.subr.mxu0 0.0
      %1236 = vmatpush1.msra.mxu0 0.0
      %1237 = vmatprep.subr.mxu0 0.0
      %1238 = vmatpush1.msra.mxu0 0.0
      %1239 = vmatprep.subr.mxu0 0.0
      %1240 = vmatpush1.msra.mxu0 0.0
      %1241 = vmatprep.subr.mxu0 0.0
      %1242 = vmatpush1.msra.mxu0 0.0
      %1243 = vmatprep.subr.mxu0 0.0
      %1244 = vmatpush1.msra.mxu0 0.0
      %1245 = vmatprep.subr.mxu0 0.0
      %1246 = vmatpush1.msra.mxu0 0.0
      %1247 = vmatprep.subr.mxu0 0.0
      %1248 = vmatpush1.msra.mxu0 0.0
      %1249 = vmatprep.subr.mxu0 0.0
      %1250 = vmatpush1.msra.mxu0 0.0
      %1251 = vmatprep.subr.mxu0 0.0
      %1252 = vmatpush1.msra.mxu0 0.0
      %1253 = vmatprep.mubr.f32.mxu0 0.0
      %1254 = vmatmul.mubr.f32.gmra.mrb[0].mxu0 %v1109
      %v1255 = vpop.f32.mrb[0].mxu0
      %v1256 = vadd.f32 0.0, %v1255
      %v1257 = vpop.f32.mrb[0].mxu0
      %1258 = vmatprep.mubr.f32.mxu0 0.0
      %1259 = vmatmul.mubr.f32.gmra.mrb[0].mxu0 %v1110
      %v1260 = vpop.f32.mrb[0].mxu0
      %v1261 = vadd.f32 0.0, %v1260
      %v1262 = vpop.f32.mrb[0].mxu0
      %1263 = vmatprep.mubr.f32.mxu0 0.0
      %1264 = vmatmul.mubr.f32.gmra.mrb[0].mxu0 %v1111
      %v1265 = vpop.f32.mrb[0].mxu0
      %v1266 = vadd.f32 0.0, %v1265
      %v1267 = vpop.f32.mrb[0].mxu0
      %1268 = vmatprep.mubr.f32.mxu0 0.0
      %1269 = vmatmul.mubr.f32.gmra.mrb[0].mxu0 %v1112
      %v1270 = vpop.f32.mrb[0].mxu0
      %v1271 = vadd.f32 0.0, %v1270
      %v1272 = vpop.f32.mrb[0].mxu0
      %1273 = vmatprep.mubr.f32.mxu0 0.0
      %1274 = vmatmul.mubr.f32.gmra.mrb[0].mxu0 %v1113
      %v1275 = vpop.f32.mrb[0].mxu0
      %v1276 = vadd.f32 0.0, %v1275
      %v1277 = vpop.f32.mrb[0].mxu0
      %1278 = vmatprep.mubr.f32.mxu0 0.0
      %1279 = vmatmul.mubr.f32.gmra.mrb[0].mxu0 %v1114
      %v1280 = vpop.f32.mrb[0].mxu0
      %v1281 = vadd.f32 0.0, %v1280
      %v1282 = vpop.f32.mrb[0].mxu0
      %1283 = vmatprep.mubr.f32.mxu0 0.0
      %1284 = vmatmul.mubr.f32.gmra.mrb[0].mxu0 %v1115
      %v1285 = vpop.f32.mrb[0].mxu0
      %v1286 = vadd.f32 0.0, %v1285
      %v1287 = vpop.f32.mrb[0].mxu0
      %1288 = vmatprep.mubr.f32.mxu0 0.0
      %1289 = vmatmul.mubr.f32.gmra.mrb[0].mxu0 %v1116
      %v1290 = vpop.f32.mrb[0].mxu0
      %v1291 = vadd.f32 0.0, %v1290
      %v1292 = vpop.f32.mrb[0].mxu0
      %1293 = vmatprep.mubr.f32.mxu0 0.0
      %1294 = vmatmul.mubr.f32.gmra.mrb[0].mxu0 %v1117
      %v1295 = vpop.f32.mrb[0].mxu0
      %v1296 = vadd.f32 0.0, %v1295
      %v1297 = vpop.f32.mrb[0].mxu0
      %1298 = vmatprep.mubr.f32.mxu0 0.0
      %1299 = vmatmul.mubr.f32.gmra.mrb[0].mxu0 %v1118
      %v1300 = vpop.f32.mrb[0].mxu0
      %v1301 = vadd.f32 0.0, %v1300
      %v1302 = vpop.f32.mrb[0].mxu0
      %1303 = vmatprep.mubr.f32.mxu0 0.0
      %1304 = vmatmul.mubr.f32.gmra.mrb[0].mxu0 %v1119
      %v1305 = vpop.f32.mrb[0].mxu0
      %v1306 = vadd.f32 0.0, %v1305
      %v1307 = vpop.f32.mrb[0].mxu0
      %1308 = vmatprep.mubr.f32.mxu0 0.0
      %1309 = vmatmul.mubr.f32.gmra.mrb[0].mxu0 %v1120
      %v1310 = vpop.f32.mrb[0].mxu0
      %v1311 = vadd.f32 0.0, %v1310
      %v1312 = vpop.f32.mrb[0].mxu0
      %1313 = vmatprep.mubr.f32.mxu0 0.0
      %1314 = vmatmul.mubr.f32.gmra.mrb[0].mxu0 %v1121
      %v1315 = vpop.f32.mrb[0].mxu0
      %v1316 = vadd.f32 0.0, %v1315
      %v1317 = vpop.f32.mrb[0].mxu0
      %1318 = vmatprep.mubr.f32.mxu0 0.0
      %1319 = vmatmul.mubr.f32.gmra.mrb[0].mxu0 %v1122
      %v1320 = vpop.f32.mrb[0].mxu0
      %v1321 = vadd.f32 0.0, %v1320
      %v1322 = vpop.f32.mrb[0].mxu0
      %1323 = vmatprep.mubr.f32.mxu0 0.0
      %1324 = vmatmul.mubr.f32.gmra.mrb[0].mxu0 %v1123
      %v1325 = vpop.f32.mrb[0].mxu0
      %v1326 = vadd.f32 0.0, %v1325
      %v1327 = vpop.f32.mrb[0].mxu0
      %1328 = vmatprep.mubr.f32.mxu0 0.0
      %1329 = vmatmul.mubr.f32.gmra.mrb[0].mxu0 %v1124
      %v1330 = vpop.f32.mrb[0].mxu0
      %v1331 = vadd.f32 0.0, %v1330
      %v1332 = vpop.f32.mrb[0].mxu0
      %1333 = vmatprep.mubr.f32.mxu0 0.0
      %1334 = vmatmul.mubr.f32.gmra.mrb[0].mxu0 %v1125
      %v1335 = vpop.f32.mrb[0].mxu0
      %v1336 = vadd.f32 0.0, %v1335
      %v1337 = vpop.f32.mrb[0].mxu0
      %1338 = vmatprep.mubr.f32.mxu0 0.0
      %1339 = vmatmul.mubr.f32.gmra.mrb[0].mxu0 %v1126
      %v1340 = vpop.f32.mrb[0].mxu0
      %v1341 = vadd.f32 0.0, %v1340
      %v1342 = vpop.f32.mrb[0].mxu0
      %1343 = vmatprep.mubr.f32.mxu0 0.0
      %1344 = vmatmul.mubr.f32.gmra.mrb[0].mxu0 %v1127
      %v1345 = vpop.f32.mrb[0].mxu0
      %v1346 = vadd.f32 0.0, %v1345
      %v1347 = vpop.f32.mrb[0].mxu0
      %1348 = vmatprep.mubr.f32.mxu0 0.0
      %1349 = vmatmul.mubr.f32.gmra.mrb[0].mxu0 %v1128
      %v1350 = vpop.f32.mrb[0].mxu0
      %v1351 = vadd.f32 0.0, %v1350
      %v1352 = vpop.f32.mrb[0].mxu0
      %1353 = vmatprep.mubr.f32.mxu0 0.0
      %1354 = vmatmul.mubr.f32.gmra.mrb[0].mxu0 %v1129
      %v1355 = vpop.f32.mrb[0].mxu0
      %v1356 = vadd.f32 0.0, %v1355
      %v1357 = vpop.f32.mrb[0].mxu0
      %1358 = vmatprep.mubr.f32.mxu0 0.0
      %1359 = vmatmul.mubr.f32.gmra.mrb[0].mxu0 %v1130
      %v1360 = vpop.f32.mrb[0].mxu0
      %v1361 = vadd.f32 0.0, %v1360
      %v1362 = vpop.f32.mrb[0].mxu0
      %1363 = vmatprep.mubr.f32.mxu0 0.0
      %1364 = vmatmul.mubr.f32.gmra.mrb[0].mxu0 %v1131
      %v1365 = vpop.f32.mrb[0].mxu0
      %v1366 = vadd.f32 0.0, %v1365
      %v1367 = vpop.f32.mrb[0].mxu0
      %1368 = vmatprep.mubr.f32.mxu0 0.0
      %1369 = vmatmul.mubr.f32.gmra.mrb[0].mxu0 %v1132
      %v1370 = vpop.f32.mrb[0].mxu0
      %v1371 = vadd.f32 0.0, %v1370
      %v1372 = vpop.f32.mrb[0].mxu0
      %1373 = vmatprep.mubr.f32.mxu0 0.0
      %1374 = vmatmul.mubr.f32.gmra.mrb[0].mxu0 %v1133
      %v1375 = vpop.f32.mrb[0].mxu0
      %v1376 = vadd.f32 0.0, %v1375
      %v1377 = vpop.f32.mrb[0].mxu0
      %1378 = vmatprep.mubr.f32.mxu0 0.0
      %1379 = vmatmul.mubr.f32.gmra.mrb[0].mxu0 %v1134
      %v1380 = vpop.f32.mrb[0].mxu0
      %v1381 = vadd.f32 0.0, %v1380
      %v1382 = vpop.f32.mrb[0].mxu0
      %1383 = vmatprep.mubr.f32.mxu0 0.0
      %1384 = vmatmul.mubr.f32.gmra.mrb[0].mxu0 %v1135
      %v1385 = vpop.f32.mrb[0].mxu0
      %v1386 = vadd.f32 0.0, %v1385
      %v1387 = vpop.f32.mrb[0].mxu0
      %1388 = vmatprep.mubr.f32.mxu0 0.0
      %1389 = vmatmul.mubr.f32.gmra.mrb[0].mxu0 %v1136
      %v1390 = vpop.f32.mrb[0].mxu0
      %v1391 = vadd.f32 0.0, %v1390
      %v1392 = vpop.f32.mrb[0].mxu0
      %1393 = vmatprep.mubr.f32.mxu0 0.0
      %1394 = vmatmul.mubr.f32.gmra.mrb[0].mxu0 %v1137
      %v1395 = vpop.f32.mrb[0].mxu0
      %v1396 = vadd.f32 0.0, %v1395
      %v1397 = vpop.f32.mrb[0].mxu0
      %1398 = vmatprep.mubr.f32.mxu0 0.0
      %1399 = vmatmul.mubr.f32.gmra.mrb[0].mxu0 %v1138
      %v1400 = vpop.f32.mrb[0].mxu0
      %v1401 = vadd.f32 0.0, %v1400
      %v1402 = vpop.f32.mrb[0].mxu0
      %1403 = vmatprep.mubr.f32.mxu0 0.0
      %1404 = vmatmul.mubr.f32.gmra.mrb[0].mxu0 %v1139
      %v1405 = vpop.f32.mrb[0].mxu0
      %v1406 = vadd.f32 0.0, %v1405
      %v1407 = vpop.f32.mrb[0].mxu0
      %1408 = vmatprep.mubr.f32.mxu0 0.0
      %1409 = vmatmul.mubr.f32.gmra.mrb[0].mxu0 %v1140
      %v1410 = vpop.f32.mrb[0].mxu0
      %v1411 = vadd.f32 0.0, %v1410
      %v1412 = vpop.f32.mrb[0].mxu0
      %1413 = vmatprep.mubr.f32.mxu0 0.0
      %1414 = vmatmul.mubr.f32.gmra.mrb[0].mxu0 %v1141
      %v1415 = vpop.f32.mrb[0].mxu0
      %v1416 = vadd.f32 0.0, %v1415
      %v1417 = vpop.f32.mrb[0].mxu0
      %1418 = vmatprep.mubr.f32.mxu0 0.0
      %1419 = vmatmul.mubr.f32.gmra.mrb[0].mxu0 %v1142
      %v1420 = vpop.f32.mrb[0].mxu0
      %v1421 = vadd.f32 0.0, %v1420
      %v1422 = vpop.f32.mrb[0].mxu0
      %1423 = vmatprep.mubr.f32.mxu0 0.0
      %1424 = vmatmul.mubr.f32.gmra.mrb[0].mxu0 %v1143
      %v1425 = vpop.f32.mrb[0].mxu0
      %v1426 = vadd.f32 0.0, %v1425
      %v1427 = vpop.f32.mrb[0].mxu0
      %1428 = vmatprep.mubr.f32.mxu0 0.0
      %1429 = vmatmul.mubr.f32.gmra.mrb[0].mxu0 %v1144
      %v1430 = vpop.f32.mrb[0].mxu0
      %v1431 = vadd.f32 0.0, %v1430
      %v1432 = vpop.f32.mrb[0].mxu0
      %1433 = vmatprep.mubr.f32.mxu0 0.0
      %1434 = vmatmul.mubr.f32.gmra.mrb[0].mxu0 %v1145
      %v1435 = vpop.f32.mrb[0].mxu0
      %v1436 = vadd.f32 0.0, %v1435
      %v1437 = vpop.f32.mrb[0].mxu0
      %1438 = vmatprep.mubr.f32.mxu0 0.0
      %1439 = vmatmul.mubr.f32.gmra.mrb[0].mxu0 %v1146
      %v1440 = vpop.f32.mrb[0].mxu0
      %v1441 = vadd.f32 0.0, %v1440
      %v1442 = vpop.f32.mrb[0].mxu0
      %1443 = vmatprep.mubr.f32.mxu0 0.0
      %1444 = vmatmul.mubr.f32.gmra.mrb[0].mxu0 %v1147
      %v1445 = vpop.f32.mrb[0].mxu0
      %v1446 = vadd.f32 0.0, %v1445
      %v1447 = vpop.f32.mrb[0].mxu0
      %1448 = vmatprep.mubr.f32.mxu0 0.0
      %1449 = vmatmul.mubr.f32.gmra.mrb[0].mxu0 %v1148
      %v1450 = vpop.f32.mrb[0].mxu0
      %v1451 = vadd.f32 0.0, %v1450
      %v1452 = vpop.f32.mrb[0].mxu0
      %1453 = vmatprep.mubr.f32.mxu0 0.0
      %1454 = vmatmul.mubr.f32.gmra.mrb[0].mxu0 %v1149
      %v1455 = vpop.f32.mrb[0].mxu0
      %v1456 = vadd.f32 0.0, %v1455
      %v1457 = vpop.f32.mrb[0].mxu0
      %1458 = vmatprep.mubr.f32.mxu0 0.0
      %1459 = vmatmul.mubr.f32.gmra.mrb[0].mxu0 %v1150
      %v1460 = vpop.f32.mrb[0].mxu0
      %v1461 = vadd.f32 0.0, %v1460
      %v1462 = vpop.f32.mrb[0].mxu0
      %1463 = vmatprep.mubr.f32.mxu0 0.0
      %1464 = vmatmul.mubr.f32.gmra.mrb[0].mxu0 %v1151
      %v1465 = vpop.f32.mrb[0].mxu0
      %v1466 = vadd.f32 0.0, %v1465
      %v1467 = vpop.f32.mrb[0].mxu0
      %1468 = vmatprep.mubr.f32.mxu0 0.0
      %1469 = vmatmul.mubr.f32.gmra.mrb[0].mxu0 %v1152
      %v1470 = vpop.f32.mrb[0].mxu0
      %v1471 = vadd.f32 0.0, %v1470
      %v1472 = vpop.f32.mrb[0].mxu0
      %1473 = vmatprep.mubr.f32.mxu0 0.0
      %1474 = vmatmul.mubr.f32.gmra.mrb[0].mxu0 %v1153
      %v1475 = vpop.f32.mrb[0].mxu0
      %v1476 = vadd.f32 0.0, %v1475
      %v1477 = vpop.f32.mrb[0].mxu0
      %1478 = vmatprep.mubr.f32.mxu0 0.0
      %1479 = vmatmul.mubr.f32.gmra.mrb[0].mxu0 %v1154
      %v1480 = vpop.f32.mrb[0].mxu0
      %v1481 = vadd.f32 0.0, %v1480
      %v1482 = vpop.f32.mrb[0].mxu0
      %1483 = vmatprep.mubr.f32.mxu0 0.0
      %1484 = vmatmul.mubr.f32.gmra.mrb[0].mxu0 %v1155
      %v1485 = vpop.f32.mrb[0].mxu0
      %v1486 = vadd.f32 0.0, %v1485
      %v1487 = vpop.f32.mrb[0].mxu0
      %1488 = vmatprep.mubr.f32.mxu0 0.0
      %1489 = vmatmul.mubr.f32.gmra.mrb[0].mxu0 %v1156
      %v1490 = vpop.f32.mrb[0].mxu0
      %v1491 = vadd.f32 0.0, %v1490
      %v1492 = vpop.f32.mrb[0].mxu0
      %1493 = vmatprep.mubr.f32.mxu0 0.0
      %1494 = vmatmul.mubr.f32.gmra.mrb[0].mxu0 %v1157
      %v1495 = vpop.f32.mrb[0].mxu0
      %v1496 = vadd.f32 0.0, %v1495
      %v1497 = vpop.f32.mrb[0].mxu0
      %1498 = vmatprep.mubr.f32.mxu0 0.0
      %1499 = vmatmul.mubr.f32.gmra.mrb[0].mxu0 %v1158
      %v1500 = vpop.f32.mrb[0].mxu0
      %v1501 = vadd.f32 0.0, %v1500
      %v1502 = vpop.f32.mrb[0].mxu0
      %1503 = vmatprep.mubr.f32.mxu0 0.0
      %1504 = vmatmul.mubr.f32.gmra.mrb[0].mxu0 %v1159
      %v1505 = vpop.f32.mrb[0].mxu0
      %v1506 = vadd.f32 0.0, %v1505
      %v1507 = vpop.f32.mrb[0].mxu0
      %1508 = vmatprep.mubr.f32.mxu0 0.0
      %1509 = vmatmul.mubr.f32.gmra.mrb[0].mxu0 %v1160
      %v1510 = vpop.f32.mrb[0].mxu0
      %v1511 = vadd.f32 0.0, %v1510
      %v1512 = vpop.f32.mrb[0].mxu0
      %1513 = vmatprep.mubr.f32.mxu0 0.0
      %1514 = vmatmul.mubr.f32.gmra.mrb[0].mxu0 %v1161
      %v1515 = vpop.f32.mrb[0].mxu0
      %v1516 = vadd.f32 0.0, %v1515
      %v1517 = vpop.f32.mrb[0].mxu0
      %1518 = vmatprep.mubr.f32.mxu0 0.0
      %1519 = vmatmul.mubr.f32.gmra.mrb[0].mxu0 %v1162
      %v1520 = vpop.f32.mrb[0].mxu0
      %v1521 = vadd.f32 0.0, %v1520
      %v1522 = vpop.f32.mrb[0].mxu0
      %1523 = vmatprep.mubr.f32.mxu0 0.0
      %1524 = vmatmul.mubr.f32.gmra.mrb[0].mxu0 %v1163
      %v1525 = vpop.f32.mrb[0].mxu0
      %v1526 = vadd.f32 0.0, %v1525
      %v1527 = vpop.f32.mrb[0].mxu0
      %1528 = vmatprep.mubr.f32.mxu0 0.0
      %1529 = vmatmul.mubr.f32.gmra.mrb[0].mxu0 %v1164
      %v1530 = vpop.f32.mrb[0].mxu0
      %v1531 = vadd.f32 0.0, %v1530
      %v1532 = vpop.f32.mrb[0].mxu0
      %1533 = vmatprep.mubr.f32.mxu0 0.0
      %1534 = vmatmul.mubr.f32.gmra.mrb[0].mxu0 %v1165
      %v1535 = vpop.f32.mrb[0].mxu0
      %v1536 = vadd.f32 0.0, %v1535
      %v1537 = vpop.f32.mrb[0].mxu0
      %1538 = vmatprep.mubr.f32.mxu0 0.0
      %1539 = vmatmul.mubr.f32.gmra.mrb[0].mxu0 %v1166
      %v1540 = vpop.f32.mrb[0].mxu0
      %v1541 = vadd.f32 0.0, %v1540
      %v1542 = vpop.f32.mrb[0].mxu0
      %1543 = vmatprep.mubr.f32.mxu0 0.0
      %1544 = vmatmul.mubr.f32.gmra.mrb[0].mxu0 %v1167
      %v1545 = vpop.f32.mrb[0].mxu0
      %v1546 = vadd.f32 0.0, %v1545
      %v1547 = vpop.f32.mrb[0].mxu0
      %1548 = vmatprep.mubr.f32.mxu0 0.0
      %1549 = vmatmul.mubr.f32.gmra.mrb[0].mxu0 %v1168
      %v1550 = vpop.f32.mrb[0].mxu0
      %v1551 = vadd.f32 0.0, %v1550
      %v1552 = vpop.f32.mrb[0].mxu0
      %1553 = vmatprep.mubr.f32.mxu0 0.0
      %1554 = vmatmul.mubr.f32.gmra.mrb[0].mxu0 %v1169
      %v1555 = vpop.f32.mrb[0].mxu0
      %v1556 = vadd.f32 0.0, %v1555
      %v1557 = vpop.f32.mrb[0].mxu0
      %1558 = vmatprep.mubr.f32.mxu0 0.0
      %1559 = vmatmul.mubr.f32.gmra.mrb[0].mxu0 %v1170
      %v1560 = vpop.f32.mrb[0].mxu0
      %v1561 = vadd.f32 0.0, %v1560
      %v1562 = vpop.f32.mrb[0].mxu0
      %1563 = vmatprep.mubr.f32.mxu0 0.0
      %1564 = vmatmul.mubr.f32.gmra.mrb[0].mxu0 %v1171
      %v1565 = vpop.f32.mrb[0].mxu0
      %v1566 = vadd.f32 0.0, %v1565
      %v1567 = vpop.f32.mrb[0].mxu0
      %1568 = vmatprep.mubr.f32.mxu0 0.0
      %1569 = vmatmul.mubr.f32.gmra.mrb[0].mxu0 %v1172
      %v1570 = vpop.f32.mrb[0].mxu0
      %v1571 = vadd.f32 0.0, %v1570
      %v1572 = vpop.f32.mrb[0].mxu0
      %1573 = vdwg.mxu0
      %1574 = vst.msk [vmem:[%s199] sm:$0xff] %vm273, %v1256
      %1575 = vst.msk [vmem:[%s199 + $0x8] sm:$0xff] %vm273, %v1261
      %1576 = vst.msk [vmem:[%s199 + $0x10] sm:$0xff] %vm273, %v1266
      %1577 = vst.msk [vmem:[%s199 + $0x18] sm:$0xff] %vm273, %v1271
      %1578 = vst.msk [vmem:[%s199 + $0x20] sm:$0xff] %vm273, %v1276
      %1579 = vst.msk [vmem:[%s199 + $0x28] sm:$0xff] %vm273, %v1281
      %1580 = vst.msk [vmem:[%s199 + $0x30] sm:$0xff] %vm273, %v1286
      %1581 = vst.msk [vmem:[%s199 + $0x38] sm:$0xff] %vm273, %v1291
      %1582 = vst.msk [vmem:[%s199 + $0x40] sm:$0xff] %vm273, %v1296
      %1583 = vst.msk [vmem:[%s199 + $0x48] sm:$0xff] %vm273, %v1301
      %1584 = vst.msk [vmem:[%s199 + $0x50] sm:$0xff] %vm273, %v1306
      %1585 = vst.msk [vmem:[%s199 + $0x58] sm:$0xff] %vm273, %v1311
      %1586 = vst.msk [vmem:[%s199 + $0x60] sm:$0xff] %vm273, %v1316
      %1587 = vst.msk [vmem:[%s199 + $0x68] sm:$0xff] %vm273, %v1321
      %1588 = vst.msk [vmem:[%s199 + $0x70] sm:$0xff] %vm273, %v1326
      %1589 = vst.msk [vmem:[%s199 + $0x78] sm:$0xff] %vm273, %v1331
      %1590 = vst.msk [vmem:[%s199 + $0x80] sm:$0xff] %vm273, %v1336
      %1591 = vst.msk [vmem:[%s199 + $0x88] sm:$0xff] %vm273, %v1341
      %1592 = vst.msk [vmem:[%s199 + $0x90] sm:$0xff] %vm273, %v1346
      %1593 = vst.msk [vmem:[%s199 + $0x98] sm:$0xff] %vm273, %v1351
      %1594 = vst.msk [vmem:[%s199 + $0xa0] sm:$0xff] %vm273, %v1356
      %1595 = vst.msk [vmem:[%s199 + $0xa8] sm:$0xff] %vm273, %v1361
      %1596 = vst.msk [vmem:[%s199 + $0xb0] sm:$0xff] %vm273, %v1366
      %1597 = vst.msk [vmem:[%s199 + $0xb8] sm:$0xff] %vm273, %v1371
      %1598 = vst.msk [vmem:[%s199 + $0xc0] sm:$0xff] %vm273, %v1376
      %1599 = vst.msk [vmem:[%s199 + $0xc8] sm:$0xff] %vm273, %v1381
      %1600 = vst.msk [vmem:[%s199 + $0xd0] sm:$0xff] %vm273, %v1386
      %1601 = vst.msk [vmem:[%s199 + $0xd8] sm:$0xff] %vm273, %v1391
      %1602 = vst.msk [vmem:[%s199 + $0xe0] sm:$0xff] %vm273, %v1396
      %1603 = vst.msk [vmem:[%s199 + $0xe8] sm:$0xff] %vm273, %v1401
      %1604 = vst.msk [vmem:[%s199 + $0xf0] sm:$0xff] %vm273, %v1406
      %1605 = vst.msk [vmem:[%s199 + $0xf8] sm:$0xff] %vm273, %v1411
      %1606 = vst.msk [vmem:[%s199 + $0x100] sm:$0xff] %vm273, %v1416
      %1607 = vst.msk [vmem:[%s199 + $0x108] sm:$0xff] %vm273, %v1421
      %1608 = vst.msk [vmem:[%s199 + $0x110] sm:$0xff] %vm273, %v1426
      %1609 = vst.msk [vmem:[%s199 + $0x118] sm:$0xff] %vm273, %v1431
      %1610 = vst.msk [vmem:[%s199 + $0x120] sm:$0xff] %vm273, %v1436
      %1611 = vst.msk [vmem:[%s199 + $0x128] sm:$0xff] %vm273, %v1441
      %1612 = vst.msk [vmem:[%s199 + $0x130] sm:$0xff] %vm273, %v1446
      %1613 = vst.msk [vmem:[%s199 + $0x138] sm:$0xff] %vm273, %v1451
      %1614 = vst.msk [vmem:[%s199 + $0x140] sm:$0xff] %vm273, %v1456
      %1615 = vst.msk [vmem:[%s199 + $0x148] sm:$0xff] %vm273, %v1461
      %1616 = vst.msk [vmem:[%s199 + $0x150] sm:$0xff] %vm273, %v1466
      %1617 = vst.msk [vmem:[%s199 + $0x158] sm:$0xff] %vm273, %v1471
      %1618 = vst.msk [vmem:[%s199 + $0x160] sm:$0xff] %vm273, %v1476
      %1619 = vst.msk [vmem:[%s199 + $0x168] sm:$0xff] %vm273, %v1481
      %1620 = vst.msk [vmem:[%s199 + $0x170] sm:$0xff] %vm273, %v1486
      %1621 = vst.msk [vmem:[%s199 + $0x178] sm:$0xff] %vm273, %v1491
      %1622 = vst.msk [vmem:[%s199 + $0x180] sm:$0xff] %vm273, %v1496
      %1623 = vst.msk [vmem:[%s199 + $0x188] sm:$0xff] %vm273, %v1501
      %1624 = vst.msk [vmem:[%s199 + $0x190] sm:$0xff] %vm273, %v1506
      %1625 = vst.msk [vmem:[%s199 + $0x198] sm:$0xff] %vm273, %v1511
      %1626 = vst.msk [vmem:[%s199 + $0x1a0] sm:$0xff] %vm273, %v1516
      %1627 = vst.msk [vmem:[%s199 + $0x1a8] sm:$0xff] %vm273, %v1521
      %1628 = vst.msk [vmem:[%s199 + $0x1b0] sm:$0xff] %vm273, %v1526
      %1629 = vst.msk [vmem:[%s199 + $0x1b8] sm:$0xff] %vm273, %v1531
      %1630 = vst.msk [vmem:[%s199 + $0x1c0] sm:$0xff] %vm273, %v1536
      %1631 = vst.msk [vmem:[%s199 + $0x1c8] sm:$0xff] %vm273, %v1541
      %1632 = vst.msk [vmem:[%s199 + $0x1d0] sm:$0xff] %vm273, %v1546
      %1633 = vst.msk [vmem:[%s199 + $0x1d8] sm:$0xff] %vm273, %v1551
      %1634 = vst.msk [vmem:[%s199 + $0x1e0] sm:$0xff] %vm273, %v1556
      %1635 = vst.msk [vmem:[%s199 + $0x1e8] sm:$0xff] %vm273, %v1561
      %1636 = vst.msk [vmem:[%s199 + $0x1f0] sm:$0xff] %vm273, %v1566
      %1637 = vst.msk [vmem:[%s199 + $0x1f8] sm:$0xff] %vm273, %v1571
      %s1638 = smul.u32 64, %s15
      %p1639 = scmp.lt.s32.totalorder %s1638, 127
      %s1640 = scalar_select %p1639, %s1638, 127
      %s1641 = smul.addr %s1640, 8
      %s1642 = scalar_lea.vmem %s4, %s1641
      // Predicated region
      $region37: #{tpu_custom_call.1} parent=35 // pred_check
        %p1643 = pneg %p122
      $region38: #{tpu_custom_call.1} parent=35 // pred_check_branch
        %1645 = sbr.rel (%p1643) target = $region40
      $region39: #{tpu_custom_call.1} parent=35 // pred_region
        %s1646 = smul.u32 64, %s15
      $region40: #{tpu_custom_call.1} parent=35 // pred_fallthru
        _
    $region36: #{tpu_custom_call.1} parent=5 // pred_fallthru
      _
    %p1647 = scmp.le.s32.totalorder 2, %s10
    // Predicated region
    $region41: #{tpu_custom_call.1} parent=5 // pred_check
      %p1648 = pneg %p1647
    $region42: #{tpu_custom_call.1} parent=5 // pred_check_branch
      %1650 = sbr.rel (%p1648) target = $region44
    $region43: #{tpu_custom_call.1} parent=5 // pred_region
      %s1651 = ssub.s32 %s10, 2
      // Predicated region
      $region45: #{tpu_custom_call.1} parent=43 // pred_check
        %p1652 = pneg %p128
      $region46: #{tpu_custom_call.1} parent=43 // pred_check_branch
        %1654 = sbr.rel (%p1652) target = $region48
      $region47: #{tpu_custom_call.1} parent=43 // pred_region
        %s1655 = smul.u32 64, %s16
        %p1656 = scmp.lt.s32.totalorder %s1655, 127
        %s1657 = scalar_select %p1656, %s1655, 127
        %s1658 = smul.addr %s1657, 8
        %s1659 = scalar_lea.vmem %s4, %s1658
      $region48: #{tpu_custom_call.1} parent=43 // pred_fallthru
        _
    $region44: #{tpu_custom_call.1} parent=5 // pred_fallthru
      _
  $region6: #{tpu_custom_call.1} parent=0 // loop_footer
    %s14 = sadd.s32 1, %s10
  $region7: #{tpu_custom_call.1} parent=0 // loop_footer_branch
    %9 = sbr.rel target = $region3
  $region8: #{tpu_custom_call.1} parent=0 // loop_exit
    _

// kernel: tpu_custom_call.1
$region0: #{tpu_custom_call.1}
  #allocation0 [shape = 'u32[]', space=smem, size = 0x4, offset = 0x4, fixed_abs, tag = 'smem constant byte address 0x4 - core index']
  #allocation1 [shape = 'u32[144,128]{1,0:T(1,128)}', space=vmem, size = 0x12000, scoped, tag = 'internal scratch']
  %s0 = inlined_call_operand.vmem [shape: f32[1024,8], index: 0, kind: input, shape index: {}]
  %s1 = inlined_call_operand.vmem [shape: f32[8,128], index: 1, kind: input, shape index: {}]
  %s2 = inlined_call_operand.vmem [shape: f32[128,8], index: 2, kind: input, shape index: {}]
  %s3 = inlined_call_operand.vmem [shape: f32[1,128], index: 3, kind: input, shape index: {}]
  %s4 = inlined_call_operand.vmem [shape: f32[1024,8], index: 4, kind: output, shape index: {}]
  %s5 = sld [smem:[#allocation0]]
  $region49: #{tpu_custom_call.1} parent=0
    _
  %s7 = ssub.s32 1, %s5
  %s8 = scalar_select 0, %s7, %s5
  loop: start=0, step=1, limit=4
  $region2: #{tpu_custom_call.1} parent=0 // loop_pre_header
    _
  $region3: #{tpu_custom_call.1} parent=0 // loop_header
    %s10 = sphi 0, %s14
    %p11 = scmp.ge.s32.totalorder %s10, 4
    %s20 = sphi 0, %s22
    %s23 = sphi 0, %s20
    %s24 = sphi 0, %s23
    %s40 = sphi 0, %s24
    %s44 = sphi 0, %s44
    %s46 = sphi 0, %s44
    %s47 = sphi 0, %s46
    %s61 = sphi 0, %s47
    %s65 = sphi 0, %s65
    %s67 = sphi 0, %s65
    %s68 = sphi 0, %s67
    %s82 = sphi 0, %s68
    %s86 = sphi 0, %s86
    %s88 = sphi 0, %s86
    %s89 = sphi 0, %s88
    %s103 = sphi 0, %s89
    %s109 = sphi 0, %s111
    %s112 = sphi 0, %s109
    %s113 = sphi 0, %s112
    %s129 = sphi 0, %s113
  $region4: #{tpu_custom_call.1} parent=0 // loop_header_branch
    %13 = sbr.rel (%p11) target = $region8
  $region5: #{tpu_custom_call.1} parent=0 // loop_body
    %s15 = ssub.s32 %s10, 1
    %s16 = ssub.s32 %s10, 2
    %s17 = sadd.s32 %s10, 1
    %s18 = ssub.s32 %s10, %s17
    %p19 = scmp.eq.s32.totalorder %s18, 0
    %s21 = sadd.s32 %s20, 1
    %s22 = scalar_select %p19, %s20, %s21
    %p25 = pneg %p19
    %p26 = scmp.eq.s32.totalorder %s10, 1
    %p27 = por %p25, %p26
    %p28 = scmp.ne.s32.totalorder %s20, %s23
    %p29 = scmp.eq.s32.totalorder %s10, 0
    %p30 = por %p28, %p29
    %p31 = scmp.ne.s32.totalorder %s20, %s23
    %p32 = scmp.eq.s32.totalorder %s15, 1
    %p33 = por %p31, %p32
    %p34 = scmp.ne.s32.totalorder %s23, %s24
    %p35 = scmp.eq.s32.totalorder %s15, 0
    %p36 = por %p34, %p35
    %p37 = scmp.ne.s32.totalorder %s23, %s24
    %p38 = scmp.eq.s32.totalorder %s16, 1
    %p39 = por %p37, %p38
    %p41 = scmp.ne.s32.totalorder %s24, %s40
    %p42 = scmp.eq.s32.totalorder %s16, 0
    %p43 = por %p41, %p42
    %s45 = sadd.s32 %s44, 1
    %p48 = scmp.eq.s32.totalorder %s10, 1
    %p49 = scmp.ne.s32.totalorder %s44, %s46
    %p50 = scmp.eq.s32.totalorder %s10, 0
    %p51 = por %p49, %p50
    %p52 = scmp.ne.s32.totalorder %s44, %s46
    %p53 = scmp.eq.s32.totalorder %s15, 1
    %p54 = por %p52, %p53
    %p55 = scmp.ne.s32.totalorder %s46, %s47
    %p56 = scmp.eq.s32.totalorder %s15, 0
    %p57 = por %p55, %p56
    %p58 = scmp.ne.s32.totalorder %s46, %s47
    %p59 = scmp.eq.s32.totalorder %s16, 1
    %p60 = por %p58, %p59
    %p62 = scmp.ne.s32.totalorder %s47, %s61
    %p63 = scmp.eq.s32.totalorder %s16, 0
    %p64 = por %p62, %p63
    %s66 = sadd.s32 %s65, 1
    %p69 = scmp.eq.s32.totalorder %s10, 1
    %p70 = scmp.ne.s32.totalorder %s65, %s67
    %p71 = scmp.eq.s32.totalorder %s10, 0
    %p72 = por %p70, %p71
    %p73 = scmp.ne.s32.totalorder %s65, %s67
    %p74 = scmp.eq.s32.totalorder %s15, 1
    %p75 = por %p73, %p74
    %p76 = scmp.ne.s32.totalorder %s67, %s68
    %p77 = scmp.eq.s32.totalorder %s15, 0
    %p78 = por %p76, %p77
    %p79 = scmp.ne.s32.totalorder %s67, %s68
    %p80 = scmp.eq.s32.totalorder %s16, 1
    %p81 = por %p79, %p80
    %p83 = scmp.ne.s32.totalorder %s68, %s82
    %p84 = scmp.eq.s32.totalorder %s16, 0
    %p85 = por %p83, %p84
    %s87 = sadd.s32 %s86, 1
    %p90 = scmp.eq.s32.totalorder %s10, 1
    %p91 = scmp.ne.s32.totalorder %s86, %s88
    %p92 = scmp.eq.s32.totalorder %s10, 0
    %p93 = por %p91, %p92
    %p94 = scmp.ne.s32.totalorder %s86, %s88
    %p95 = scmp.eq.s32.totalorder %s15, 1
    %p96 = por %p94, %p95
    %p97 = scmp.ne.s32.totalorder %s88, %s89
    %p98 = scmp.eq.s32.totalorder %s15, 0
    %p99 = por %p97, %p98
    %p100 = scmp.ne.s32.totalorder %s88, %s89
    %p101 = scmp.eq.s32.totalorder %s16, 1
    %p102 = por %p100, %p101
    %p104 = scmp.ne.s32.totalorder %s89, %s103
    %p105 = scmp.eq.s32.totalorder %s16, 0
    %p106 = por %p104, %p105
    %s107 = ssub.s32 %s10, %s17
    %p108 = scmp.eq.s32.totalorder %s107, 0
    %s110 = sadd.s32 %s109, 1
    %s111 = scalar_select %p108, %s109, %s110
    %p114 = pneg %p108
    %p115 = scmp.eq.s32.totalorder %s10, 1
    %p116 = por %p114, %p115
    %p117 = scmp.ne.s32.totalorder %s109, %s112
    %p118 = scmp.eq.s32.totalorder %s10, 0
    %p119 = por %p117, %p118
    %p120 = scmp.ne.s32.totalorder %s109, %s112
    %p121 = scmp.eq.s32.totalorder %s15, 1
    %p122 = por %p120, %p121
    %p123 = scmp.ne.s32.totalorder %s112, %s113
    %p124 = scmp.eq.s32.totalorder %s15, 0
    %p125 = por %p123, %p124
    %p126 = scmp.ne.s32.totalorder %s112, %s113
    %p127 = scmp.eq.s32.totalorder %s16, 1
    %p128 = por %p126, %p127
    %p130 = scmp.ne.s32.totalorder %s113, %s129
    %p131 = scmp.eq.s32.totalorder %s16, 0
    %p132 = por %p130, %p131
    %p133 = scmp.le.s32.totalorder 1, %s10
    %p134 = scmp.lt.s32.totalorder %s10, 3
    %p135 = pnand %p133, %p134
    %p136 = pneg %p135
    // Predicated region
    $region9: #{tpu_custom_call.1} parent=5 // pred_check
      _
    $region10: #{tpu_custom_call.1} parent=5 // pred_check_branch
      %138 = sbr.rel (%p135) target = $region12
    $region11: #{tpu_custom_call.1} parent=5 // pred_region
      %s139 = ssub.s32 %s10, 1
      // Predicated region
      $region13: #{tpu_custom_call.1} parent=11 // pred_check
        %p140 = pneg %p57
      $region14: #{tpu_custom_call.1} parent=11 // pred_check_branch
        %142 = sbr.rel (%p140) target = $region16
      $region15: #{tpu_custom_call.1} parent=11 // pred_region
        _
      $region16: #{tpu_custom_call.1} parent=11 // pred_fallthru
        _
      // Predicated region
      $region17: #{tpu_custom_call.1} parent=11 // pred_check
        %p143 = pneg %p78
      $region18: #{tpu_custom_call.1} parent=11 // pred_check_branch
        %145 = sbr.rel (%p143) target = $region20
      $region19: #{tpu_custom_call.1} parent=11 // pred_region
        _
      $region20: #{tpu_custom_call.1} parent=11 // pred_fallthru
        _
      // Predicated region
      $region21: #{tpu_custom_call.1} parent=11 // pred_check
        %p146 = pneg %p99
      $region22: #{tpu_custom_call.1} parent=11 // pred_check_branch
        %148 = sbr.rel (%p146) target = $region24
      $region23: #{tpu_custom_call.1} parent=11 // pred_region
        _
      $region24: #{tpu_custom_call.1} parent=11 // pred_fallthru
        _
    $region12: #{tpu_custom_call.1} parent=5 // pred_fallthru
      _
    %p149 = scmp.lt.s32.totalorder %s10, 2
    // Predicated region
    $region25: #{tpu_custom_call.1} parent=5 // pred_check
      %p150 = pneg %p149
    $region26: #{tpu_custom_call.1} parent=5 // pred_check_branch
      %152 = sbr.rel (%p150) target = $region28
    $region27: #{tpu_custom_call.1} parent=5 // pred_region
      // Predicated region
      $region29: #{tpu_custom_call.1} parent=27 // pred_check
        %p153 = pneg %p30
      $region30: #{tpu_custom_call.1} parent=27 // pred_check_branch
        %155 = sbr.rel (%p153) target = $region32
      $region31: #{tpu_custom_call.1} parent=27 // pred_region
        %s156 = smul.u32 64, %s10
        %p157 = scmp.lt.s32.totalorder %s156, 127
        %s158 = scalar_select %p157, %s156, 127
        %s159 = smul.addr %s158, 8
        %s160 = scalar_lea.vmem %s0, %s159
        %s161 = smul.u32 64, %s10
      $region32: #{tpu_custom_call.1} parent=27 // pred_fallthru
        _
    $region28: #{tpu_custom_call.1} parent=5 // pred_fallthru
      _
    %p162 = scmp.le.s32.totalorder 1, %s10
    %p163 = scmp.lt.s32.totalorder %s10, 3
    %p164 = pnand %p162, %p163
    %p165 = pneg %p164
    // Predicated region
    $region33: #{tpu_custom_call.1} parent=5 // pred_check
      _
    $region34: #{tpu_custom_call.1} parent=5 // pred_check_branch
      %167 = sbr.rel (%p164) target = $region36
    $region35: #{tpu_custom_call.1} parent=5 // pred_region
      %s168 = ssub.s32 %s10, 1
      %s169 = smul.u32 64, %s15
      %p170 = scmp.lt.s32.totalorder %s169, 127
      %s171 = scalar_select %p170, %s169, 127
      %s172 = smul.addr %s171, 8
      %s173 = scalar_lea.vmem %s0, %s172
      %p174 = pneg %p36
      %p175 = pneg %p33
      %p176 = pneg %p57
      %p177 = pneg %p54
      %p178 = pneg %p78
      %p179 = pneg %p75
      %p180 = pneg %p99
      %p181 = pneg %p96
      %p182 = pneg %p125
      %p183 = pneg %p122
      %s184 = smul.u32 64, %s15
      %p185 = scmp.lt.s32.totalorder %s184, 127
      %s186 = scalar_select %p185, %s184, 127
      %s187 = smul.addr %s186, 8
      %s188 = scalar_lea.vmem %s4, %s187
      %s189 = smul.u32 64, %s15
      %p190 = scmp.lt.s32.totalorder %s189, 127
      %s191 = scalar_select %p190, %s189, 127
      %s192 = smul.addr %s191, 8
      %s193 = scalar_lea.vmem %s0, %s192
      %s194 = smul.u32 64, %s15
      %s195 = smul.u32 64, %s15
      %p196 = scmp.lt.s32.totalorder %s195, 127
      %s197 = scalar_select %p196, %s195, 127
      %s198 = smul.addr %s197, 8
      %s199 = scalar_lea.vmem %s4, %s198
      %s200 = smul.u32 64, %s15
      %v201 = vld [vmem:[%s193] sm:$0xff]
      %v202 = vld [vmem:[%s193 + $0x8] sm:$0xff]
      %v203 = vld [vmem:[%s193 + $0x10] sm:$0xff]
      %v204 = vld [vmem:[%s193 + $0x18] sm:$0xff]
      %v205 = vld [vmem:[%s193 + $0x20] sm:$0xff]
      %v206 = vld [vmem:[%s193 + $0x28] sm:$0xff]
      %v207 = vld [vmem:[%s193 + $0x30] sm:$0xff]
      %v208 = vld [vmem:[%s193 + $0x38] sm:$0xff]
      %v209 = vld [vmem:[%s193 + $0x40] sm:$0xff]
      %v210 = vld [vmem:[%s193 + $0x48] sm:$0xff]
      %v211 = vld [vmem:[%s193 + $0x50] sm:$0xff]
      %v212 = vld [vmem:[%s193 + $0x58] sm:$0xff]
      %v213 = vld [vmem:[%s193 + $0x60] sm:$0xff]
      %v214 = vld [vmem:[%s193 + $0x68] sm:$0xff]
      %v215 = vld [vmem:[%s193 + $0x70] sm:$0xff]
      %v216 = vld [vmem:[%s193 + $0x78] sm:$0xff]
      %v217 = vld [vmem:[%s193 + $0x80] sm:$0xff]
      %v218 = vld [vmem:[%s193 + $0x88] sm:$0xff]
      %v219 = vld [vmem:[%s193 + $0x90] sm:$0xff]
      %v220 = vld [vmem:[%s193 + $0x98] sm:$0xff]
      %v221 = vld [vmem:[%s193 + $0xa0] sm:$0xff]
      %v222 = vld [vmem:[%s193 + $0xa8] sm:$0xff]
      %v223 = vld [vmem:[%s193 + $0xb0] sm:$0xff]
      %v224 = vld [vmem:[%s193 + $0xb8] sm:$0xff]
      %v225 = vld [vmem:[%s193 + $0xc0] sm:$0xff]
      %v226 = vld [vmem:[%s193 + $0xc8] sm:$0xff]
      %v227 = vld [vmem:[%s193 + $0xd0] sm:$0xff]
      %v228 = vld [vmem:[%s193 + $0xd8] sm:$0xff]
      %v229 = vld [vmem:[%s193 + $0xe0] sm:$0xff]
      %v230 = vld [vmem:[%s193 + $0xe8] sm:$0xff]
      %v231 = vld [vmem:[%s193 + $0xf0] sm:$0xff]
      %v232 = vld [vmem:[%s193 + $0xf8] sm:$0xff]
      %v233 = vld [vmem:[%s193 + $0x100] sm:$0xff]
      %v234 = vld [vmem:[%s193 + $0x108] sm:$0xff]
      %v235 = vld [vmem:[%s193 + $0x110] sm:$0xff]
      %v236 = vld [vmem:[%s193 + $0x118] sm:$0xff]
      %v237 = vld [vmem:[%s193 + $0x120] sm:$0xff]
      %v238 = vld [vmem:[%s193 + $0x128] sm:$0xff]
      %v239 = vld [vmem:[%s193 + $0x130] sm:$0xff]
      %v240 = vld [vmem:[%s193 + $0x138] sm:$0xff]
      %v241 = vld [vmem:[%s193 + $0x140] sm:$0xff]
      %v242 = vld [vmem:[%s193 + $0x148] sm:$0xff]
      %v243 = vld [vmem:[%s193 + $0x150] sm:$0xff]
      %v244 = vld [vmem:[%s193 + $0x158] sm:$0xff]
      %v245 = vld [vmem:[%s193 + $0x160] sm:$0xff]
      %v246 = vld [vmem:[%s193 + $0x168] sm:$0xff]
      %v247 = vld [vmem:[%s193 + $0x170] sm:$0xff]
      %v248 = vld [vmem:[%s193 + $0x178] sm:$0xff]
      %v249 = vld [vmem:[%s193 + $0x180] sm:$0xff]
      %v250 = vld [vmem:[%s193 + $0x188] sm:$0xff]
      %v251 = vld [vmem:[%s193 + $0x190] sm:$0xff]
      %v252 = vld [vmem:[%s193 + $0x198] sm:$0xff]
      %v253 = vld [vmem:[%s193 + $0x1a0] sm:$0xff]
      %v254 = vld [vmem:[%s193 + $0x1a8] sm:$0xff]
      %v255 = vld [vmem:[%s193 + $0x1b0] sm:$0xff]
      %v256 = vld [vmem:[%s193 + $0x1b8] sm:$0xff]
      %v257 = vld [vmem:[%s193 + $0x1c0] sm:$0xff]
      %v258 = vld [vmem:[%s193 + $0x1c8] sm:$0xff]
      %v259 = vld [vmem:[%s193 + $0x1d0] sm:$0xff]
      %v260 = vld [vmem:[%s193 + $0x1d8] sm:$0xff]
      %v261 = vld [vmem:[%s193 + $0x1e0] sm:$0xff]
      %v262 = vld [vmem:[%s193 + $0x1e8] sm:$0xff]
      %v263 = vld [vmem:[%s193 + $0x1f0] sm:$0xff]
      %v264 = vld [vmem:[%s193 + $0x1f8] sm:$0xff]
      %v265 = vld [vmem:[%s1] sm:$0xff]
      %v266 = vld [vmem:[%s3] sm:$0x1]
      %v268 = vlaneseq
      %v269 = vshrl.u32 %v268, 7
      %v270 = vsub.s32 0, %v269
      %v271 = vrot.slane %v266, %v270
      %vm273 = vcmask 64512
      %v275 = vsel %vm273, %v201, 0
      %v278 = vsel %vm273, %v202, 0
      %v281 = vsel %vm273, %v203, 0
      %v284 = vsel %vm273, %v204, 0
      %v287 = vsel %vm273, %v205, 0
      %v290 = vsel %vm273, %v206, 0
      %v293 = vsel %vm273, %v207, 0
      %v296 = vsel %vm273, %v208, 0
      %v299 = vsel %vm273, %v209, 0
      %v302 = vsel %vm273, %v210, 0
      %v305 = vsel %vm273, %v211, 0
      %v308 = vsel %vm273, %v212, 0
      %v311 = vsel %vm273, %v213, 0
      %v314 = vsel %vm273, %v214, 0
      %v317 = vsel %vm273, %v215, 0
      %v320 = vsel %vm273, %v216, 0
      %v323 = vsel %vm273, %v217, 0
      %v326 = vsel %vm273, %v218, 0
      %v329 = vsel %vm273, %v219, 0
      %v332 = vsel %vm273, %v220, 0
      %v335 = vsel %vm273, %v221, 0
      %v338 = vsel %vm273, %v222, 0
      %v341 = vsel %vm273, %v223, 0
      %v344 = vsel %vm273, %v224, 0
      %v347 = vsel %vm273, %v225, 0
      %v350 = vsel %vm273, %v226, 0
      %v353 = vsel %vm273, %v227, 0
      %v356 = vsel %vm273, %v228, 0
      %v359 = vsel %vm273, %v229, 0
      %v362 = vsel %vm273, %v230, 0
      %v365 = vsel %vm273, %v231, 0
      %v368 = vsel %vm273, %v232, 0
      %v371 = vsel %vm273, %v233, 0
      %v374 = vsel %vm273, %v234, 0
      %v377 = vsel %vm273, %v235, 0
      %v380 = vsel %vm273, %v236, 0
      %v383 = vsel %vm273, %v237, 0
      %v386 = vsel %vm273, %v238, 0
      %v389 = vsel %vm273, %v239, 0
      %v392 = vsel %vm273, %v240, 0
      %v395 = vsel %vm273, %v241, 0
      %v398 = vsel %vm273, %v242, 0
      %v401 = vsel %vm273, %v243, 0
      %v404 = vsel %vm273, %v244, 0
      %v407 = vsel %vm273, %v245, 0
      %v410 = vsel %vm273, %v246, 0
      %v413 = vsel %vm273, %v247, 0
      %v416 = vsel %vm273, %v248, 0
      %v419 = vsel %vm273, %v249, 0
      %v422 = vsel %vm273, %v250, 0
      %v425 = vsel %vm273, %v251, 0
      %v428 = vsel %vm273, %v252, 0
      %v431 = vsel %vm273, %v253, 0
      %v434 = vsel %vm273, %v254, 0
      %v437 = vsel %vm273, %v255, 0
      %v440 = vsel %vm273, %v256, 0
      %v443 = vsel %vm273, %v257, 0
      %v446 = vsel %vm273, %v258, 0
      %v449 = vsel %vm273, %v259, 0
      %v452 = vsel %vm273, %v260, 0
      %v455 = vsel %vm273, %v261, 0
      %v458 = vsel %vm273, %v262, 0
      %v461 = vsel %vm273, %v263, 0
      %v464 = vsel %vm273, %v264, 0
      %466 = vmatprep.subr.mxu0 0.0
      %467 = vmatpush1.msra.mxu0 %v265
      %468 = vmatprep.subr.mxu0 0.0
      %469 = vmatpush1.msra.mxu0 0.0
      %470 = vmatprep.subr.mxu0 0.0
      %471 = vmatpush1.msra.mxu0 0.0
      %472 = vmatprep.subr.mxu0 0.0
      %473 = vmatpush1.msra.mxu0 0.0
      %474 = vmatprep.subr.mxu0 0.0
      %475 = vmatpush1.msra.mxu0 0.0
      %476 = vmatprep.subr.mxu0 0.0
      %477 = vmatpush1.msra.mxu0 0.0
      %478 = vmatprep.subr.mxu0 0.0
      %479 = vmatpush1.msra.mxu0 0.0
      %480 = vmatprep.subr.mxu0 0.0
      %481 = vmatpush1.msra.mxu0 0.0
      %482 = vmatprep.subr.mxu0 0.0
      %483 = vmatpush1.msra.mxu0 0.0
      %484 = vmatprep.subr.mxu0 0.0
      %485 = vmatpush1.msra.mxu0 0.0
      %486 = vmatprep.subr.mxu0 0.0
      %487 = vmatpush1.msra.mxu0 0.0
      %488 = vmatprep.subr.mxu0 0.0
      %489 = vmatpush1.msra.mxu0 0.0
      %490 = vmatprep.subr.mxu0 0.0
      %491 = vmatpush1.msra.mxu0 0.0
      %492 = vmatprep.subr.mxu0 0.0
      %493 = vmatpush1.msra.mxu0 0.0
      %494 = vmatprep.subr.mxu0 0.0
      %495 = vmatpush1.msra.mxu0 0.0
      %496 = vmatprep.subr.mxu0 0.0
      %497 = vmatpush1.msra.mxu0 0.0
      %498 = vmatprep.subr.mxu0 0.0
      %499 = vmatpush1.msra.mxu0 0.0
      %500 = vmatprep.subr.mxu0 0.0
      %501 = vmatpush1.msra.mxu0 0.0
      %502 = vmatprep.subr.mxu0 0.0
      %503 = vmatpush1.msra.mxu0 0.0
      %504 = vmatprep.subr.mxu0 0.0
      %505 = vmatpush1.msra.mxu0 0.0
      %506 = vmatprep.subr.mxu0 0.0
      %507 = vmatpush1.msra.mxu0 0.0
      %508 = vmatprep.subr.mxu0 0.0
      %509 = vmatpush1.msra.mxu0 0.0
      %510 = vmatprep.subr.mxu0 0.0
      %511 = vmatpush1.msra.mxu0 0.0
      %512 = vmatprep.subr.mxu0 0.0
      %513 = vmatpush1.msra.mxu0 0.0
      %514 = vmatprep.subr.mxu0 0.0
      %515 = vmatpush1.msra.mxu0 0.0
      %516 = vmatprep.subr.mxu0 0.0
      %517 = vmatpush1.msra.mxu0 0.0
      %518 = vmatprep.subr.mxu0 0.0
      %519 = vmatpush1.msra.mxu0 0.0
      %520 = vmatprep.subr.mxu0 0.0
      %521 = vmatpush1.msra.mxu0 0.0
      %522 = vmatprep.subr.mxu0 0.0
      %523 = vmatpush1.msra.mxu0 0.0
      %524 = vmatprep.subr.mxu0 0.0
      %525 = vmatpush1.msra.mxu0 0.0
      %526 = vmatprep.subr.mxu0 0.0
      %527 = vmatpush1.msra.mxu0 0.0
      %528 = vmatprep.subr.mxu0 0.0
      %529 = vmatpush1.msra.mxu0 0.0
      %530 = vmatprep.mubr.f32.mxu0 0.0
      %531 = vmatmul.mubr.f32.gmra.mrb[0].mxu0 %v275
      %v532 = vpop.f32.mrb[0].mxu0
      %v533 = vadd.f32 %v271, %v532
      %v534 = vpop.f32.mrb[0].mxu0
      %535 = vmatprep.mubr.f32.mxu0 0.0
      %536 = vmatmul.mubr.f32.gmra.mrb[0].mxu0 %v278
      %v537 = vpop.f32.mrb[0].mxu0
      %v538 = vadd.f32 %v271, %v537
      %v539 = vpop.f32.mrb[0].mxu0
      %540 = vmatprep.mubr.f32.mxu0 0.0
      %541 = vmatmul.mubr.f32.gmra.mrb[0].mxu0 %v281
      %v542 = vpop.f32.mrb[0].mxu0
      %v543 = vadd.f32 %v271, %v542
      %v544 = vpop.f32.mrb[0].mxu0
      %545 = vmatprep.mubr.f32.mxu0 0.0
      %546 = vmatmul.mubr.f32.gmra.mrb[0].mxu0 %v284
      %v547 = vpop.f32.mrb[0].mxu0
      %v548 = vadd.f32 %v271, %v547
      %v549 = vpop.f32.mrb[0].mxu0
      %550 = vmatprep.mubr.f32.mxu0 0.0
      %551 = vmatmul.mubr.f32.gmra.mrb[0].mxu0 %v287
      %v552 = vpop.f32.mrb[0].mxu0
      %v553 = vadd.f32 %v271, %v552
      %v554 = vpop.f32.mrb[0].mxu0
      %555 = vmatprep.mubr.f32.mxu0 0.0
      %556 = vmatmul.mubr.f32.gmra.mrb[0].mxu0 %v290
      %v557 = vpop.f32.mrb[0].mxu0
      %v558 = vadd.f32 %v271, %v557
      %v559 = vpop.f32.mrb[0].mxu0
      %560 = vmatprep.mubr.f32.mxu0 0.0
      %561 = vmatmul.mubr.f32.gmra.mrb[0].mxu0 %v293
      %v562 = vpop.f32.mrb[0].mxu0
      %v563 = vadd.f32 %v271, %v562
      %v564 = vpop.f32.mrb[0].mxu0
      %565 = vmatprep.mubr.f32.mxu0 0.0
      %566 = vmatmul.mubr.f32.gmra.mrb[0].mxu0 %v296
      %v567 = vpop.f32.mrb[0].mxu0
      %v568 = vadd.f32 %v271, %v567
      %v569 = vpop.f32.mrb[0].mxu0
      %570 = vmatprep.mubr.f32.mxu0 0.0
      %571 = vmatmul.mubr.f32.gmra.mrb[0].mxu0 %v299
      %v572 = vpop.f32.mrb[0].mxu0
      %v573 = vadd.f32 %v271, %v572
      %v574 = vpop.f32.mrb[0].mxu0
      %575 = vmatprep.mubr.f32.mxu0 0.0
      %576 = vmatmul.mubr.f32.gmra.mrb[0].mxu0 %v302
      %v577 = vpop.f32.mrb[0].mxu0
      %v578 = vadd.f32 %v271, %v577
      %v579 = vpop.f32.mrb[0].mxu0
      %580 = vmatprep.mubr.f32.mxu0 0.0
      %581 = vmatmul.mubr.f32.gmra.mrb[0].mxu0 %v305
      %v582 = vpop.f32.mrb[0].mxu0
      %v583 = vadd.f32 %v271, %v582
      %v584 = vpop.f32.mrb[0].mxu0
      %585 = vmatprep.mubr.f32.mxu0 0.0
      %586 = vmatmul.mubr.f32.gmra.mrb[0].mxu0 %v308
      %v587 = vpop.f32.mrb[0].mxu0
      %v588 = vadd.f32 %v271, %v587
      %v589 = vpop.f32.mrb[0].mxu0
      %590 = vmatprep.mubr.f32.mxu0 0.0
      %591 = vmatmul.mubr.f32.gmra.mrb[0].mxu0 %v311
      %v592 = vpop.f32.mrb[0].mxu0
      %v593 = vadd.f32 %v271, %v592
      %v594 = vpop.f32.mrb[0].mxu0
      %595 = vmatprep.mubr.f32.mxu0 0.0
      %596 = vmatmul.mubr.f32.gmra.mrb[0].mxu0 %v314
      %v597 = vpop.f32.mrb[0].mxu0
      %v598 = vadd.f32 %v271, %v597
      %v599 = vpop.f32.mrb[0].mxu0
      %600 = vmatprep.mubr.f32.mxu0 0.0
      %601 = vmatmul.mubr.f32.gmra.mrb[0].mxu0 %v317
      %v602 = vpop.f32.mrb[0].mxu0
      %v603 = vadd.f32 %v271, %v602
      %v604 = vpop.f32.mrb[0].mxu0
      %605 = vmatprep.mubr.f32.mxu0 0.0
      %606 = vmatmul.mubr.f32.gmra.mrb[0].mxu0 %v320
      %v607 = vpop.f32.mrb[0].mxu0
      %v608 = vadd.f32 %v271, %v607
      %v609 = vpop.f32.mrb[0].mxu0
      %610 = vmatprep.mubr.f32.mxu0 0.0
      %611 = vmatmul.mubr.f32.gmra.mrb[0].mxu0 %v323
      %v612 = vpop.f32.mrb[0].mxu0
      %v613 = vadd.f32 %v271, %v612
      %v614 = vpop.f32.mrb[0].mxu0
      %615 = vmatprep.mubr.f32.mxu0 0.0
      %616 = vmatmul.mubr.f32.gmra.mrb[0].mxu0 %v326
      %v617 = vpop.f32.mrb[0].mxu0
      %v618 = vadd.f32 %v271, %v617
      %v619 = vpop.f32.mrb[0].mxu0
      %620 = vmatprep.mubr.f32.mxu0 0.0
      %621 = vmatmul.mubr.f32.gmra.mrb[0].mxu0 %v329
      %v622 = vpop.f32.mrb[0].mxu0
      %v623 = vadd.f32 %v271, %v622
      %v624 = vpop.f32.mrb[0].mxu0
      %625 = vmatprep.mubr.f32.mxu0 0.0
      %626 = vmatmul.mubr.f32.gmra.mrb[0].mxu0 %v332
      %v627 = vpop.f32.mrb[0].mxu0
      %v628 = vadd.f32 %v271, %v627
      %v629 = vpop.f32.mrb[0].mxu0
      %630 = vmatprep.mubr.f32.mxu0 0.0
      %631 = vmatmul.mubr.f32.gmra.mrb[0].mxu0 %v335
      %v632 = vpop.f32.mrb[0].mxu0
      %v633 = vadd.f32 %v271, %v632
      %v634 = vpop.f32.mrb[0].mxu0
      %635 = vmatprep.mubr.f32.mxu0 0.0
      %636 = vmatmul.mubr.f32.gmra.mrb[0].mxu0 %v338
      %v637 = vpop.f32.mrb[0].mxu0
      %v638 = vadd.f32 %v271, %v637
      %v639 = vpop.f32.mrb[0].mxu0
      %640 = vmatprep.mubr.f32.mxu0 0.0
      %641 = vmatmul.mubr.f32.gmra.mrb[0].mxu0 %v341
      %v642 = vpop.f32.mrb[0].mxu0
      %v643 = vadd.f32 %v271, %v642
      %v644 = vpop.f32.mrb[0].mxu0
      %645 = vmatprep.mubr.f32.mxu0 0.0
      %646 = vmatmul.mubr.f32.gmra.mrb[0].mxu0 %v344
      %v647 = vpop.f32.mrb[0].mxu0
      %v648 = vadd.f32 %v271, %v647
      %v649 = vpop.f32.mrb[0].mxu0
      %650 = vmatprep.mubr.f32.mxu0 0.0
      %651 = vmatmul.mubr.f32.gmra.mrb[0].mxu0 %v347
      %v652 = vpop.f32.mrb[0].mxu0
      %v653 = vadd.f32 %v271, %v652
      %v654 = vpop.f32.mrb[0].mxu0
      %655 = vmatprep.mubr.f32.mxu0 0.0
      %656 = vmatmul.mubr.f32.gmra.mrb[0].mxu0 %v350
      %v657 = vpop.f32.mrb[0].mxu0
      %v658 = vadd.f32 %v271, %v657
      %v659 = vpop.f32.mrb[0].mxu0
      %660 = vmatprep.mubr.f32.mxu0 0.0
      %661 = vmatmul.mubr.f32.gmra.mrb[0].mxu0 %v353
      %v662 = vpop.f32.mrb[0].mxu0
      %v663 = vadd.f32 %v271, %v662
      %v664 = vpop.f32.mrb[0].mxu0
      %665 = vmatprep.mubr.f32.mxu0 0.0
      %666 = vmatmul.mubr.f32.gmra.mrb[0].mxu0 %v356
      %v667 = vpop.f32.mrb[0].mxu0
      %v668 = vadd.f32 %v271, %v667
      %v669 = vpop.f32.mrb[0].mxu0
      %670 = vmatprep.mubr.f32.mxu0 0.0
      %671 = vmatmul.mubr.f32.gmra.mrb[0].mxu0 %v359
      %v672 = vpop.f32.mrb[0].mxu0
      %v673 = vadd.f32 %v271, %v672
      %v674 = vpop.f32.mrb[0].mxu0
      %675 = vmatprep.mubr.f32.mxu0 0.0
      %676 = vmatmul.mubr.f32.gmra.mrb[0].mxu0 %v362
      %v677 = vpop.f32.mrb[0].mxu0
      %v678 = vadd.f32 %v271, %v677
      %v679 = vpop.f32.mrb[0].mxu0
      %680 = vmatprep.mubr.f32.mxu0 0.0
      %681 = vmatmul.mubr.f32.gmra.mrb[0].mxu0 %v365
      %v682 = vpop.f32.mrb[0].mxu0
      %v683 = vadd.f32 %v271, %v682
      %v684 = vpop.f32.mrb[0].mxu0
      %685 = vmatprep.mubr.f32.mxu0 0.0
      %686 = vmatmul.mubr.f32.gmra.mrb[0].mxu0 %v368
      %v687 = vpop.f32.mrb[0].mxu0
      %v688 = vadd.f32 %v271, %v687
      %v689 = vpop.f32.mrb[0].mxu0
      %690 = vmatprep.mubr.f32.mxu0 0.0
      %691 = vmatmul.mubr.f32.gmra.mrb[0].mxu0 %v371
      %v692 = vpop.f32.mrb[0].mxu0
      %v693 = vadd.f32 %v271, %v692
      %v694 = vpop.f32.mrb[0].mxu0
      %695 = vmatprep.mubr.f32.mxu0 0.0
      %696 = vmatmul.mubr.f32.gmra.mrb[0].mxu0 %v374
      %v697 = vpop.f32.mrb[0].mxu0
      %v698 = vadd.f32 %v271, %v697
      %v699 = vpop.f32.mrb[0].mxu0
      %700 = vmatprep.mubr.f32.mxu0 0.0
      %701 = vmatmul.mubr.f32.gmra.mrb[0].mxu0 %v377
      %v702 = vpop.f32.mrb[0].mxu0
      %v703 = vadd.f32 %v271, %v702
      %v704 = vpop.f32.mrb[0].mxu0
      %705 = vmatprep.mubr.f32.mxu0 0.0
      %706 = vmatmul.mubr.f32.gmra.mrb[0].mxu0 %v380
      %v707 = vpop.f32.mrb[0].mxu0
      %v708 = vadd.f32 %v271, %v707
      %v709 = vpop.f32.mrb[0].mxu0
      %710 = vmatprep.mubr.f32.mxu0 0.0
      %711 = vmatmul.mubr.f32.gmra.mrb[0].mxu0 %v383
      %v712 = vpop.f32.mrb[0].mxu0
      %v713 = vadd.f32 %v271, %v712
      %v714 = vpop.f32.mrb[0].mxu0
      %715 = vmatprep.mubr.f32.mxu0 0.0
      %716 = vmatmul.mubr.f32.gmra.mrb[0].mxu0 %v386
      %v717 = vpop.f32.mrb[0].mxu0
      %v718 = vadd.f32 %v271, %v717
      %v719 = vpop.f32.mrb[0].mxu0
      %720 = vmatprep.mubr.f32.mxu0 0.0
      %721 = vmatmul.mubr.f32.gmra.mrb[0].mxu0 %v389
      %v722 = vpop.f32.mrb[0].mxu0
      %v723 = vadd.f32 %v271, %v722
      %v724 = vpop.f32.mrb[0].mxu0
      %725 = vmatprep.mubr.f32.mxu0 0.0
      %726 = vmatmul.mubr.f32.gmra.mrb[0].mxu0 %v392
      %v727 = vpop.f32.mrb[0].mxu0
      %v728 = vadd.f32 %v271, %v727
      %v729 = vpop.f32.mrb[0].mxu0
      %730 = vmatprep.mubr.f32.mxu0 0.0
      %731 = vmatmul.mubr.f32.gmra.mrb[0].mxu0 %v395
      %v732 = vpop.f32.mrb[0].mxu0
      %v733 = vadd.f32 %v271, %v732
      %v734 = vpop.f32.mrb[0].mxu0
      %735 = vmatprep.mubr.f32.mxu0 0.0
      %736 = vmatmul.mubr.f32.gmra.mrb[0].mxu0 %v398
      %v737 = vpop.f32.mrb[0].mxu0
      %v738 = vadd.f32 %v271, %v737
      %v739 = vpop.f32.mrb[0].mxu0
      %740 = vmatprep.mubr.f32.mxu0 0.0
      %741 = vmatmul.mubr.f32.gmra.mrb[0].mxu0 %v401
      %v742 = vpop.f32.mrb[0].mxu0
      %v743 = vadd.f32 %v271, %v742
      %v744 = vpop.f32.mrb[0].mxu0
      %745 = vmatprep.mubr.f32.mxu0 0.0
      %746 = vmatmul.mubr.f32.gmra.mrb[0].mxu0 %v404
      %v747 = vpop.f32.mrb[0].mxu0
      %v748 = vadd.f32 %v271, %v747
      %v749 = vpop.f32.mrb[0].mxu0
      %750 = vmatprep.mubr.f32.mxu0 0.0
      %751 = vmatmul.mubr.f32.gmra.mrb[0].mxu0 %v407
      %v752 = vpop.f32.mrb[0].mxu0
      %v753 = vadd.f32 %v271, %v752
      %v754 = vpop.f32.mrb[0].mxu0
      %755 = vmatprep.mubr.f32.mxu0 0.0
      %756 = vmatmul.mubr.f32.gmra.mrb[0].mxu0 %v410
      %v757 = vpop.f32.mrb[0].mxu0
      %v758 = vadd.f32 %v271, %v757
      %v759 = vpop.f32.mrb[0].mxu0
      %760 = vmatprep.mubr.f32.mxu0 0.0
      %761 = vmatmul.mubr.f32.gmra.mrb[0].mxu0 %v413
      %v762 = vpop.f32.mrb[0].mxu0
      %v763 = vadd.f32 %v271, %v762
      %v764 = vpop.f32.mrb[0].mxu0
      %765 = vmatprep.mubr.f32.mxu0 0.0
      %766 = vmatmul.mubr.f32.gmra.mrb[0].mxu0 %v416
      %v767 = vpop.f32.mrb[0].mxu0
      %v768 = vadd.f32 %v271, %v767
      %v769 = vpop.f32.mrb[0].mxu0
      %770 = vmatprep.mubr.f32.mxu0 0.0
      %771 = vmatmul.mubr.f32.gmra.mrb[0].mxu0 %v419
      %v772 = vpop.f32.mrb[0].mxu0
      %v773 = vadd.f32 %v271, %v772
      %v774 = vpop.f32.mrb[0].mxu0
      %775 = vmatprep.mubr.f32.mxu0 0.0
      %776 = vmatmul.mubr.f32.gmra.mrb[0].mxu0 %v422
      %v777 = vpop.f32.mrb[0].mxu0
      %v778 = vadd.f32 %v271, %v777
      %v779 = vpop.f32.mrb[0].mxu0
      %780 = vmatprep.mubr.f32.mxu0 0.0
      %781 = vmatmul.mubr.f32.gmra.mrb[0].mxu0 %v425
      %v782 = vpop.f32.mrb[0].mxu0
      %v783 = vadd.f32 %v271, %v782
      %v784 = vpop.f32.mrb[0].mxu0
      %785 = vmatprep.mubr.f32.mxu0 0.0
      %786 = vmatmul.mubr.f32.gmra.mrb[0].mxu0 %v428
      %v787 = vpop.f32.mrb[0].mxu0
      %v788 = vadd.f32 %v271, %v787
      %v789 = vpop.f32.mrb[0].mxu0
      %790 = vmatprep.mubr.f32.mxu0 0.0
      %791 = vmatmul.mubr.f32.gmra.mrb[0].mxu0 %v431
      %v792 = vpop.f32.mrb[0].mxu0
      %v793 = vadd.f32 %v271, %v792
      %v794 = vpop.f32.mrb[0].mxu0
      %795 = vmatprep.mubr.f32.mxu0 0.0
      %796 = vmatmul.mubr.f32.gmra.mrb[0].mxu0 %v434
      %v797 = vpop.f32.mrb[0].mxu0
      %v798 = vadd.f32 %v271, %v797
      %v799 = vpop.f32.mrb[0].mxu0
      %800 = vmatprep.mubr.f32.mxu0 0.0
      %801 = vmatmul.mubr.f32.gmra.mrb[0].mxu0 %v437
      %v802 = vpop.f32.mrb[0].mxu0
      %v803 = vadd.f32 %v271, %v802
      %v804 = vpop.f32.mrb[0].mxu0
      %805 = vmatprep.mubr.f32.mxu0 0.0
      %806 = vmatmul.mubr.f32.gmra.mrb[0].mxu0 %v440
      %v807 = vpop.f32.mrb[0].mxu0
      %v808 = vadd.f32 %v271, %v807
      %v809 = vpop.f32.mrb[0].mxu0
      %810 = vmatprep.mubr.f32.mxu0 0.0
      %811 = vmatmul.mubr.f32.gmra.mrb[0].mxu0 %v443
      %v812 = vpop.f32.mrb[0].mxu0
      %v813 = vadd.f32 %v271, %v812
      %v814 = vpop.f32.mrb[0].mxu0
      %815 = vmatprep.mubr.f32.mxu0 0.0
      %816 = vmatmul.mubr.f32.gmra.mrb[0].mxu0 %v446
      %v817 = vpop.f32.mrb[0].mxu0
      %v818 = vadd.f32 %v271, %v817
      %v819 = vpop.f32.mrb[0].mxu0
      %820 = vmatprep.mubr.f32.mxu0 0.0
      %821 = vmatmul.mubr.f32.gmra.mrb[0].mxu0 %v449
      %v822 = vpop.f32.mrb[0].mxu0
      %v823 = vadd.f32 %v271, %v822
      %v824 = vpop.f32.mrb[0].mxu0
      %825 = vmatprep.mubr.f32.mxu0 0.0
      %826 = vmatmul.mubr.f32.gmra.mrb[0].mxu0 %v452
      %v827 = vpop.f32.mrb[0].mxu0
      %v828 = vadd.f32 %v271, %v827
      %v829 = vpop.f32.mrb[0].mxu0
      %830 = vmatprep.mubr.f32.mxu0 0.0
      %831 = vmatmul.mubr.f32.gmra.mrb[0].mxu0 %v455
      %v832 = vpop.f32.mrb[0].mxu0
      %v833 = vadd.f32 %v271, %v832
      %v834 = vpop.f32.mrb[0].mxu0
      %835 = vmatprep.mubr.f32.mxu0 0.0
      %836 = vmatmul.mubr.f32.gmra.mrb[0].mxu0 %v458
      %v837 = vpop.f32.mrb[0].mxu0
      %v838 = vadd.f32 %v271, %v837
      %v839 = vpop.f32.mrb[0].mxu0
      %840 = vmatprep.mubr.f32.mxu0 0.0
      %841 = vmatmul.mubr.f32.gmra.mrb[0].mxu0 %v461
      %v842 = vpop.f32.mrb[0].mxu0
      %v843 = vadd.f32 %v271, %v842
      %v844 = vpop.f32.mrb[0].mxu0
      %845 = vmatprep.mubr.f32.mxu0 0.0
      %846 = vmatmul.mubr.f32.gmra.mrb[0].mxu0 %v464
      %v847 = vpop.f32.mrb[0].mxu0
      %v848 = vadd.f32 %v271, %v847
      %v849 = vpop.f32.mrb[0].mxu0
      %850 = vdwg.mxu0
      %851 = vmin.index.xlane.f32.xlu0 %v533
      %v852 = vpop.xlane.xlu0 %851
      %853 = vmin.index.xlane.f32.xlu0 %v538
      %v854 = vpop.xlane.xlu0 %853
      %855 = vmin.index.xlane.f32.xlu0 %v543
      %v856 = vpop.xlane.xlu0 %855
      %857 = vmin.index.xlane.f32.xlu0 %v548
      %v858 = vpop.xlane.xlu0 %857
      %859 = vmin.index.xlane.f32.xlu0 %v553
      %v860 = vpop.xlane.xlu0 %859
      %861 = vmin.index.xlane.f32.xlu0 %v558
      %v862 = vpop.xlane.xlu0 %861
      %863 = vmin.index.xlane.f32.xlu0 %v563
      %v864 = vpop.xlane.xlu0 %863
      %865 = vmin.index.xlane.f32.xlu0 %v568
      %v866 = vpop.xlane.xlu0 %865
      %867 = vmin.index.xlane.f32.xlu0 %v573
      %v868 = vpop.xlane.xlu0 %867
      %869 = vmin.index.xlane.f32.xlu0 %v578
      %v870 = vpop.xlane.xlu0 %869
      %871 = vmin.index.xlane.f32.xlu0 %v583
      %v872 = vpop.xlane.xlu0 %871
      %873 = vmin.index.xlane.f32.xlu0 %v588
      %v874 = vpop.xlane.xlu0 %873
      %875 = vmin.index.xlane.f32.xlu0 %v593
      %v876 = vpop.xlane.xlu0 %875
      %877 = vmin.index.xlane.f32.xlu0 %v598
      %v878 = vpop.xlane.xlu0 %877
      %879 = vmin.index.xlane.f32.xlu0 %v603
      %v880 = vpop.xlane.xlu0 %879
      %881 = vmin.index.xlane.f32.xlu0 %v608
      %v882 = vpop.xlane.xlu0 %881
      %883 = vmin.index.xlane.f32.xlu0 %v613
      %v884 = vpop.xlane.xlu0 %883
      %885 = vmin.index.xlane.f32.xlu0 %v618
      %v886 = vpop.xlane.xlu0 %885
      %887 = vmin.index.xlane.f32.xlu0 %v623
      %v888 = vpop.xlane.xlu0 %887
      %889 = vmin.index.xlane.f32.xlu0 %v628
      %v890 = vpop.xlane.xlu0 %889
      %891 = vmin.index.xlane.f32.xlu0 %v633
      %v892 = vpop.xlane.xlu0 %891
      %893 = vmin.index.xlane.f32.xlu0 %v638
      %v894 = vpop.xlane.xlu0 %893
      %895 = vmin.index.xlane.f32.xlu0 %v643
      %v896 = vpop.xlane.xlu0 %895
      %897 = vmin.index.xlane.f32.xlu0 %v648
      %v898 = vpop.xlane.xlu0 %897
      %899 = vmin.index.xlane.f32.xlu0 %v653
      %v900 = vpop.xlane.xlu0 %899
      %901 = vmin.index.xlane.f32.xlu0 %v658
      %v902 = vpop.xlane.xlu0 %901
      %903 = vmin.index.xlane.f32.xlu0 %v663
      %v904 = vpop.xlane.xlu0 %903
      %905 = vmin.index.xlane.f32.xlu0 %v668
      %v906 = vpop.xlane.xlu0 %905
      %907 = vmin.index.xlane.f32.xlu0 %v673
      %v908 = vpop.xlane.xlu0 %907
      %909 = vmin.index.xlane.f32.xlu0 %v678
      %v910 = vpop.xlane.xlu0 %909
      %911 = vmin.index.xlane.f32.xlu0 %v683
      %v912 = vpop.xlane.xlu0 %911
      %913 = vmin.index.xlane.f32.xlu0 %v688
      %v914 = vpop.xlane.xlu0 %913
      %915 = vmin.index.xlane.f32.xlu0 %v693
      %v916 = vpop.xlane.xlu0 %915
      %917 = vmin.index.xlane.f32.xlu0 %v698
      %v918 = vpop.xlane.xlu0 %917
      %919 = vmin.index.xlane.f32.xlu0 %v703
      %v920 = vpop.xlane.xlu0 %919
      %921 = vmin.index.xlane.f32.xlu0 %v708
      %v922 = vpop.xlane.xlu0 %921
      %923 = vmin.index.xlane.f32.xlu0 %v713
      %v924 = vpop.xlane.xlu0 %923
      %925 = vmin.index.xlane.f32.xlu0 %v718
      %v926 = vpop.xlane.xlu0 %925
      %927 = vmin.index.xlane.f32.xlu0 %v723
      %v928 = vpop.xlane.xlu0 %927
      %929 = vmin.index.xlane.f32.xlu0 %v728
      %v930 = vpop.xlane.xlu0 %929
      %931 = vmin.index.xlane.f32.xlu0 %v733
      %v932 = vpop.xlane.xlu0 %931
      %933 = vmin.index.xlane.f32.xlu0 %v738
      %v934 = vpop.xlane.xlu0 %933
      %935 = vmin.index.xlane.f32.xlu0 %v743
      %v936 = vpop.xlane.xlu0 %935
      %937 = vmin.index.xlane.f32.xlu0 %v748
      %v938 = vpop.xlane.xlu0 %937
      %939 = vmin.index.xlane.f32.xlu0 %v753
      %v940 = vpop.xlane.xlu0 %939
      %941 = vmin.index.xlane.f32.xlu0 %v758
      %v942 = vpop.xlane.xlu0 %941
      %943 = vmin.index.xlane.f32.xlu0 %v763
      %v944 = vpop.xlane.xlu0 %943
      %945 = vmin.index.xlane.f32.xlu0 %v768
      %v946 = vpop.xlane.xlu0 %945
      %947 = vmin.index.xlane.f32.xlu0 %v773
      %v948 = vpop.xlane.xlu0 %947
      %949 = vmin.index.xlane.f32.xlu0 %v778
      %v950 = vpop.xlane.xlu0 %949
      %951 = vmin.index.xlane.f32.xlu0 %v783
      %v952 = vpop.xlane.xlu0 %951
      %953 = vmin.index.xlane.f32.xlu0 %v788
      %v954 = vpop.xlane.xlu0 %953
      %955 = vmin.index.xlane.f32.xlu0 %v793
      %v956 = vpop.xlane.xlu0 %955
      %957 = vmin.index.xlane.f32.xlu0 %v798
      %v958 = vpop.xlane.xlu0 %957
      %959 = vmin.index.xlane.f32.xlu0 %v803
      %v960 = vpop.xlane.xlu0 %959
      %961 = vmin.index.xlane.f32.xlu0 %v808
      %v962 = vpop.xlane.xlu0 %961
      %963 = vmin.index.xlane.f32.xlu0 %v813
      %v964 = vpop.xlane.xlu0 %963
      %965 = vmin.index.xlane.f32.xlu0 %v818
      %v966 = vpop.xlane.xlu0 %965
      %967 = vmin.index.xlane.f32.xlu0 %v823
      %v968 = vpop.xlane.xlu0 %967
      %969 = vmin.index.xlane.f32.xlu0 %v828
      %v970 = vpop.xlane.xlu0 %969
      %971 = vmin.index.xlane.f32.xlu0 %v833
      %v972 = vpop.xlane.xlu0 %971
      %973 = vmin.index.xlane.f32.xlu0 %v838
      %v974 = vpop.xlane.xlu0 %973
      %975 = vmin.index.xlane.f32.xlu0 %v843
      %v976 = vpop.xlane.xlu0 %975
      %977 = vmin.index.xlane.f32.xlu0 %v848
      %v978 = vpop.xlane.xlu0 %977
      %v979 = vlaneseq
      %v980 = vand.u32 %v979, 127
      %vm981 = vcmp.eq.s32.totalorder %v980, %v852
      %vm982 = vcmp.eq.s32.totalorder %v980, %v854
      %vm983 = vcmp.eq.s32.totalorder %v980, %v856
      %vm984 = vcmp.eq.s32.totalorder %v980, %v858
      %vm985 = vcmp.eq.s32.totalorder %v980, %v860
      %vm986 = vcmp.eq.s32.totalorder %v980, %v862
      %vm987 = vcmp.eq.s32.totalorder %v980, %v864
      %vm988 = vcmp.eq.s32.totalorder %v980, %v866
      %vm989 = vcmp.eq.s32.totalorder %v980, %v868
      %vm990 = vcmp.eq.s32.totalorder %v980, %v870
      %vm991 = vcmp.eq.s32.totalorder %v980, %v872
      %vm992 = vcmp.eq.s32.totalorder %v980, %v874
      %vm993 = vcmp.eq.s32.totalorder %v980, %v876
      %vm994 = vcmp.eq.s32.totalorder %v980, %v878
      %vm995 = vcmp.eq.s32.totalorder %v980, %v880
      %vm996 = vcmp.eq.s32.totalorder %v980, %v882
      %vm997 = vcmp.eq.s32.totalorder %v980, %v884
      %vm998 = vcmp.eq.s32.totalorder %v980, %v886
      %vm999 = vcmp.eq.s32.totalorder %v980, %v888
      %vm1000 = vcmp.eq.s32.totalorder %v980, %v890
      %vm1001 = vcmp.eq.s32.totalorder %v980, %v892
      %vm1002 = vcmp.eq.s32.totalorder %v980, %v894
      %vm1003 = vcmp.eq.s32.totalorder %v980, %v896
      %vm1004 = vcmp.eq.s32.totalorder %v980, %v898
      %vm1005 = vcmp.eq.s32.totalorder %v980, %v900
      %vm1006 = vcmp.eq.s32.totalorder %v980, %v902
      %vm1007 = vcmp.eq.s32.totalorder %v980, %v904
      %vm1008 = vcmp.eq.s32.totalorder %v980, %v906
      %vm1009 = vcmp.eq.s32.totalorder %v980, %v908
      %vm1010 = vcmp.eq.s32.totalorder %v980, %v910
      %vm1011 = vcmp.eq.s32.totalorder %v980, %v912
      %vm1012 = vcmp.eq.s32.totalorder %v980, %v914
      %vm1013 = vcmp.eq.s32.totalorder %v980, %v916
      %vm1014 = vcmp.eq.s32.totalorder %v980, %v918
      %vm1015 = vcmp.eq.s32.totalorder %v980, %v920
      %vm1016 = vcmp.eq.s32.totalorder %v980, %v922
      %vm1017 = vcmp.eq.s32.totalorder %v980, %v924
      %vm1018 = vcmp.eq.s32.totalorder %v980, %v926
      %vm1019 = vcmp.eq.s32.totalorder %v980, %v928
      %vm1020 = vcmp.eq.s32.totalorder %v980, %v930
      %vm1021 = vcmp.eq.s32.totalorder %v980, %v932
      %vm1022 = vcmp.eq.s32.totalorder %v980, %v934
      %vm1023 = vcmp.eq.s32.totalorder %v980, %v936
      %vm1024 = vcmp.eq.s32.totalorder %v980, %v938
      %vm1025 = vcmp.eq.s32.totalorder %v980, %v940
      %vm1026 = vcmp.eq.s32.totalorder %v980, %v942
      %vm1027 = vcmp.eq.s32.totalorder %v980, %v944
      %vm1028 = vcmp.eq.s32.totalorder %v980, %v946
      %vm1029 = vcmp.eq.s32.totalorder %v980, %v948
      %vm1030 = vcmp.eq.s32.totalorder %v980, %v950
      %vm1031 = vcmp.eq.s32.totalorder %v980, %v952
      %vm1032 = vcmp.eq.s32.totalorder %v980, %v954
      %vm1033 = vcmp.eq.s32.totalorder %v980, %v956
      %vm1034 = vcmp.eq.s32.totalorder %v980, %v958
      %vm1035 = vcmp.eq.s32.totalorder %v980, %v960
      %vm1036 = vcmp.eq.s32.totalorder %v980, %v962
      %vm1037 = vcmp.eq.s32.totalorder %v980, %v964
      %vm1038 = vcmp.eq.s32.totalorder %v980, %v966
      %vm1039 = vcmp.eq.s32.totalorder %v980, %v968
      %vm1040 = vcmp.eq.s32.totalorder %v980, %v970
      %vm1041 = vcmp.eq.s32.totalorder %v980, %v972
      %vm1042 = vcmp.eq.s32.totalorder %v980, %v974
      %vm1043 = vcmp.eq.s32.totalorder %v980, %v976
      %vm1044 = vcmp.eq.s32.totalorder %v980, %v978
      %v1045 = vsel %vm981, 1, 0
      %v1046 = vsel %vm982, 1, 0
      %v1047 = vsel %vm983, 1, 0
      %v1048 = vsel %vm984, 1, 0
      %v1049 = vsel %vm985, 1, 0
      %v1050 = vsel %vm986, 1, 0
      %v1051 = vsel %vm987, 1, 0
      %v1052 = vsel %vm988, 1, 0
      %v1053 = vsel %vm989, 1, 0
      %v1054 = vsel %vm990, 1, 0
      %v1055 = vsel %vm991, 1, 0
      %v1056 = vsel %vm992, 1, 0
      %v1057 = vsel %vm993, 1, 0
      %v1058 = vsel %vm994, 1, 0
      %v1059 = vsel %vm995, 1, 0
      %v1060 = vsel %vm996, 1, 0
      %v1061 = vsel %vm997, 1, 0
      %v1062 = vsel %vm998, 1, 0
      %v1063 = vsel %vm999, 1, 0
      %v1064 = vsel %vm1000, 1, 0
      %v1065 = vsel %vm1001, 1, 0
      %v1066 = vsel %vm1002, 1, 0
      %v1067 = vsel %vm1003, 1, 0
      %v1068 = vsel %vm1004, 1, 0
      %v1069 = vsel %vm1005, 1, 0
      %v1070 = vsel %vm1006, 1, 0
      %v1071 = vsel %vm1007, 1, 0
      %v1072 = vsel %vm1008, 1, 0
      %v1073 = vsel %vm1009, 1, 0
      %v1074 = vsel %vm1010, 1, 0
      %v1075 = vsel %vm1011, 1, 0
      %v1076 = vsel %vm1012, 1, 0
      %v1077 = vsel %vm1013, 1, 0
      %v1078 = vsel %vm1014, 1, 0
      %v1079 = vsel %vm1015, 1, 0
      %v1080 = vsel %vm1016, 1, 0
      %v1081 = vsel %vm1017, 1, 0
      %v1082 = vsel %vm1018, 1, 0
      %v1083 = vsel %vm1019, 1, 0
      %v1084 = vsel %vm1020, 1, 0
      %v1085 = vsel %vm1021, 1, 0
      %v1086 = vsel %vm1022, 1, 0
      %v1087 = vsel %vm1023, 1, 0
      %v1088 = vsel %vm1024, 1, 0
      %v1089 = vsel %vm1025, 1, 0
      %v1090 = vsel %vm1026, 1, 0
      %v1091 = vsel %vm1027, 1, 0
      %v1092 = vsel %vm1028, 1, 0
      %v1093 = vsel %vm1029, 1, 0
      %v1094 = vsel %vm1030, 1, 0
      %v1095 = vsel %vm1031, 1, 0
      %v1096 = vsel %vm1032, 1, 0
      %v1097 = vsel %vm1033, 1, 0
      %v1098 = vsel %vm1034, 1, 0
      %v1099 = vsel %vm1035, 1, 0
      %v1100 = vsel %vm1036, 1, 0
      %v1101 = vsel %vm1037, 1, 0
      %v1102 = vsel %vm1038, 1, 0
      %v1103 = vsel %vm1039, 1, 0
      %v1104 = vsel %vm1040, 1, 0
      %v1105 = vsel %vm1041, 1, 0
      %v1106 = vsel %vm1042, 1, 0
      %v1107 = vsel %vm1043, 1, 0
      %v1108 = vsel %vm1044, 1, 0
      %v1109 = vcvt.s32.f32 %v1045
      %v1110 = vcvt.s32.f32 %v1046
      %v1111 = vcvt.s32.f32 %v1047
      %v1112 = vcvt.s32.f32 %v1048
      %v1113 = vcvt.s32.f32 %v1049
      %v1114 = vcvt.s32.f32 %v1050
      %v1115 = vcvt.s32.f32 %v1051
      %v1116 = vcvt.s32.f32 %v1052
      %v1117 = vcvt.s32.f32 %v1053
      %v1118 = vcvt.s32.f32 %v1054
      %v1119 = vcvt.s32.f32 %v1055
      %v1120 = vcvt.s32.f32 %v1056
      %v1121 = vcvt.s32.f32 %v1057
      %v1122 = vcvt.s32.f32 %v1058
      %v1123 = vcvt.s32.f32 %v1059
      %v1124 = vcvt.s32.f32 %v1060
      %v1125 = vcvt.s32.f32 %v1061
      %v1126 = vcvt.s32.f32 %v1062
      %v1127 = vcvt.s32.f32 %v1063
      %v1128 = vcvt.s32.f32 %v1064
      %v1129 = vcvt.s32.f32 %v1065
      %v1130 = vcvt.s32.f32 %v1066
      %v1131 = vcvt.s32.f32 %v1067
      %v1132 = vcvt.s32.f32 %v1068
      %v1133 = vcvt.s32.f32 %v1069
      %v1134 = vcvt.s32.f32 %v1070
      %v1135 = vcvt.s32.f32 %v1071
      %v1136 = vcvt.s32.f32 %v1072
      %v1137 = vcvt.s32.f32 %v1073
      %v1138 = vcvt.s32.f32 %v1074
      %v1139 = vcvt.s32.f32 %v1075
      %v1140 = vcvt.s32.f32 %v1076
      %v1141 = vcvt.s32.f32 %v1077
      %v1142 = vcvt.s32.f32 %v1078
      %v1143 = vcvt.s32.f32 %v1079
      %v1144 = vcvt.s32.f32 %v1080
      %v1145 = vcvt.s32.f32 %v1081
      %v1146 = vcvt.s32.f32 %v1082
      %v1147 = vcvt.s32.f32 %v1083
      %v1148 = vcvt.s32.f32 %v1084
      %v1149 = vcvt.s32.f32 %v1085
      %v1150 = vcvt.s32.f32 %v1086
      %v1151 = vcvt.s32.f32 %v1087
      %v1152 = vcvt.s32.f32 %v1088
      %v1153 = vcvt.s32.f32 %v1089
      %v1154 = vcvt.s32.f32 %v1090
      %v1155 = vcvt.s32.f32 %v1091
      %v1156 = vcvt.s32.f32 %v1092
      %v1157 = vcvt.s32.f32 %v1093
      %v1158 = vcvt.s32.f32 %v1094
      %v1159 = vcvt.s32.f32 %v1095
      %v1160 = vcvt.s32.f32 %v1096
      %v1161 = vcvt.s32.f32 %v1097
      %v1162 = vcvt.s32.f32 %v1098
      %v1163 = vcvt.s32.f32 %v1099
      %v1164 = vcvt.s32.f32 %v1100
      %v1165 = vcvt.s32.f32 %v1101
      %v1166 = vcvt.s32.f32 %v1102
      %v1167 = vcvt.s32.f32 %v1103
      %v1168 = vcvt.s32.f32 %v1104
      %v1169 = vcvt.s32.f32 %v1105
      %v1170 = vcvt.s32.f32 %v1106
      %v1171 = vcvt.s32.f32 %v1107
      %v1172 = vcvt.s32.f32 %v1108
      %v1173 = vld [vmem:[%s2] sm:$0xff]
      %v1174 = vld [vmem:[%s2 + $0x8] sm:$0xff]
      %v1175 = vld [vmem:[%s2 + $0x10] sm:$0xff]
      %v1176 = vld [vmem:[%s2 + $0x18] sm:$0xff]
      %v1177 = vld [vmem:[%s2 + $0x20] sm:$0xff]
      %v1178 = vld [vmem:[%s2 + $0x28] sm:$0xff]
      %v1179 = vld [vmem:[%s2 + $0x30] sm:$0xff]
      %v1180 = vld [vmem:[%s2 + $0x38] sm:$0xff]
      %v1181 = vld [vmem:[%s2 + $0x40] sm:$0xff]
      %v1182 = vld [vmem:[%s2 + $0x48] sm:$0xff]
      %v1183 = vld [vmem:[%s2 + $0x50] sm:$0xff]
      %v1184 = vld [vmem:[%s2 + $0x58] sm:$0xff]
      %v1185 = vld [vmem:[%s2 + $0x60] sm:$0xff]
      %v1186 = vld [vmem:[%s2 + $0x68] sm:$0xff]
      %v1187 = vld [vmem:[%s2 + $0x70] sm:$0xff]
      %v1188 = vld [vmem:[%s2 + $0x78] sm:$0xff]
      %1189 = vmatprep.subr.mxu0 0.0
      %1190 = vmatpush1.msra.mxu0 %v1173
      %1191 = vmatprep.subr.mxu0 0.0
      %1192 = vmatpush1.msra.mxu0 %v1174
      %1193 = vmatprep.subr.mxu0 0.0
      %1194 = vmatpush1.msra.mxu0 %v1175
      %1195 = vmatprep.subr.mxu0 0.0
      %1196 = vmatpush1.msra.mxu0 %v1176
      %1197 = vmatprep.subr.mxu0 0.0
      %1198 = vmatpush1.msra.mxu0 %v1177
      %1199 = vmatprep.subr.mxu0 0.0
      %1200 = vmatpush1.msra.mxu0 %v1178
      %1201 = vmatprep.subr.mxu0 0.0
      %1202 = vmatpush1.msra.mxu0 %v1179
      %1203 = vmatprep.subr.mxu0 0.0
      %1204 = vmatpush1.msra.mxu0 %v1180
      %1205 = vmatprep.subr.mxu0 0.0
      %1206 = vmatpush1.msra.mxu0 %v1181
      %1207 = vmatprep.subr.mxu0 0.0
      %1208 = vmatpush1.msra.mxu0 %v1182
      %1209 = vmatprep.subr.mxu0 0.0
      %1210 = vmatpush1.msra.mxu0 %v1183
      %1211 = vmatprep.subr.mxu0 0.0
      %1212 = vmatpush1.msra.mxu0 %v1184
      %1213 = vmatprep.subr.mxu0 0.0
      %1214 = vmatpush1.msra.mxu0 %v1185
      %1215 = vmatprep.subr.mxu0 0.0
      %1216 = vmatpush1.msra.mxu0 %v1186
      %1217 = vmatprep.subr.mxu0 0.0
      %1218 = vmatpush1.msra.mxu0 %v1187
      %1219 = vmatprep.subr.mxu0 0.0
      %1220 = vmatpush1.msra.mxu0 %v1188
      %1221 = vmatprep.subr.mxu0 0.0
      %1222 = vmatpush1.msra.mxu0 0.0
      %1223 = vmatprep.subr.mxu0 0.0
      %1224 = vmatpush1.msra.mxu0 0.0
      %1225 = vmatprep.subr.mxu0 0.0
      %1226 = vmatpush1.msra.mxu0 0.0
      %1227 = vmatprep.subr.mxu0 0.0
      %1228 = vmatpush1.msra.mxu0 0.0
      %1229 = vmatprep.subr.mxu0 0.0
      %1230 = vmatpush1.msra.mxu0 0.0
      %1231 = vmatprep.subr.mxu0 0.0
      %1232 = vmatpush1.msra.mxu0 0.0
      %1233 = vmatprep.subr.mxu0 0.0
      %1234 = vmatpush1.msra.mxu0 0.0
      %1235 = vmatprep.subr.mxu0 0.0
      %1236 = vmatpush1.msra.mxu0 0.0
      %1237 = vmatprep.subr.mxu0 0.0
      %1238 = vmatpush1.msra.mxu0 0.0
      %1239 = vmatprep.subr.mxu0 0.0
      %1240 = vmatpush1.msra.mxu0 0.0
      %1241 = vmatprep.subr.mxu0 0.0
      %1242 = vmatpush1.msra.mxu0 0.0
      %1243 = vmatprep.subr.mxu0 0.0
      %1244 = vmatpush1.msra.mxu0 0.0
      %1245 = vmatprep.subr.mxu0 0.0
      %1246 = vmatpush1.msra.mxu0 0.0
      %1247 = vmatprep.subr.mxu0 0.0
      %1248 = vmatpush1.msra.mxu0 0.0
      %1249 = vmatprep.subr.mxu0 0.0
      %1250 = vmatpush1.msra.mxu0 0.0
      %1251 = vmatprep.subr.mxu0 0.0
      %1252 = vmatpush1.msra.mxu0 0.0
      %1253 = vmatprep.mubr.f32.mxu0 0.0
      %1254 = vmatmul.mubr.f32.gmra.mrb[0].mxu0 %v1109
      %v1255 = vpop.f32.mrb[0].mxu0
      %v1256 = vadd.f32 0.0, %v1255
      %v1257 = vpop.f32.mrb[0].mxu0
      %1258 = vmatprep.mubr.f32.mxu0 0.0
      %1259 = vmatmul.mubr.f32.gmra.mrb[0].mxu0 %v1110
      %v1260 = vpop.f32.mrb[0].mxu0
      %v1261 = vadd.f32 0.0, %v1260
      %v1262 = vpop.f32.mrb[0].mxu0
      %1263 = vmatprep.mubr.f32.mxu0 0.0
      %1264 = vmatmul.mubr.f32.gmra.mrb[0].mxu0 %v1111
      %v1265 = vpop.f32.mrb[0].mxu0
      %v1266 = vadd.f32 0.0, %v1265
      %v1267 = vpop.f32.mrb[0].mxu0
      %1268 = vmatprep.mubr.f32.mxu0 0.0
      %1269 = vmatmul.mubr.f32.gmra.mrb[0].mxu0 %v1112
      %v1270 = vpop.f32.mrb[0].mxu0
      %v1271 = vadd.f32 0.0, %v1270
      %v1272 = vpop.f32.mrb[0].mxu0
      %1273 = vmatprep.mubr.f32.mxu0 0.0
      %1274 = vmatmul.mubr.f32.gmra.mrb[0].mxu0 %v1113
      %v1275 = vpop.f32.mrb[0].mxu0
      %v1276 = vadd.f32 0.0, %v1275
      %v1277 = vpop.f32.mrb[0].mxu0
      %1278 = vmatprep.mubr.f32.mxu0 0.0
      %1279 = vmatmul.mubr.f32.gmra.mrb[0].mxu0 %v1114
      %v1280 = vpop.f32.mrb[0].mxu0
      %v1281 = vadd.f32 0.0, %v1280
      %v1282 = vpop.f32.mrb[0].mxu0
      %1283 = vmatprep.mubr.f32.mxu0 0.0
      %1284 = vmatmul.mubr.f32.gmra.mrb[0].mxu0 %v1115
      %v1285 = vpop.f32.mrb[0].mxu0
      %v1286 = vadd.f32 0.0, %v1285
      %v1287 = vpop.f32.mrb[0].mxu0
      %1288 = vmatprep.mubr.f32.mxu0 0.0
      %1289 = vmatmul.mubr.f32.gmra.mrb[0].mxu0 %v1116
      %v1290 = vpop.f32.mrb[0].mxu0
      %v1291 = vadd.f32 0.0, %v1290
      %v1292 = vpop.f32.mrb[0].mxu0
      %1293 = vmatprep.mubr.f32.mxu0 0.0
      %1294 = vmatmul.mubr.f32.gmra.mrb[0].mxu0 %v1117
      %v1295 = vpop.f32.mrb[0].mxu0
      %v1296 = vadd.f32 0.0, %v1295
      %v1297 = vpop.f32.mrb[0].mxu0
      %1298 = vmatprep.mubr.f32.mxu0 0.0
      %1299 = vmatmul.mubr.f32.gmra.mrb[0].mxu0 %v1118
      %v1300 = vpop.f32.mrb[0].mxu0
      %v1301 = vadd.f32 0.0, %v1300
      %v1302 = vpop.f32.mrb[0].mxu0
      %1303 = vmatprep.mubr.f32.mxu0 0.0
      %1304 = vmatmul.mubr.f32.gmra.mrb[0].mxu0 %v1119
      %v1305 = vpop.f32.mrb[0].mxu0
      %v1306 = vadd.f32 0.0, %v1305
      %v1307 = vpop.f32.mrb[0].mxu0
      %1308 = vmatprep.mubr.f32.mxu0 0.0
      %1309 = vmatmul.mubr.f32.gmra.mrb[0].mxu0 %v1120
      %v1310 = vpop.f32.mrb[0].mxu0
      %v1311 = vadd.f32 0.0, %v1310
      %v1312 = vpop.f32.mrb[0].mxu0
      %1313 = vmatprep.mubr.f32.mxu0 0.0
      %1314 = vmatmul.mubr.f32.gmra.mrb[0].mxu0 %v1121
      %v1315 = vpop.f32.mrb[0].mxu0
      %v1316 = vadd.f32 0.0, %v1315
      %v1317 = vpop.f32.mrb[0].mxu0
      %1318 = vmatprep.mubr.f32.mxu0 0.0
      %1319 = vmatmul.mubr.f32.gmra.mrb[0].mxu0 %v1122
      %v1320 = vpop.f32.mrb[0].mxu0
      %v1321 = vadd.f32 0.0, %v1320
      %v1322 = vpop.f32.mrb[0].mxu0
      %1323 = vmatprep.mubr.f32.mxu0 0.0
      %1324 = vmatmul.mubr.f32.gmra.mrb[0].mxu0 %v1123
      %v1325 = vpop.f32.mrb[0].mxu0
      %v1326 = vadd.f32 0.0, %v1325
      %v1327 = vpop.f32.mrb[0].mxu0
      %1328 = vmatprep.mubr.f32.mxu0 0.0
      %1329 = vmatmul.mubr.f32.gmra.mrb[0].mxu0 %v1124
      %v1330 = vpop.f32.mrb[0].mxu0
      %v1331 = vadd.f32 0.0, %v1330
      %v1332 = vpop.f32.mrb[0].mxu0
      %1333 = vmatprep.mubr.f32.mxu0 0.0
      %1334 = vmatmul.mubr.f32.gmra.mrb[0].mxu0 %v1125
      %v1335 = vpop.f32.mrb[0].mxu0
      %v1336 = vadd.f32 0.0, %v1335
      %v1337 = vpop.f32.mrb[0].mxu0
      %1338 = vmatprep.mubr.f32.mxu0 0.0
      %1339 = vmatmul.mubr.f32.gmra.mrb[0].mxu0 %v1126
      %v1340 = vpop.f32.mrb[0].mxu0
      %v1341 = vadd.f32 0.0, %v1340
      %v1342 = vpop.f32.mrb[0].mxu0
      %1343 = vmatprep.mubr.f32.mxu0 0.0
      %1344 = vmatmul.mubr.f32.gmra.mrb[0].mxu0 %v1127
      %v1345 = vpop.f32.mrb[0].mxu0
      %v1346 = vadd.f32 0.0, %v1345
      %v1347 = vpop.f32.mrb[0].mxu0
      %1348 = vmatprep.mubr.f32.mxu0 0.0
      %1349 = vmatmul.mubr.f32.gmra.mrb[0].mxu0 %v1128
      %v1350 = vpop.f32.mrb[0].mxu0
      %v1351 = vadd.f32 0.0, %v1350
      %v1352 = vpop.f32.mrb[0].mxu0
      %1353 = vmatprep.mubr.f32.mxu0 0.0
      %1354 = vmatmul.mubr.f32.gmra.mrb[0].mxu0 %v1129
      %v1355 = vpop.f32.mrb[0].mxu0
      %v1356 = vadd.f32 0.0, %v1355
      %v1357 = vpop.f32.mrb[0].mxu0
      %1358 = vmatprep.mubr.f32.mxu0 0.0
      %1359 = vmatmul.mubr.f32.gmra.mrb[0].mxu0 %v1130
      %v1360 = vpop.f32.mrb[0].mxu0
      %v1361 = vadd.f32 0.0, %v1360
      %v1362 = vpop.f32.mrb[0].mxu0
      %1363 = vmatprep.mubr.f32.mxu0 0.0
      %1364 = vmatmul.mubr.f32.gmra.mrb[0].mxu0 %v1131
      %v1365 = vpop.f32.mrb[0].mxu0
      %v1366 = vadd.f32 0.0, %v1365
      %v1367 = vpop.f32.mrb[0].mxu0
      %1368 = vmatprep.mubr.f32.mxu0 0.0
      %1369 = vmatmul.mubr.f32.gmra.mrb[0].mxu0 %v1132
      %v1370 = vpop.f32.mrb[0].mxu0
      %v1371 = vadd.f32 0.0, %v1370
      %v1372 = vpop.f32.mrb[0].mxu0
      %1373 = vmatprep.mubr.f32.mxu0 0.0
      %1374 = vmatmul.mubr.f32.gmra.mrb[0].mxu0 %v1133
      %v1375 = vpop.f32.mrb[0].mxu0
      %v1376 = vadd.f32 0.0, %v1375
      %v1377 = vpop.f32.mrb[0].mxu0
      %1378 = vmatprep.mubr.f32.mxu0 0.0
      %1379 = vmatmul.mubr.f32.gmra.mrb[0].mxu0 %v1134
      %v1380 = vpop.f32.mrb[0].mxu0
      %v1381 = vadd.f32 0.0, %v1380
      %v1382 = vpop.f32.mrb[0].mxu0
      %1383 = vmatprep.mubr.f32.mxu0 0.0
      %1384 = vmatmul.mubr.f32.gmra.mrb[0].mxu0 %v1135
      %v1385 = vpop.f32.mrb[0].mxu0
      %v1386 = vadd.f32 0.0, %v1385
      %v1387 = vpop.f32.mrb[0].mxu0
      %1388 = vmatprep.mubr.f32.mxu0 0.0
      %1389 = vmatmul.mubr.f32.gmra.mrb[0].mxu0 %v1136
      %v1390 = vpop.f32.mrb[0].mxu0
      %v1391 = vadd.f32 0.0, %v1390
      %v1392 = vpop.f32.mrb[0].mxu0
      %1393 = vmatprep.mubr.f32.mxu0 0.0
      %1394 = vmatmul.mubr.f32.gmra.mrb[0].mxu0 %v1137
      %v1395 = vpop.f32.mrb[0].mxu0
      %v1396 = vadd.f32 0.0, %v1395
      %v1397 = vpop.f32.mrb[0].mxu0
      %1398 = vmatprep.mubr.f32.mxu0 0.0
      %1399 = vmatmul.mubr.f32.gmra.mrb[0].mxu0 %v1138
      %v1400 = vpop.f32.mrb[0].mxu0
      %v1401 = vadd.f32 0.0, %v1400
      %v1402 = vpop.f32.mrb[0].mxu0
      %1403 = vmatprep.mubr.f32.mxu0 0.0
      %1404 = vmatmul.mubr.f32.gmra.mrb[0].mxu0 %v1139
      %v1405 = vpop.f32.mrb[0].mxu0
      %v1406 = vadd.f32 0.0, %v1405
      %v1407 = vpop.f32.mrb[0].mxu0
      %1408 = vmatprep.mubr.f32.mxu0 0.0
      %1409 = vmatmul.mubr.f32.gmra.mrb[0].mxu0 %v1140
      %v1410 = vpop.f32.mrb[0].mxu0
      %v1411 = vadd.f32 0.0, %v1410
      %v1412 = vpop.f32.mrb[0].mxu0
      %1413 = vmatprep.mubr.f32.mxu0 0.0
      %1414 = vmatmul.mubr.f32.gmra.mrb[0].mxu0 %v1141
      %v1415 = vpop.f32.mrb[0].mxu0
      %v1416 = vadd.f32 0.0, %v1415
      %v1417 = vpop.f32.mrb[0].mxu0
      %1418 = vmatprep.mubr.f32.mxu0 0.0
      %1419 = vmatmul.mubr.f32.gmra.mrb[0].mxu0 %v1142
      %v1420 = vpop.f32.mrb[0].mxu0
      %v1421 = vadd.f32 0.0, %v1420
      %v1422 = vpop.f32.mrb[0].mxu0
      %1423 = vmatprep.mubr.f32.mxu0 0.0
      %1424 = vmatmul.mubr.f32.gmra.mrb[0].mxu0 %v1143
      %v1425 = vpop.f32.mrb[0].mxu0
      %v1426 = vadd.f32 0.0, %v1425
      %v1427 = vpop.f32.mrb[0].mxu0
      %1428 = vmatprep.mubr.f32.mxu0 0.0
      %1429 = vmatmul.mubr.f32.gmra.mrb[0].mxu0 %v1144
      %v1430 = vpop.f32.mrb[0].mxu0
      %v1431 = vadd.f32 0.0, %v1430
      %v1432 = vpop.f32.mrb[0].mxu0
      %1433 = vmatprep.mubr.f32.mxu0 0.0
      %1434 = vmatmul.mubr.f32.gmra.mrb[0].mxu0 %v1145
      %v1435 = vpop.f32.mrb[0].mxu0
      %v1436 = vadd.f32 0.0, %v1435
      %v1437 = vpop.f32.mrb[0].mxu0
      %1438 = vmatprep.mubr.f32.mxu0 0.0
      %1439 = vmatmul.mubr.f32.gmra.mrb[0].mxu0 %v1146
      %v1440 = vpop.f32.mrb[0].mxu0
      %v1441 = vadd.f32 0.0, %v1440
      %v1442 = vpop.f32.mrb[0].mxu0
      %1443 = vmatprep.mubr.f32.mxu0 0.0
      %1444 = vmatmul.mubr.f32.gmra.mrb[0].mxu0 %v1147
      %v1445 = vpop.f32.mrb[0].mxu0
      %v1446 = vadd.f32 0.0, %v1445
      %v1447 = vpop.f32.mrb[0].mxu0
      %1448 = vmatprep.mubr.f32.mxu0 0.0
      %1449 = vmatmul.mubr.f32.gmra.mrb[0].mxu0 %v1148
      %v1450 = vpop.f32.mrb[0].mxu0
      %v1451 = vadd.f32 0.0, %v1450
      %v1452 = vpop.f32.mrb[0].mxu0
      %1453 = vmatprep.mubr.f32.mxu0 0.0
      %1454 = vmatmul.mubr.f32.gmra.mrb[0].mxu0 %v1149
      %v1455 = vpop.f32.mrb[0].mxu0
      %v1456 = vadd.f32 0.0, %v1455
      %v1457 = vpop.f32.mrb[0].mxu0
      %1458 = vmatprep.mubr.f32.mxu0 0.0
      %1459 = vmatmul.mubr.f32.gmra.mrb[0].mxu0 %v1150
      %v1460 = vpop.f32.mrb[0].mxu0
      %v1461 = vadd.f32 0.0, %v1460
      %v1462 = vpop.f32.mrb[0].mxu0
      %1463 = vmatprep.mubr.f32.mxu0 0.0
      %1464 = vmatmul.mubr.f32.gmra.mrb[0].mxu0 %v1151
      %v1465 = vpop.f32.mrb[0].mxu0
      %v1466 = vadd.f32 0.0, %v1465
      %v1467 = vpop.f32.mrb[0].mxu0
      %1468 = vmatprep.mubr.f32.mxu0 0.0
      %1469 = vmatmul.mubr.f32.gmra.mrb[0].mxu0 %v1152
      %v1470 = vpop.f32.mrb[0].mxu0
      %v1471 = vadd.f32 0.0, %v1470
      %v1472 = vpop.f32.mrb[0].mxu0
      %1473 = vmatprep.mubr.f32.mxu0 0.0
      %1474 = vmatmul.mubr.f32.gmra.mrb[0].mxu0 %v1153
      %v1475 = vpop.f32.mrb[0].mxu0
      %v1476 = vadd.f32 0.0, %v1475
      %v1477 = vpop.f32.mrb[0].mxu0
      %1478 = vmatprep.mubr.f32.mxu0 0.0
      %1479 = vmatmul.mubr.f32.gmra.mrb[0].mxu0 %v1154
      %v1480 = vpop.f32.mrb[0].mxu0
      %v1481 = vadd.f32 0.0, %v1480
      %v1482 = vpop.f32.mrb[0].mxu0
      %1483 = vmatprep.mubr.f32.mxu0 0.0
      %1484 = vmatmul.mubr.f32.gmra.mrb[0].mxu0 %v1155
      %v1485 = vpop.f32.mrb[0].mxu0
      %v1486 = vadd.f32 0.0, %v1485
      %v1487 = vpop.f32.mrb[0].mxu0
      %1488 = vmatprep.mubr.f32.mxu0 0.0
      %1489 = vmatmul.mubr.f32.gmra.mrb[0].mxu0 %v1156
      %v1490 = vpop.f32.mrb[0].mxu0
      %v1491 = vadd.f32 0.0, %v1490
      %v1492 = vpop.f32.mrb[0].mxu0
      %1493 = vmatprep.mubr.f32.mxu0 0.0
      %1494 = vmatmul.mubr.f32.gmra.mrb[0].mxu0 %v1157
      %v1495 = vpop.f32.mrb[0].mxu0
      %v1496 = vadd.f32 0.0, %v1495
      %v1497 = vpop.f32.mrb[0].mxu0
      %1498 = vmatprep.mubr.f32.mxu0 0.0
      %1499 = vmatmul.mubr.f32.gmra.mrb[0].mxu0 %v1158
      %v1500 = vpop.f32.mrb[0].mxu0
      %v1501 = vadd.f32 0.0, %v1500
      %v1502 = vpop.f32.mrb[0].mxu0
      %1503 = vmatprep.mubr.f32.mxu0 0.0
      %1504 = vmatmul.mubr.f32.gmra.mrb[0].mxu0 %v1159
      %v1505 = vpop.f32.mrb[0].mxu0
      %v1506 = vadd.f32 0.0, %v1505
      %v1507 = vpop.f32.mrb[0].mxu0
      %1508 = vmatprep.mubr.f32.mxu0 0.0
      %1509 = vmatmul.mubr.f32.gmra.mrb[0].mxu0 %v1160
      %v1510 = vpop.f32.mrb[0].mxu0
      %v1511 = vadd.f32 0.0, %v1510
      %v1512 = vpop.f32.mrb[0].mxu0
      %1513 = vmatprep.mubr.f32.mxu0 0.0
      %1514 = vmatmul.mubr.f32.gmra.mrb[0].mxu0 %v1161
      %v1515 = vpop.f32.mrb[0].mxu0
      %v1516 = vadd.f32 0.0, %v1515
      %v1517 = vpop.f32.mrb[0].mxu0
      %1518 = vmatprep.mubr.f32.mxu0 0.0
      %1519 = vmatmul.mubr.f32.gmra.mrb[0].mxu0 %v1162
      %v1520 = vpop.f32.mrb[0].mxu0
      %v1521 = vadd.f32 0.0, %v1520
      %v1522 = vpop.f32.mrb[0].mxu0
      %1523 = vmatprep.mubr.f32.mxu0 0.0
      %1524 = vmatmul.mubr.f32.gmra.mrb[0].mxu0 %v1163
      %v1525 = vpop.f32.mrb[0].mxu0
      %v1526 = vadd.f32 0.0, %v1525
      %v1527 = vpop.f32.mrb[0].mxu0
      %1528 = vmatprep.mubr.f32.mxu0 0.0
      %1529 = vmatmul.mubr.f32.gmra.mrb[0].mxu0 %v1164
      %v1530 = vpop.f32.mrb[0].mxu0
      %v1531 = vadd.f32 0.0, %v1530
      %v1532 = vpop.f32.mrb[0].mxu0
      %1533 = vmatprep.mubr.f32.mxu0 0.0
      %1534 = vmatmul.mubr.f32.gmra.mrb[0].mxu0 %v1165
      %v1535 = vpop.f32.mrb[0].mxu0
      %v1536 = vadd.f32 0.0, %v1535
      %v1537 = vpop.f32.mrb[0].mxu0
      %1538 = vmatprep.mubr.f32.mxu0 0.0
      %1539 = vmatmul.mubr.f32.gmra.mrb[0].mxu0 %v1166
      %v1540 = vpop.f32.mrb[0].mxu0
      %v1541 = vadd.f32 0.0, %v1540
      %v1542 = vpop.f32.mrb[0].mxu0
      %1543 = vmatprep.mubr.f32.mxu0 0.0
      %1544 = vmatmul.mubr.f32.gmra.mrb[0].mxu0 %v1167
      %v1545 = vpop.f32.mrb[0].mxu0
      %v1546 = vadd.f32 0.0, %v1545
      %v1547 = vpop.f32.mrb[0].mxu0
      %1548 = vmatprep.mubr.f32.mxu0 0.0
      %1549 = vmatmul.mubr.f32.gmra.mrb[0].mxu0 %v1168
      %v1550 = vpop.f32.mrb[0].mxu0
      %v1551 = vadd.f32 0.0, %v1550
      %v1552 = vpop.f32.mrb[0].mxu0
      %1553 = vmatprep.mubr.f32.mxu0 0.0
      %1554 = vmatmul.mubr.f32.gmra.mrb[0].mxu0 %v1169
      %v1555 = vpop.f32.mrb[0].mxu0
      %v1556 = vadd.f32 0.0, %v1555
      %v1557 = vpop.f32.mrb[0].mxu0
      %1558 = vmatprep.mubr.f32.mxu0 0.0
      %1559 = vmatmul.mubr.f32.gmra.mrb[0].mxu0 %v1170
      %v1560 = vpop.f32.mrb[0].mxu0
      %v1561 = vadd.f32 0.0, %v1560
      %v1562 = vpop.f32.mrb[0].mxu0
      %1563 = vmatprep.mubr.f32.mxu0 0.0
      %1564 = vmatmul.mubr.f32.gmra.mrb[0].mxu0 %v1171
      %v1565 = vpop.f32.mrb[0].mxu0
      %v1566 = vadd.f32 0.0, %v1565
      %v1567 = vpop.f32.mrb[0].mxu0
      %1568 = vmatprep.mubr.f32.mxu0 0.0
      %1569 = vmatmul.mubr.f32.gmra.mrb[0].mxu0 %v1172
      %v1570 = vpop.f32.mrb[0].mxu0
      %v1571 = vadd.f32 0.0, %v1570
      %v1572 = vpop.f32.mrb[0].mxu0
      %1573 = vdwg.mxu0
      %1574 = vst.msk [vmem:[%s199] sm:$0xff] %vm273, %v1256
      %1575 = vst.msk [vmem:[%s199 + $0x8] sm:$0xff] %vm273, %v1261
      %1576 = vst.msk [vmem:[%s199 + $0x10] sm:$0xff] %vm273, %v1266
      %1577 = vst.msk [vmem:[%s199 + $0x18] sm:$0xff] %vm273, %v1271
      %1578 = vst.msk [vmem:[%s199 + $0x20] sm:$0xff] %vm273, %v1276
      %1579 = vst.msk [vmem:[%s199 + $0x28] sm:$0xff] %vm273, %v1281
      %1580 = vst.msk [vmem:[%s199 + $0x30] sm:$0xff] %vm273, %v1286
      %1581 = vst.msk [vmem:[%s199 + $0x38] sm:$0xff] %vm273, %v1291
      %1582 = vst.msk [vmem:[%s199 + $0x40] sm:$0xff] %vm273, %v1296
      %1583 = vst.msk [vmem:[%s199 + $0x48] sm:$0xff] %vm273, %v1301
      %1584 = vst.msk [vmem:[%s199 + $0x50] sm:$0xff] %vm273, %v1306
      %1585 = vst.msk [vmem:[%s199 + $0x58] sm:$0xff] %vm273, %v1311
      %1586 = vst.msk [vmem:[%s199 + $0x60] sm:$0xff] %vm273, %v1316
      %1587 = vst.msk [vmem:[%s199 + $0x68] sm:$0xff] %vm273, %v1321
      %1588 = vst.msk [vmem:[%s199 + $0x70] sm:$0xff] %vm273, %v1326
      %1589 = vst.msk [vmem:[%s199 + $0x78] sm:$0xff] %vm273, %v1331
      %1590 = vst.msk [vmem:[%s199 + $0x80] sm:$0xff] %vm273, %v1336
      %1591 = vst.msk [vmem:[%s199 + $0x88] sm:$0xff] %vm273, %v1341
      %1592 = vst.msk [vmem:[%s199 + $0x90] sm:$0xff] %vm273, %v1346
      %1593 = vst.msk [vmem:[%s199 + $0x98] sm:$0xff] %vm273, %v1351
      %1594 = vst.msk [vmem:[%s199 + $0xa0] sm:$0xff] %vm273, %v1356
      %1595 = vst.msk [vmem:[%s199 + $0xa8] sm:$0xff] %vm273, %v1361
      %1596 = vst.msk [vmem:[%s199 + $0xb0] sm:$0xff] %vm273, %v1366
      %1597 = vst.msk [vmem:[%s199 + $0xb8] sm:$0xff] %vm273, %v1371
      %1598 = vst.msk [vmem:[%s199 + $0xc0] sm:$0xff] %vm273, %v1376
      %1599 = vst.msk [vmem:[%s199 + $0xc8] sm:$0xff] %vm273, %v1381
      %1600 = vst.msk [vmem:[%s199 + $0xd0] sm:$0xff] %vm273, %v1386
      %1601 = vst.msk [vmem:[%s199 + $0xd8] sm:$0xff] %vm273, %v1391
      %1602 = vst.msk [vmem:[%s199 + $0xe0] sm:$0xff] %vm273, %v1396
      %1603 = vst.msk [vmem:[%s199 + $0xe8] sm:$0xff] %vm273, %v1401
      %1604 = vst.msk [vmem:[%s199 + $0xf0] sm:$0xff] %vm273, %v1406
      %1605 = vst.msk [vmem:[%s199 + $0xf8] sm:$0xff] %vm273, %v1411
      %1606 = vst.msk [vmem:[%s199 + $0x100] sm:$0xff] %vm273, %v1416
      %1607 = vst.msk [vmem:[%s199 + $0x108] sm:$0xff] %vm273, %v1421
      %1608 = vst.msk [vmem:[%s199 + $0x110] sm:$0xff] %vm273, %v1426
      %1609 = vst.msk [vmem:[%s199 + $0x118] sm:$0xff] %vm273, %v1431
      %1610 = vst.msk [vmem:[%s199 + $0x120] sm:$0xff] %vm273, %v1436
      %1611 = vst.msk [vmem:[%s199 + $0x128] sm:$0xff] %vm273, %v1441
      %1612 = vst.msk [vmem:[%s199 + $0x130] sm:$0xff] %vm273, %v1446
      %1613 = vst.msk [vmem:[%s199 + $0x138] sm:$0xff] %vm273, %v1451
      %1614 = vst.msk [vmem:[%s199 + $0x140] sm:$0xff] %vm273, %v1456
      %1615 = vst.msk [vmem:[%s199 + $0x148] sm:$0xff] %vm273, %v1461
      %1616 = vst.msk [vmem:[%s199 + $0x150] sm:$0xff] %vm273, %v1466
      %1617 = vst.msk [vmem:[%s199 + $0x158] sm:$0xff] %vm273, %v1471
      %1618 = vst.msk [vmem:[%s199 + $0x160] sm:$0xff] %vm273, %v1476
      %1619 = vst.msk [vmem:[%s199 + $0x168] sm:$0xff] %vm273, %v1481
      %1620 = vst.msk [vmem:[%s199 + $0x170] sm:$0xff] %vm273, %v1486
      %1621 = vst.msk [vmem:[%s199 + $0x178] sm:$0xff] %vm273, %v1491
      %1622 = vst.msk [vmem:[%s199 + $0x180] sm:$0xff] %vm273, %v1496
      %1623 = vst.msk [vmem:[%s199 + $0x188] sm:$0xff] %vm273, %v1501
      %1624 = vst.msk [vmem:[%s199 + $0x190] sm:$0xff] %vm273, %v1506
      %1625 = vst.msk [vmem:[%s199 + $0x198] sm:$0xff] %vm273, %v1511
      %1626 = vst.msk [vmem:[%s199 + $0x1a0] sm:$0xff] %vm273, %v1516
      %1627 = vst.msk [vmem:[%s199 + $0x1a8] sm:$0xff] %vm273, %v1521
      %1628 = vst.msk [vmem:[%s199 + $0x1b0] sm:$0xff] %vm273, %v1526
      %1629 = vst.msk [vmem:[%s199 + $0x1b8] sm:$0xff] %vm273, %v1531
      %1630 = vst.msk [vmem:[%s199 + $0x1c0] sm:$0xff] %vm273, %v1536
      %1631 = vst.msk [vmem:[%s199 + $0x1c8] sm:$0xff] %vm273, %v1541
      %1632 = vst.msk [vmem:[%s199 + $0x1d0] sm:$0xff] %vm273, %v1546
      %1633 = vst.msk [vmem:[%s199 + $0x1d8] sm:$0xff] %vm273, %v1551
      %1634 = vst.msk [vmem:[%s199 + $0x1e0] sm:$0xff] %vm273, %v1556
      %1635 = vst.msk [vmem:[%s199 + $0x1e8] sm:$0xff] %vm273, %v1561
      %1636 = vst.msk [vmem:[%s199 + $0x1f0] sm:$0xff] %vm273, %v1566
      %1637 = vst.msk [vmem:[%s199 + $0x1f8] sm:$0xff] %vm273, %v1571
      %s1638 = smul.u32 64, %s15
      %p1639 = scmp.lt.s32.totalorder %s1638, 127
      %s1640 = scalar_select %p1639, %s1638, 127
      %s1641 = smul.addr %s1640, 8
      %s1642 = scalar_lea.vmem %s4, %s1641
      // Predicated region
      $region37: #{tpu_custom_call.1} parent=35 // pred_check
        %p1643 = pneg %p122
      $region38: #{tpu_custom_call.1} parent=35 // pred_check_branch
        %1645 = sbr.rel (%p1643) target = $region40
      $region39: #{tpu_custom_call.1} parent=35 // pred_region
        %s1646 = smul.u32 64, %s15
      $region40: #{tpu_custom_call.1} parent=35 // pred_fallthru
        _
    $region36: #{tpu_custom_call.1} parent=5 // pred_fallthru
      _
    %p1647 = scmp.le.s32.totalorder 2, %s10
    // Predicated region
    $region41: #{tpu_custom_call.1} parent=5 // pred_check
      %p1648 = pneg %p1647
    $region42: #{tpu_custom_call.1} parent=5 // pred_check_branch
      %1650 = sbr.rel (%p1648) target = $region44
    $region43: #{tpu_custom_call.1} parent=5 // pred_region
      %s1651 = ssub.s32 %s10, 2
      // Predicated region
      $region45: #{tpu_custom_call.1} parent=43 // pred_check
        %p1652 = pneg %p128
      $region46: #{tpu_custom_call.1} parent=43 // pred_check_branch
        %1654 = sbr.rel (%p1652) target = $region48
      $region47: #{tpu_custom_call.1} parent=43 // pred_region
        %s1655 = smul.u32 64, %s16
        %p1656 = scmp.lt.s32.totalorder %s1655, 127
        %s1657 = scalar_select %p1656, %s1655, 127
        %s1658 = smul.addr %s1657, 8
        %s1659 = scalar_lea.vmem %s4, %s1658
      $region48: #{tpu_custom_call.1} parent=43 // pred_fallthru
        _
    $region44: #{tpu_custom_call.1} parent=5 // pred_fallthru
      _
  $region6: #{tpu_custom_call.1} parent=0 // loop_footer
    %s14 = sadd.s32 1, %s10
  $region7: #{tpu_custom_call.1} parent=0 // loop_footer_branch
    %9 = sbr.rel target = $region3
  $region8: #{tpu_custom_call.1} parent=0 // loop_exit
    _

</llo_original>
